<compile_context>
chip_gen: v7x
topology: tpu7x:2x2x1
jax: 0.10.0
libtpu: 0.0.40
codegen_flags: <defaults>
</compile_context>

<pallas_src>
from functools import partial

import jax
import jax.numpy as jnp
from jax.experimental import pallas as pl
from jax.experimental.pallas import tpu as pltpu


def _round_up(n, m):
    return ((n + m - 1) // m) * m


def _largest_divisor_leq(n, cap):
    for d in range(min(n, cap), 0, -1):
        if n % d == 0:
            return d
    return 1


def stage1_kernel(xwin_ref, dww_ref, dwb_ref, lnw_ref, lnb_ref, w1_ref, b1_ref,
                  h_ref, ss_ref, *, TH, W, C, K):
    """dwconv7x7 + LayerNorm + pwconv1 + GELU for one (batch, row-tile) block.

    xwin_ref : (1, 1, TH+2P, W+2P, Cp) zero-padded input window (halo + lane pad)
    h_ref    : (1, 1, TH*W, C4p)       staged hidden activations (f32)
    ss_ref   : (1, 1, 8, C4p)          per-tile per-channel sum(h*h) partials
    """
    xwin = xwin_ref[0, 0]                     # (THp, Wp, Cp)
    dww = dww_ref[...]                        # (K, K, Cp)

    # ---- depthwise 7x7 conv (padding=3, groups=C) ----
    # One sublane(W)-shifted copy per kj, consumed immediately (only one live at
    # a time); ki shifts along the leading axis are free views.
    acc = None
    for kj in range(K):
        xs = xwin[:, kj:kj + W, :]            # (THp, W, Cp)
        part = xs[0:TH] * dww[0, kj]
        for ki in range(1, K):
            part = part + xs[ki:ki + TH] * dww[ki, kj]
        acc = part if acc is None else acc + part
    dw = acc + dwb_ref[0]                     # (TH, W, Cp); padded lanes stay 0

    # (TH, W, Cp) -> (TH*W, Cp): no relayout copy when W % 8 == 0 (W kept whole).
    x2 = dw.reshape(TH * W, dw.shape[-1])

    # ---- LayerNorm over the TRUE C channels (eps=1e-6) ----
    # Variance via E[x^2] - u^2: padded lanes contribute 0 to both sums and
    # ln_w/ln_b pads are 0, so no channel mask multiply is needed.
    inv_c = jnp.float32(1.0 / C)
    u = jnp.sum(x2, axis=-1, keepdims=True) * inv_c
    ex2 = jnp.sum(x2 * x2, axis=-1, keepdims=True) * inv_c
    s = ex2 - u * u
    xn = (x2 - u) * jax.lax.rsqrt(s + 1e-6)
    xn = xn * lnw_ref[...] + lnb_ref[...]     # padded lanes -> 0

    # ---- pwconv1 (C -> 4C): bf16 operands, f32 MXU accumulation ----
    h = jnp.dot(xn.astype(jnp.bfloat16), w1_ref[...],
                preferred_element_type=jnp.float32) + b1_ref[...]
    # exact erf GELU (matches nn.GELU default)
    h = 0.5 * h * (1.0 + jax.lax.erf(h * jnp.float32(0.7071067811865476)))

    h_ref[0, 0] = h                                        # stage for pass 2
    ss = jnp.sum(h * h, axis=0, keepdims=True)             # (1, C4p); pads are 0
    ss_ref[0, 0] = jnp.broadcast_to(ss, (8, ss.shape[-1]))


def stage2_kernel(h_ref, nx_ref, xres_ref, gamma_ref, beta_ref, w2_ref, b2_ref,
                  out_ref):
    """GRN apply + pwconv2 + residual for one (batch, row-tile) block."""
    h = h_ref[0, 0]                                        # (TH*W, C4p) f32
    nx = nx_ref[0]                                         # (1, C4p)
    g = gamma_ref[...] * (h * nx) + beta_ref[...] + h
    y = jnp.dot(g.astype(jnp.bfloat16), w2_ref[...],
                preferred_element_type=jnp.float32) + b2_ref[...]
    # DropPath(drop_path=0.0) is Identity -> plain residual add.
    out_ref[0, 0] = xres_ref[0, 0] + y


@partial(jax.jit, static_argnames=("tile_h",))
def convnext_block(x_nchw, dw_w, dw_b, ln_w, ln_b, w1, b1, gamma, beta, w2, b2,
                   tile_h=None):
    B, C, H, W = x_nchw.shape
    K = 7
    P = K // 2
    C4 = 4 * C
    LANE = 128
    Cp = _round_up(C, LANE)
    C4p = _round_up(C4, LANE)

    TH = tile_h if tile_h is not None else _largest_divisor_leq(H, 32)
    if H % TH != 0:
        TH = _largest_divisor_leq(H, TH)
    T = H // TH
    THp = TH + 2 * P
    Wp = W + 2 * P
    THW = TH * W
    HW = H * W
    f32 = jnp.float32

    # NCHW -> NHWC, halo + lane-dense channel pad, explicit overlapping row
    # windows (input duplication factor (TH+6)/TH -> pick the largest tile that fits).
    x_nhwc = jnp.transpose(x_nchw, (0, 2, 3, 1)).astype(f32)            # (B,H,W,C)
    xpad = jnp.pad(x_nhwc, ((0, 0), (P, P), (P, P), (0, Cp - C)))        # (B,Hp,Wp,Cp)
    xwin = jnp.stack([xpad[:, t * TH: t * TH + THp] for t in range(T)], axis=1)
    xres = jnp.pad(x_nhwc, ((0, 0), (0, 0), (0, 0), (0, Cp - C))).reshape(B, T, THW, Cp)

    dc, dc4 = Cp - C, C4p - C4
    dw_w_p = jnp.pad(dw_w, ((0, 0), (0, 0), (0, dc)))
    dw_b_p = jnp.pad(dw_b, ((0, 0), (0, dc)))
    ln_w_p = jnp.pad(ln_w, ((0, 0), (0, dc)))
    ln_b_p = jnp.pad(ln_b, ((0, 0), (0, dc)))
    w1_p = jnp.pad(w1, ((0, dc), (0, dc4))).astype(jnp.bfloat16)   # bf16 MXU operand
    b1_p = jnp.pad(b1, ((0, 0), (0, dc4)))
    gamma_p = jnp.pad(gamma, ((0, 0), (0, dc4)))
    beta_p = jnp.pad(beta, ((0, 0), (0, dc4)))
    w2_p = jnp.pad(w2, ((0, dc4), (0, dc))).astype(jnp.bfloat16)   # bf16 MXU operand
    b2_p = jnp.pad(b2, ((0, 0), (0, dc)))

    # ---------- pass 1: dwconv + LN + pwconv1 + GELU, stage h + GRN partials ----------
    in_blk1 = THp * Wp * Cp * 4
    h_blk = THW * C4p * 4
    ss_blk = 8 * C4p * 4
    w_bytes1 = Cp * C4p * 2 + (K * K * Cp + 3 * Cp + C4p) * 4
    vmem1 = 2 * (in_blk1 + h_blk + ss_blk) + w_bytes1 + 3 * h_blk + 6 * THW * Cp * 4
    vmem1 = int(min(48 * 2**20, max(16 * 2**20, vmem1)))   # <=48 MiB: headroom on v7x

    kernel1 = partial(stage1_kernel, TH=TH, W=W, C=C, K=K)
    h_stage, ss_part = pl.pallas_call(
        kernel1,
        out_shape=(jax.ShapeDtypeStruct((B, T, THW, C4p), f32),
                   jax.ShapeDtypeStruct((B, T, 8, C4p), f32)),
        grid=(B, T),
        in_specs=[
            pl.BlockSpec((1, 1, THp, Wp, Cp), lambda b, t: (b, t, 0, 0, 0)),  # input window
            pl.BlockSpec((K, K, Cp), lambda b, t: (0, 0, 0)),                 # dw weight
            pl.BlockSpec((1, Cp), lambda b, t: (0, 0)),                       # dw bias
            pl.BlockSpec((1, Cp), lambda b, t: (0, 0)),                       # ln weight
            pl.BlockSpec((1, Cp), lambda b, t: (0, 0)),                       # ln bias
            pl.BlockSpec((Cp, C4p), lambda b, t: (0, 0)),                     # pwconv1 W (bf16)
            pl.BlockSpec((1, C4p), lambda b, t: (0, 0)),                      # pwconv1 b
        ],
        out_specs=(
            pl.BlockSpec((1, 1, THW, C4p), lambda b, t: (b, t, 0, 0)),        # staged h
            pl.BlockSpec((1, 1, 8, C4p), lambda b, t: (b, t, 0, 0)),          # sum(h*h) partials
        ),
        compiler_params=pltpu.CompilerParams(
            dimension_semantics=("parallel", "parallel"),
            vmem_limit_bytes=vmem1),
        cost_estimate=pl.CostEstimate(
            flops=int(B * HW * (2 * K * K * Cp + 2 * Cp * C4p + 8 * Cp)),
            transcendentals=int(B * HW * (C4p + 1)),
            bytes_accessed=int(B * T * in_blk1 + B * T * (h_blk + ss_blk) + w_bytes1)),
    )(xwin, dw_w_p, dw_b_p, ln_w_p, ln_b_p, w1_p, b1_p)

    # ---------- GRN statistics (tiny, plain JAX) ----------
    sumsq = jnp.sum(ss_part[:, :, 0, :], axis=1)            # (B, C4p); padded lanes 0
    gx = jnp.sqrt(sumsq)                                    # L2 norm over all spatial
    gmean = jnp.sum(gx, axis=-1, keepdims=True) * (1.0 / C4)
    nx = (gx / (gmean + 1e-6))[:, None, :]                  # (B, 1, C4p)

    # ---------- pass 2: GRN apply + pwconv2 + residual ----------
    out_blk = THW * Cp * 4
    vmem2 = 2 * (h_blk + C4p * 4 + 2 * out_blk) + C4p * Cp * 2 + 3 * h_blk
    vmem2 = int(min(48 * 2**20, max(16 * 2**20, vmem2)))

    out = pl.pallas_call(
        stage2_kernel,
        out_shape=jax.ShapeDtypeStruct((B, T, THW, Cp), f32),
        grid=(B, T),
        in_specs=[
            pl.BlockSpec((1, 1, THW, C4p), lambda b, t: (b, t, 0, 0)),   # staged h
            pl.BlockSpec((1, 1, C4p), lambda b, t: (b, 0, 0)),           # Nx
            pl.BlockSpec((1, 1, THW, Cp), lambda b, t: (b, t, 0, 0)),    # residual input
            pl.BlockSpec((1, C4p), lambda b, t: (0, 0)),                 # GRN gamma
            pl.BlockSpec((1, C4p), lambda b, t: (0, 0)),                 # GRN beta
            pl.BlockSpec((C4p, Cp), lambda b, t: (0, 0)),                # pwconv2 W (bf16)
            pl.BlockSpec((1, Cp), lambda b, t: (0, 0)),                  # pwconv2 b
        ],
        out_specs=pl.BlockSpec((1, 1, THW, Cp), lambda b, t: (b, t, 0, 0)),
        compiler_params=pltpu.CompilerParams(
            dimension_semantics=("parallel", "parallel"),
            vmem_limit_bytes=vmem2),
        cost_estimate=pl.CostEstimate(
            flops=int(B * HW * (2 * C4p * Cp + 4 * C4p + Cp)),
            transcendentals=0,
            bytes_accessed=int(B * HW * (C4p + 2 * Cp) * 4 + C4p * Cp * 2
                               + B * C4p * 4 + (2 * C4p + Cp) * 4)),
    )(h_stage, nx, xres, gamma_p, beta_p, w2_p, b2_p)

    out = out.reshape(B, H, W, Cp)[:, :, :, :C]
    return jnp.transpose(out, (0, 3, 1, 2)).astype(x_nchw.dtype)    # NHWC -> NCHW


def reference(x_nchw, dw_w, dw_b, ln_w, ln_b, w1, b1, gamma, beta, w2, b2):
    """Pure-JAX f32 reference matching the PyTorch Block forward."""
    C = x_nchw.shape[1]
    x = jnp.transpose(x_nchw, (0, 2, 3, 1))                  # NHWC
    w_hwio = dw_w[:, :, None, :]                             # (7,7,1,C)
    y = jax.lax.conv_general_dilated(
        x, w_hwio, window_strides=(1, 1), padding=((3, 3), (3, 3)),
        dimension_numbers=("NHWC", "HWIO", "NHWC"),
        feature_group_count=C) + dw_b.reshape(1, 1, 1, -1)
    u = y.mean(-1, keepdims=True)
    s = ((y - u) ** 2).mean(-1, keepdims=True)
    yn = (y - u) / jnp.sqrt(s + 1e-6) * ln_w.reshape(1, 1, 1, -1) + ln_b.reshape(1, 1, 1, -1)
    h = yn @ w1 + b1.reshape(1, 1, 1, -1)
    h = 0.5 * h * (1.0 + jax.lax.erf(h / jnp.sqrt(jnp.float32(2.0))))
    gx = jnp.sqrt(jnp.sum(h * h, axis=(1, 2), keepdims=True))
    nx = gx / (gx.mean(-1, keepdims=True) + 1e-6)
    h = gamma.reshape(1, 1, 1, -1) * (h * nx) + beta.reshape(1, 1, 1, -1) + h
    out = h @ w2 + b2.reshape(1, 1, 1, -1)
    return x_nchw + jnp.transpose(out, (0, 3, 1, 2))


if __name__ == "__main__":
    B, C, H, W = 2, 4, 16, 16
    C4 = 4 * C

    key = jax.random.PRNGKey(0)
    ks = jax.random.split(key, 12)
    f32 = jnp.float32

    x = jax.random.normal(ks[0], (B, C, H, W), f32)

    # Deterministic synthetic parameters (shapes from Block.__init__; GRN gamma/beta
    # made non-zero so the GRN path is actually exercised).
    dw_w = jax.random.normal(ks[1], (7, 7, C), f32) * 0.1
    dw_b = jax.random.normal(ks[2], (1, C), f32) * 0.1
    ln_w = jnp.ones((1, C), f32) + 0.1 * jax.random.normal(ks[3], (1, C), f32)
    ln_b = 0.1 * jax.random.normal(ks[4], (1, C), f32)
    w1 = jax.random.normal(ks[5], (C, C4), f32) * (1.0 / jnp.sqrt(f32(C)))
    b1 = 0.1 * jax.random.normal(ks[6], (1, C4), f32)
    gamma = 0.5 * jax.random.normal(ks[7], (1, C4), f32)
    beta = 0.1 * jax.random.normal(ks[8], (1, C4), f32)
    w2 = jax.random.normal(ks[9], (C4, C), f32) * (1.0 / jnp.sqrt(f32(C4)))
    b2 = 0.1 * jax.random.normal(ks[10], (1, C), f32)

    # tile_h=8 -> 2 row tiles per image: exercises the multi-tile two-pass GRN path.
    out = convnext_block(x, dw_w, dw_b, ln_w, ln_b, w1, b1, gamma, beta, w2, b2,
                         tile_h=8)
    out = jax.block_until_ready(out)

    ref = reference(x, dw_w, dw_b, ln_w, ln_b, w1, b1, gamma, beta, w2, b2)
    assert out.shape == (B, C, H, W)
    max_err = float(jnp.max(jnp.abs(out - ref)))
    # bf16 MXU operands (f32 accumulation) => tolerance deliberately relaxed from 1e-4.
    assert jnp.allclose(out, ref, atol=5e-2, rtol=5e-2), max_err

    print("KERNEL_OK")
</pallas_src>

<mosaic_0001>
module attributes {stable_mosaic.version = 11 : i64} {
  func.func @stage1_kernel(%arg0: i32, %arg1: i32, %arg2: memref<1x1x14x22x128xf32, #tpu.memory_space<vmem>>, %arg3: memref<7x7x128xf32, #tpu.memory_space<vmem>>, %arg4: memref<1x128xf32, #tpu.memory_space<vmem>>, %arg5: memref<1x128xf32, #tpu.memory_space<vmem>>, %arg6: memref<1x128xf32, #tpu.memory_space<vmem>>, %arg7: memref<128x128xbf16, #tpu.memory_space<vmem>>, %arg8: memref<1x128xf32, #tpu.memory_space<vmem>>, %arg9: memref<1x1x128x128xf32, #tpu.memory_space<vmem>>, %arg10: memref<1x1x8x128xf32, #tpu.memory_space<vmem>>) attributes {dimension_semantics = [#tpu.dimension_semantics<parallel>, #tpu.dimension_semantics<parallel>], iteration_bounds = array<i64: 2, 2>, scalar_prefetch = 0 : i64, scratch_operands = 0 : i64, tpu.core_type = #tpu.core_type<tc>, window_params = [{transform_indices = @transform_0, window_bounds = array<i64: 1, 1, 14, 22, 128>}, {pipeline_mode = #tpu.pipeline_mode<synchronous>, transform_indices = @transform_1, window_bounds = array<i64: 7, 7, 128>}, {pipeline_mode = #tpu.pipeline_mode<synchronous>, transform_indices = @transform_2, window_bounds = array<i64: 1, 128>}, {pipeline_mode = #tpu.pipeline_mode<synchronous>, transform_indices = @transform_3, window_bounds = array<i64: 1, 128>}, {pipeline_mode = #tpu.pipeline_mode<synchronous>, transform_indices = @transform_4, window_bounds = array<i64: 1, 128>}, {pipeline_mode = #tpu.pipeline_mode<synchronous>, transform_indices = @transform_5, window_bounds = array<i64: 128, 128>}, {pipeline_mode = #tpu.pipeline_mode<synchronous>, transform_indices = @transform_6, window_bounds = array<i64: 1, 128>}, {transform_indices = @transform_7, window_bounds = array<i64: 1, 1, 128, 128>}, {transform_indices = @transform_8, window_bounds = array<i64: 1, 1, 8, 128>}]} {
    %c0 = arith.constant 0 : index
    %c0_0 = arith.constant 0 : index
    %c0_1 = arith.constant 0 : index
    %c0_2 = arith.constant 0 : index
    %c0_3 = arith.constant 0 : index
    %0 = vector.load %arg2[%c0, %c0_0, %c0_1, %c0_2, %c0_3] : memref<1x1x14x22x128xf32, #tpu.memory_space<vmem>>, vector<1x1x14x22x128xf32>
    %1 = vector.shape_cast %0 : vector<1x1x14x22x128xf32> to vector<14x22x128xf32>
    %c0_4 = arith.constant 0 : index
    %c0_5 = arith.constant 0 : index
    %c0_6 = arith.constant 0 : index
    %2 = vector.load %arg3[%c0_4, %c0_5, %c0_6] : memref<7x7x128xf32, #tpu.memory_space<vmem>>, vector<7x7x128xf32>
    %3 = vector.extract_strided_slice %1 {offsets = [0, 0, 0], sizes = [14, 16, 128], strides = [1, 1, 1]} : vector<14x22x128xf32> to vector<14x16x128xf32>
    %4 = vector.extract_strided_slice %3 {offsets = [0, 0, 0], sizes = [8, 16, 128], strides = [1, 1, 1]} : vector<14x16x128xf32> to vector<8x16x128xf32>
    %5 = vector.extract_strided_slice %2 {offsets = [0, 0, 0], sizes = [1, 1, 128], strides = [1, 1, 1]} : vector<7x7x128xf32> to vector<1x1x128xf32>
    %6 = vector.shape_cast %5 : vector<1x1x128xf32> to vector<128xf32>
    %7 = vector.shape_cast %6 : vector<128xf32> to vector<1x1x128xf32>
    %8 = vector.broadcast %7 : vector<1x1x128xf32> to vector<8x16x128xf32>
    %9 = arith.mulf %4, %8 : vector<8x16x128xf32>
    %10 = vector.extract_strided_slice %3 {offsets = [1, 0, 0], sizes = [8, 16, 128], strides = [1, 1, 1]} : vector<14x16x128xf32> to vector<8x16x128xf32>
    %11 = vector.extract_strided_slice %2 {offsets = [1, 0, 0], sizes = [1, 1, 128], strides = [1, 1, 1]} : vector<7x7x128xf32> to vector<1x1x128xf32>
    %12 = vector.shape_cast %11 : vector<1x1x128xf32> to vector<128xf32>
    %13 = vector.shape_cast %12 : vector<128xf32> to vector<1x1x128xf32>
    %14 = vector.broadcast %13 : vector<1x1x128xf32> to vector<8x16x128xf32>
    %15 = arith.mulf %10, %14 : vector<8x16x128xf32>
    %16 = arith.addf %9, %15 : vector<8x16x128xf32>
    %17 = vector.extract_strided_slice %3 {offsets = [2, 0, 0], sizes = [8, 16, 128], strides = [1, 1, 1]} : vector<14x16x128xf32> to vector<8x16x128xf32>
    %18 = vector.extract_strided_slice %2 {offsets = [2, 0, 0], sizes = [1, 1, 128], strides = [1, 1, 1]} : vector<7x7x128xf32> to vector<1x1x128xf32>
    %19 = vector.shape_cast %18 : vector<1x1x128xf32> to vector<128xf32>
    %20 = vector.shape_cast %19 : vector<128xf32> to vector<1x1x128xf32>
    %21 = vector.broadcast %20 : vector<1x1x128xf32> to vector<8x16x128xf32>
    %22 = arith.mulf %17, %21 : vector<8x16x128xf32>
    %23 = arith.addf %16, %22 : vector<8x16x128xf32>
    %24 = vector.extract_strided_slice %3 {offsets = [3, 0, 0], sizes = [8, 16, 128], strides = [1, 1, 1]} : vector<14x16x128xf32> to vector<8x16x128xf32>
    %25 = vector.extract_strided_slice %2 {offsets = [3, 0, 0], sizes = [1, 1, 128], strides = [1, 1, 1]} : vector<7x7x128xf32> to vector<1x1x128xf32>
    %26 = vector.shape_cast %25 : vector<1x1x128xf32> to vector<128xf32>
    %27 = vector.shape_cast %26 : vector<128xf32> to vector<1x1x128xf32>
    %28 = vector.broadcast %27 : vector<1x1x128xf32> to vector<8x16x128xf32>
    %29 = arith.mulf %24, %28 : vector<8x16x128xf32>
    %30 = arith.addf %23, %29 : vector<8x16x128xf32>
    %31 = vector.extract_strided_slice %3 {offsets = [4, 0, 0], sizes = [8, 16, 128], strides = [1, 1, 1]} : vector<14x16x128xf32> to vector<8x16x128xf32>
    %32 = vector.extract_strided_slice %2 {offsets = [4, 0, 0], sizes = [1, 1, 128], strides = [1, 1, 1]} : vector<7x7x128xf32> to vector<1x1x128xf32>
    %33 = vector.shape_cast %32 : vector<1x1x128xf32> to vector<128xf32>
    %34 = vector.shape_cast %33 : vector<128xf32> to vector<1x1x128xf32>
    %35 = vector.broadcast %34 : vector<1x1x128xf32> to vector<8x16x128xf32>
    %36 = arith.mulf %31, %35 : vector<8x16x128xf32>
    %37 = arith.addf %30, %36 : vector<8x16x128xf32>
    %38 = vector.extract_strided_slice %3 {offsets = [5, 0, 0], sizes = [8, 16, 128], strides = [1, 1, 1]} : vector<14x16x128xf32> to vector<8x16x128xf32>
    %39 = vector.extract_strided_slice %2 {offsets = [5, 0, 0], sizes = [1, 1, 128], strides = [1, 1, 1]} : vector<7x7x128xf32> to vector<1x1x128xf32>
    %40 = vector.shape_cast %39 : vector<1x1x128xf32> to vector<128xf32>
    %41 = vector.shape_cast %40 : vector<128xf32> to vector<1x1x128xf32>
    %42 = vector.broadcast %41 : vector<1x1x128xf32> to vector<8x16x128xf32>
    %43 = arith.mulf %38, %42 : vector<8x16x128xf32>
    %44 = arith.addf %37, %43 : vector<8x16x128xf32>
    %45 = vector.extract_strided_slice %3 {offsets = [6, 0, 0], sizes = [8, 16, 128], strides = [1, 1, 1]} : vector<14x16x128xf32> to vector<8x16x128xf32>
    %46 = vector.extract_strided_slice %2 {offsets = [6, 0, 0], sizes = [1, 1, 128], strides = [1, 1, 1]} : vector<7x7x128xf32> to vector<1x1x128xf32>
    %47 = vector.shape_cast %46 : vector<1x1x128xf32> to vector<128xf32>
    %48 = vector.shape_cast %47 : vector<128xf32> to vector<1x1x128xf32>
    %49 = vector.broadcast %48 : vector<1x1x128xf32> to vector<8x16x128xf32>
    %50 = arith.mulf %45, %49 : vector<8x16x128xf32>
    %51 = arith.addf %44, %50 : vector<8x16x128xf32>
    %52 = vector.extract_strided_slice %1 {offsets = [0, 1, 0], sizes = [14, 16, 128], strides = [1, 1, 1]} : vector<14x22x128xf32> to vector<14x16x128xf32>
    %53 = vector.extract_strided_slice %52 {offsets = [0, 0, 0], sizes = [8, 16, 128], strides = [1, 1, 1]} : vector<14x16x128xf32> to vector<8x16x128xf32>
    %54 = vector.extract_strided_slice %2 {offsets = [0, 1, 0], sizes = [1, 1, 128], strides = [1, 1, 1]} : vector<7x7x128xf32> to vector<1x1x128xf32>
    %55 = vector.shape_cast %54 : vector<1x1x128xf32> to vector<128xf32>
    %56 = vector.shape_cast %55 : vector<128xf32> to vector<1x1x128xf32>
    %57 = vector.broadcast %56 : vector<1x1x128xf32> to vector<8x16x128xf32>
    %58 = arith.mulf %53, %57 : vector<8x16x128xf32>
    %59 = vector.extract_strided_slice %52 {offsets = [1, 0, 0], sizes = [8, 16, 128], strides = [1, 1, 1]} : vector<14x16x128xf32> to vector<8x16x128xf32>
    %60 = vector.extract_strided_slice %2 {offsets = [1, 1, 0], sizes = [1, 1, 128], strides = [1, 1, 1]} : vector<7x7x128xf32> to vector<1x1x128xf32>
    %61 = vector.shape_cast %60 : vector<1x1x128xf32> to vector<128xf32>
    %62 = vector.shape_cast %61 : vector<128xf32> to vector<1x1x128xf32>
    %63 = vector.broadcast %62 : vector<1x1x128xf32> to vector<8x16x128xf32>
    %64 = arith.mulf %59, %63 : vector<8x16x128xf32>
    %65 = arith.addf %58, %64 : vector<8x16x128xf32>
    %66 = vector.extract_strided_slice %52 {offsets = [2, 0, 0], sizes = [8, 16, 128], strides = [1, 1, 1]} : vector<14x16x128xf32> to vector<8x16x128xf32>
    %67 = vector.extract_strided_slice %2 {offsets = [2, 1, 0], sizes = [1, 1, 128], strides = [1, 1, 1]} : vector<7x7x128xf32> to vector<1x1x128xf32>
    %68 = vector.shape_cast %67 : vector<1x1x128xf32> to vector<128xf32>
    %69 = vector.shape_cast %68 : vector<128xf32> to vector<1x1x128xf32>
    %70 = vector.broadcast %69 : vector<1x1x128xf32> to vector<8x16x128xf32>
    %71 = arith.mulf %66, %70 : vector<8x16x128xf32>
    %72 = arith.addf %65, %71 : vector<8x16x128xf32>
    %73 = vector.extract_strided_slice %52 {offsets = [3, 0, 0], sizes = [8, 16, 128], strides = [1, 1, 1]} : vector<14x16x128xf32> to vector<8x16x128xf32>
    %74 = vector.extract_strided_slice %2 {offsets = [3, 1, 0], sizes = [1, 1, 128], strides = [1, 1, 1]} : vector<7x7x128xf32> to vector<1x1x128xf32>
    %75 = vector.shape_cast %74 : vector<1x1x128xf32> to vector<128xf32>
    %76 = vector.shape_cast %75 : vector<128xf32> to vector<1x1x128xf32>
    %77 = vector.broadcast %76 : vector<1x1x128xf32> to vector<8x16x128xf32>
    %78 = arith.mulf %73, %77 : vector<8x16x128xf32>
    %79 = arith.addf %72, %78 : vector<8x16x128xf32>
    %80 = vector.extract_strided_slice %52 {offsets = [4, 0, 0], sizes = [8, 16, 128], strides = [1, 1, 1]} : vector<14x16x128xf32> to vector<8x16x128xf32>
    %81 = vector.extract_strided_slice %2 {offsets = [4, 1, 0], sizes = [1, 1, 128], strides = [1, 1, 1]} : vector<7x7x128xf32> to vector<1x1x128xf32>
    %82 = vector.shape_cast %81 : vector<1x1x128xf32> to vector<128xf32>
    %83 = vector.shape_cast %82 : vector<128xf32> to vector<1x1x128xf32>
    %84 = vector.broadcast %83 : vector<1x1x128xf32> to vector<8x16x128xf32>
    %85 = arith.mulf %80, %84 : vector<8x16x128xf32>
    %86 = arith.addf %79, %85 : vector<8x16x128xf32>
    %87 = vector.extract_strided_slice %52 {offsets = [5, 0, 0], sizes = [8, 16, 128], strides = [1, 1, 1]} : vector<14x16x128xf32> to vector<8x16x128xf32>
    %88 = vector.extract_strided_slice %2 {offsets = [5, 1, 0], sizes = [1, 1, 128], strides = [1, 1, 1]} : vector<7x7x128xf32> to vector<1x1x128xf32>
    %89 = vector.shape_cast %88 : vector<1x1x128xf32> to vector<128xf32>
    %90 = vector.shape_cast %89 : vector<128xf32> to vector<1x1x128xf32>
    %91 = vector.broadcast %90 : vector<1x1x128xf32> to vector<8x16x128xf32>
    %92 = arith.mulf %87, %91 : vector<8x16x128xf32>
    %93 = arith.addf %86, %92 : vector<8x16x128xf32>
    %94 = vector.extract_strided_slice %52 {offsets = [6, 0, 0], sizes = [8, 16, 128], strides = [1, 1, 1]} : vector<14x16x128xf32> to vector<8x16x128xf32>
    %95 = vector.extract_strided_slice %2 {offsets = [6, 1, 0], sizes = [1, 1, 128], strides = [1, 1, 1]} : vector<7x7x128xf32> to vector<1x1x128xf32>
    %96 = vector.shape_cast %95 : vector<1x1x128xf32> to vector<128xf32>
    %97 = vector.shape_cast %96 : vector<128xf32> to vector<1x1x128xf32>
    %98 = vector.broadcast %97 : vector<1x1x128xf32> to vector<8x16x128xf32>
    %99 = arith.mulf %94, %98 : vector<8x16x128xf32>
    %100 = arith.addf %93, %99 : vector<8x16x128xf32>
    %101 = arith.addf %51, %100 : vector<8x16x128xf32>
    %102 = vector.extract_strided_slice %1 {offsets = [0, 2, 0], sizes = [14, 16, 128], strides = [1, 1, 1]} : vector<14x22x128xf32> to vector<14x16x128xf32>
    %103 = vector.extract_strided_slice %102 {offsets = [0, 0, 0], sizes = [8, 16, 128], strides = [1, 1, 1]} : vector<14x16x128xf32> to vector<8x16x128xf32>
    %104 = vector.extract_strided_slice %2 {offsets = [0, 2, 0], sizes = [1, 1, 128], strides = [1, 1, 1]} : vector<7x7x128xf32> to vector<1x1x128xf32>
    %105 = vector.shape_cast %104 : vector<1x1x128xf32> to vector<128xf32>
    %106 = vector.shape_cast %105 : vector<128xf32> to vector<1x1x128xf32>
    %107 = vector.broadcast %106 : vector<1x1x128xf32> to vector<8x16x128xf32>
    %108 = arith.mulf %103, %107 : vector<8x16x128xf32>
    %109 = vector.extract_strided_slice %102 {offsets = [1, 0, 0], sizes = [8, 16, 128], strides = [1, 1, 1]} : vector<14x16x128xf32> to vector<8x16x128xf32>
    %110 = vector.extract_strided_slice %2 {offsets = [1, 2, 0], sizes = [1, 1, 128], strides = [1, 1, 1]} : vector<7x7x128xf32> to vector<1x1x128xf32>
    %111 = vector.shape_cast %110 : vector<1x1x128xf32> to vector<128xf32>
    %112 = vector.shape_cast %111 : vector<128xf32> to vector<1x1x128xf32>
    %113 = vector.broadcast %112 : vector<1x1x128xf32> to vector<8x16x128xf32>
    %114 = arith.mulf %109, %113 : vector<8x16x128xf32>
    %115 = arith.addf %108, %114 : vector<8x16x128xf32>
    %116 = vector.extract_strided_slice %102 {offsets = [2, 0, 0], sizes = [8, 16, 128], strides = [1, 1, 1]} : vector<14x16x128xf32> to vector<8x16x128xf32>
    %117 = vector.extract_strided_slice %2 {offsets = [2, 2, 0], sizes = [1, 1, 128], strides = [1, 1, 1]} : vector<7x7x128xf32> to vector<1x1x128xf32>
    %118 = vector.shape_cast %117 : vector<1x1x128xf32> to vector<128xf32>
    %119 = vector.shape_cast %118 : vector<128xf32> to vector<1x1x128xf32>
    %120 = vector.broadcast %119 : vector<1x1x128xf32> to vector<8x16x128xf32>
    %121 = arith.mulf %116, %120 : vector<8x16x128xf32>
    %122 = arith.addf %115, %121 : vector<8x16x128xf32>
    %123 = vector.extract_strided_slice %102 {offsets = [3, 0, 0], sizes = [8, 16, 128], strides = [1, 1, 1]} : vector<14x16x128xf32> to vector<8x16x128xf32>
    %124 = vector.extract_strided_slice %2 {offsets = [3, 2, 0], sizes = [1, 1, 128], strides = [1, 1, 1]} : vector<7x7x128xf32> to vector<1x1x128xf32>
    %125 = vector.shape_cast %124 : vector<1x1x128xf32> to vector<128xf32>
    %126 = vector.shape_cast %125 : vector<128xf32> to vector<1x1x128xf32>
    %127 = vector.broadcast %126 : vector<1x1x128xf32> to vector<8x16x128xf32>
    %128 = arith.mulf %123, %127 : vector<8x16x128xf32>
    %129 = arith.addf %122, %128 : vector<8x16x128xf32>
    %130 = vector.extract_strided_slice %102 {offsets = [4, 0, 0], sizes = [8, 16, 128], strides = [1, 1, 1]} : vector<14x16x128xf32> to vector<8x16x128xf32>
    %131 = vector.extract_strided_slice %2 {offsets = [4, 2, 0], sizes = [1, 1, 128], strides = [1, 1, 1]} : vector<7x7x128xf32> to vector<1x1x128xf32>
    %132 = vector.shape_cast %131 : vector<1x1x128xf32> to vector<128xf32>
    %133 = vector.shape_cast %132 : vector<128xf32> to vector<1x1x128xf32>
    %134 = vector.broadcast %133 : vector<1x1x128xf32> to vector<8x16x128xf32>
    %135 = arith.mulf %130, %134 : vector<8x16x128xf32>
    %136 = arith.addf %129, %135 : vector<8x16x128xf32>
    %137 = vector.extract_strided_slice %102 {offsets = [5, 0, 0], sizes = [8, 16, 128], strides = [1, 1, 1]} : vector<14x16x128xf32> to vector<8x16x128xf32>
    %138 = vector.extract_strided_slice %2 {offsets = [5, 2, 0], sizes = [1, 1, 128], strides = [1, 1, 1]} : vector<7x7x128xf32> to vector<1x1x128xf32>
    %139 = vector.shape_cast %138 : vector<1x1x128xf32> to vector<128xf32>
    %140 = vector.shape_cast %139 : vector<128xf32> to vector<1x1x128xf32>
    %141 = vector.broadcast %140 : vector<1x1x128xf32> to vector<8x16x128xf32>
    %142 = arith.mulf %137, %141 : vector<8x16x128xf32>
    %143 = arith.addf %136, %142 : vector<8x16x128xf32>
    %144 = vector.extract_strided_slice %102 {offsets = [6, 0, 0], sizes = [8, 16, 128], strides = [1, 1, 1]} : vector<14x16x128xf32> to vector<8x16x128xf32>
    %145 = vector.extract_strided_slice %2 {offsets = [6, 2, 0], sizes = [1, 1, 128], strides = [1, 1, 1]} : vector<7x7x128xf32> to vector<1x1x128xf32>
    %146 = vector.shape_cast %145 : vector<1x1x128xf32> to vector<128xf32>
    %147 = vector.shape_cast %146 : vector<128xf32> to vector<1x1x128xf32>
    %148 = vector.broadcast %147 : vector<1x1x128xf32> to vector<8x16x128xf32>
    %149 = arith.mulf %144, %148 : vector<8x16x128xf32>
    %150 = arith.addf %143, %149 : vector<8x16x128xf32>
    %151 = arith.addf %101, %150 : vector<8x16x128xf32>
    %152 = vector.extract_strided_slice %1 {offsets = [0, 3, 0], sizes = [14, 16, 128], strides = [1, 1, 1]} : vector<14x22x128xf32> to vector<14x16x128xf32>
    %153 = vector.extract_strided_slice %152 {offsets = [0, 0, 0], sizes = [8, 16, 128], strides = [1, 1, 1]} : vector<14x16x128xf32> to vector<8x16x128xf32>
    %154 = vector.extract_strided_slice %2 {offsets = [0, 3, 0], sizes = [1, 1, 128], strides = [1, 1, 1]} : vector<7x7x128xf32> to vector<1x1x128xf32>
    %155 = vector.shape_cast %154 : vector<1x1x128xf32> to vector<128xf32>
    %156 = vector.shape_cast %155 : vector<128xf32> to vector<1x1x128xf32>
    %157 = vector.broadcast %156 : vector<1x1x128xf32> to vector<8x16x128xf32>
    %158 = arith.mulf %153, %157 : vector<8x16x128xf32>
    %159 = vector.extract_strided_slice %152 {offsets = [1, 0, 0], sizes = [8, 16, 128], strides = [1, 1, 1]} : vector<14x16x128xf32> to vector<8x16x128xf32>
    %160 = vector.extract_strided_slice %2 {offsets = [1, 3, 0], sizes = [1, 1, 128], strides = [1, 1, 1]} : vector<7x7x128xf32> to vector<1x1x128xf32>
    %161 = vector.shape_cast %160 : vector<1x1x128xf32> to vector<128xf32>
    %162 = vector.shape_cast %161 : vector<128xf32> to vector<1x1x128xf32>
    %163 = vector.broadcast %162 : vector<1x1x128xf32> to vector<8x16x128xf32>
    %164 = arith.mulf %159, %163 : vector<8x16x128xf32>
    %165 = arith.addf %158, %164 : vector<8x16x128xf32>
    %166 = vector.extract_strided_slice %152 {offsets = [2, 0, 0], sizes = [8, 16, 128], strides = [1, 1, 1]} : vector<14x16x128xf32> to vector<8x16x128xf32>
    %167 = vector.extract_strided_slice %2 {offsets = [2, 3, 0], sizes = [1, 1, 128], strides = [1, 1, 1]} : vector<7x7x128xf32> to vector<1x1x128xf32>
    %168 = vector.shape_cast %167 : vector<1x1x128xf32> to vector<128xf32>
    %169 = vector.shape_cast %168 : vector<128xf32> to vector<1x1x128xf32>
    %170 = vector.broadcast %169 : vector<1x1x128xf32> to vector<8x16x128xf32>
    %171 = arith.mulf %166, %170 : vector<8x16x128xf32>
    %172 = arith.addf %165, %171 : vector<8x16x128xf32>
    %173 = vector.extract_strided_slice %152 {offsets = [3, 0, 0], sizes = [8, 16, 128], strides = [1, 1, 1]} : vector<14x16x128xf32> to vector<8x16x128xf32>
    %174 = vector.extract_strided_slice %2 {offsets = [3, 3, 0], sizes = [1, 1, 128], strides = [1, 1, 1]} : vector<7x7x128xf32> to vector<1x1x128xf32>
    %175 = vector.shape_cast %174 : vector<1x1x128xf32> to vector<128xf32>
    %176 = vector.shape_cast %175 : vector<128xf32> to vector<1x1x128xf32>
    %177 = vector.broadcast %176 : vector<1x1x128xf32> to vector<8x16x128xf32>
    %178 = arith.mulf %173, %177 : vector<8x16x128xf32>
    %179 = arith.addf %172, %178 : vector<8x16x128xf32>
    %180 = vector.extract_strided_slice %152 {offsets = [4, 0, 0], sizes = [8, 16, 128], strides = [1, 1, 1]} : vector<14x16x128xf32> to vector<8x16x128xf32>
    %181 = vector.extract_strided_slice %2 {offsets = [4, 3, 0], sizes = [1, 1, 128], strides = [1, 1, 1]} : vector<7x7x128xf32> to vector<1x1x128xf32>
    %182 = vector.shape_cast %181 : vector<1x1x128xf32> to vector<128xf32>
    %183 = vector.shape_cast %182 : vector<128xf32> to vector<1x1x128xf32>
    %184 = vector.broadcast %183 : vector<1x1x128xf32> to vector<8x16x128xf32>
    %185 = arith.mulf %180, %184 : vector<8x16x128xf32>
    %186 = arith.addf %179, %185 : vector<8x16x128xf32>
    %187 = vector.extract_strided_slice %152 {offsets = [5, 0, 0], sizes = [8, 16, 128], strides = [1, 1, 1]} : vector<14x16x128xf32> to vector<8x16x128xf32>
    %188 = vector.extract_strided_slice %2 {offsets = [5, 3, 0], sizes = [1, 1, 128], strides = [1, 1, 1]} : vector<7x7x128xf32> to vector<1x1x128xf32>
    %189 = vector.shape_cast %188 : vector<1x1x128xf32> to vector<128xf32>
    %190 = vector.shape_cast %189 : vector<128xf32> to vector<1x1x128xf32>
    %191 = vector.broadcast %190 : vector<1x1x128xf32> to vector<8x16x128xf32>
    %192 = arith.mulf %187, %191 : vector<8x16x128xf32>
    %193 = arith.addf %186, %192 : vector<8x16x128xf32>
    %194 = vector.extract_strided_slice %152 {offsets = [6, 0, 0], sizes = [8, 16, 128], strides = [1, 1, 1]} : vector<14x16x128xf32> to vector<8x16x128xf32>
    %195 = vector.extract_strided_slice %2 {offsets = [6, 3, 0], sizes = [1, 1, 128], strides = [1, 1, 1]} : vector<7x7x128xf32> to vector<1x1x128xf32>
    %196 = vector.shape_cast %195 : vector<1x1x128xf32> to vector<128xf32>
    %197 = vector.shape_cast %196 : vector<128xf32> to vector<1x1x128xf32>
    %198 = vector.broadcast %197 : vector<1x1x128xf32> to vector<8x16x128xf32>
    %199 = arith.mulf %194, %198 : vector<8x16x128xf32>
    %200 = arith.addf %193, %199 : vector<8x16x128xf32>
    %201 = arith.addf %151, %200 : vector<8x16x128xf32>
    %202 = vector.extract_strided_slice %1 {offsets = [0, 4, 0], sizes = [14, 16, 128], strides = [1, 1, 1]} : vector<14x22x128xf32> to vector<14x16x128xf32>
    %203 = vector.extract_strided_slice %202 {offsets = [0, 0, 0], sizes = [8, 16, 128], strides = [1, 1, 1]} : vector<14x16x128xf32> to vector<8x16x128xf32>
    %204 = vector.extract_strided_slice %2 {offsets = [0, 4, 0], sizes = [1, 1, 128], strides = [1, 1, 1]} : vector<7x7x128xf32> to vector<1x1x128xf32>
    %205 = vector.shape_cast %204 : vector<1x1x128xf32> to vector<128xf32>
    %206 = vector.shape_cast %205 : vector<128xf32> to vector<1x1x128xf32>
    %207 = vector.broadcast %206 : vector<1x1x128xf32> to vector<8x16x128xf32>
    %208 = arith.mulf %203, %207 : vector<8x16x128xf32>
    %209 = vector.extract_strided_slice %202 {offsets = [1, 0, 0], sizes = [8, 16, 128], strides = [1, 1, 1]} : vector<14x16x128xf32> to vector<8x16x128xf32>
    %210 = vector.extract_strided_slice %2 {offsets = [1, 4, 0], sizes = [1, 1, 128], strides = [1, 1, 1]} : vector<7x7x128xf32> to vector<1x1x128xf32>
    %211 = vector.shape_cast %210 : vector<1x1x128xf32> to vector<128xf32>
    %212 = vector.shape_cast %211 : vector<128xf32> to vector<1x1x128xf32>
    %213 = vector.broadcast %212 : vector<1x1x128xf32> to vector<8x16x128xf32>
    %214 = arith.mulf %209, %213 : vector<8x16x128xf32>
    %215 = arith.addf %208, %214 : vector<8x16x128xf32>
    %216 = vector.extract_strided_slice %202 {offsets = [2, 0, 0], sizes = [8, 16, 128], strides = [1, 1, 1]} : vector<14x16x128xf32> to vector<8x16x128xf32>
    %217 = vector.extract_strided_slice %2 {offsets = [2, 4, 0], sizes = [1, 1, 128], strides = [1, 1, 1]} : vector<7x7x128xf32> to vector<1x1x128xf32>
    %218 = vector.shape_cast %217 : vector<1x1x128xf32> to vector<128xf32>
    %219 = vector.shape_cast %218 : vector<128xf32> to vector<1x1x128xf32>
    %220 = vector.broadcast %219 : vector<1x1x128xf32> to vector<8x16x128xf32>
    %221 = arith.mulf %216, %220 : vector<8x16x128xf32>
    %222 = arith.addf %215, %221 : vector<8x16x128xf32>
    %223 = vector.extract_strided_slice %202 {offsets = [3, 0, 0], sizes = [8, 16, 128], strides = [1, 1, 1]} : vector<14x16x128xf32> to vector<8x16x128xf32>
    %224 = vector.extract_strided_slice %2 {offsets = [3, 4, 0], sizes = [1, 1, 128], strides = [1, 1, 1]} : vector<7x7x128xf32> to vector<1x1x128xf32>
    %225 = vector.shape_cast %224 : vector<1x1x128xf32> to vector<128xf32>
    %226 = vector.shape_cast %225 : vector<128xf32> to vector<1x1x128xf32>
    %227 = vector.broadcast %226 : vector<1x1x128xf32> to vector<8x16x128xf32>
    %228 = arith.mulf %223, %227 : vector<8x16x128xf32>
    %229 = arith.addf %222, %228 : vector<8x16x128xf32>
    %230 = vector.extract_strided_slice %202 {offsets = [4, 0, 0], sizes = [8, 16, 128], strides = [1, 1, 1]} : vector<14x16x128xf32> to vector<8x16x128xf32>
    %231 = vector.extract_strided_slice %2 {offsets = [4, 4, 0], sizes = [1, 1, 128], strides = [1, 1, 1]} : vector<7x7x128xf32> to vector<1x1x128xf32>
    %232 = vector.shape_cast %231 : vector<1x1x128xf32> to vector<128xf32>
    %233 = vector.shape_cast %232 : vector<128xf32> to vector<1x1x128xf32>
    %234 = vector.broadcast %233 : vector<1x1x128xf32> to vector<8x16x128xf32>
    %235 = arith.mulf %230, %234 : vector<8x16x128xf32>
    %236 = arith.addf %229, %235 : vector<8x16x128xf32>
    %237 = vector.extract_strided_slice %202 {offsets = [5, 0, 0], sizes = [8, 16, 128], strides = [1, 1, 1]} : vector<14x16x128xf32> to vector<8x16x128xf32>
    %238 = vector.extract_strided_slice %2 {offsets = [5, 4, 0], sizes = [1, 1, 128], strides = [1, 1, 1]} : vector<7x7x128xf32> to vector<1x1x128xf32>
    %239 = vector.shape_cast %238 : vector<1x1x128xf32> to vector<128xf32>
    %240 = vector.shape_cast %239 : vector<128xf32> to vector<1x1x128xf32>
    %241 = vector.broadcast %240 : vector<1x1x128xf32> to vector<8x16x128xf32>
    %242 = arith.mulf %237, %241 : vector<8x16x128xf32>
    %243 = arith.addf %236, %242 : vector<8x16x128xf32>
    %244 = vector.extract_strided_slice %202 {offsets = [6, 0, 0], sizes = [8, 16, 128], strides = [1, 1, 1]} : vector<14x16x128xf32> to vector<8x16x128xf32>
    %245 = vector.extract_strided_slice %2 {offsets = [6, 4, 0], sizes = [1, 1, 128], strides = [1, 1, 1]} : vector<7x7x128xf32> to vector<1x1x128xf32>
    %246 = vector.shape_cast %245 : vector<1x1x128xf32> to vector<128xf32>
    %247 = vector.shape_cast %246 : vector<128xf32> to vector<1x1x128xf32>
    %248 = vector.broadcast %247 : vector<1x1x128xf32> to vector<8x16x128xf32>
    %249 = arith.mulf %244, %248 : vector<8x16x128xf32>
    %250 = arith.addf %243, %249 : vector<8x16x128xf32>
    %251 = arith.addf %201, %250 : vector<8x16x128xf32>
    %252 = vector.extract_strided_slice %1 {offsets = [0, 5, 0], sizes = [14, 16, 128], strides = [1, 1, 1]} : vector<14x22x128xf32> to vector<14x16x128xf32>
    %253 = vector.extract_strided_slice %252 {offsets = [0, 0, 0], sizes = [8, 16, 128], strides = [1, 1, 1]} : vector<14x16x128xf32> to vector<8x16x128xf32>
    %254 = vector.extract_strided_slice %2 {offsets = [0, 5, 0], sizes = [1, 1, 128], strides = [1, 1, 1]} : vector<7x7x128xf32> to vector<1x1x128xf32>
    %255 = vector.shape_cast %254 : vector<1x1x128xf32> to vector<128xf32>
    %256 = vector.shape_cast %255 : vector<128xf32> to vector<1x1x128xf32>
    %257 = vector.broadcast %256 : vector<1x1x128xf32> to vector<8x16x128xf32>
    %258 = arith.mulf %253, %257 : vector<8x16x128xf32>
    %259 = vector.extract_strided_slice %252 {offsets = [1, 0, 0], sizes = [8, 16, 128], strides = [1, 1, 1]} : vector<14x16x128xf32> to vector<8x16x128xf32>
    %260 = vector.extract_strided_slice %2 {offsets = [1, 5, 0], sizes = [1, 1, 128], strides = [1, 1, 1]} : vector<7x7x128xf32> to vector<1x1x128xf32>
    %261 = vector.shape_cast %260 : vector<1x1x128xf32> to vector<128xf32>
    %262 = vector.shape_cast %261 : vector<128xf32> to vector<1x1x128xf32>
    %263 = vector.broadcast %262 : vector<1x1x128xf32> to vector<8x16x128xf32>
    %264 = arith.mulf %259, %263 : vector<8x16x128xf32>
    %265 = arith.addf %258, %264 : vector<8x16x128xf32>
    %266 = vector.extract_strided_slice %252 {offsets = [2, 0, 0], sizes = [8, 16, 128], strides = [1, 1, 1]} : vector<14x16x128xf32> to vector<8x16x128xf32>
    %267 = vector.extract_strided_slice %2 {offsets = [2, 5, 0], sizes = [1, 1, 128], strides = [1, 1, 1]} : vector<7x7x128xf32> to vector<1x1x128xf32>
    %268 = vector.shape_cast %267 : vector<1x1x128xf32> to vector<128xf32>
    %269 = vector.shape_cast %268 : vector<128xf32> to vector<1x1x128xf32>
    %270 = vector.broadcast %269 : vector<1x1x128xf32> to vector<8x16x128xf32>
    %271 = arith.mulf %266, %270 : vector<8x16x128xf32>
    %272 = arith.addf %265, %271 : vector<8x16x128xf32>
    %273 = vector.extract_strided_slice %252 {offsets = [3, 0, 0], sizes = [8, 16, 128], strides = [1, 1, 1]} : vector<14x16x128xf32> to vector<8x16x128xf32>
    %274 = vector.extract_strided_slice %2 {offsets = [3, 5, 0], sizes = [1, 1, 128], strides = [1, 1, 1]} : vector<7x7x128xf32> to vector<1x1x128xf32>
    %275 = vector.shape_cast %274 : vector<1x1x128xf32> to vector<128xf32>
    %276 = vector.shape_cast %275 : vector<128xf32> to vector<1x1x128xf32>
    %277 = vector.broadcast %276 : vector<1x1x128xf32> to vector<8x16x128xf32>
    %278 = arith.mulf %273, %277 : vector<8x16x128xf32>
    %279 = arith.addf %272, %278 : vector<8x16x128xf32>
    %280 = vector.extract_strided_slice %252 {offsets = [4, 0, 0], sizes = [8, 16, 128], strides = [1, 1, 1]} : vector<14x16x128xf32> to vector<8x16x128xf32>
    %281 = vector.extract_strided_slice %2 {offsets = [4, 5, 0], sizes = [1, 1, 128], strides = [1, 1, 1]} : vector<7x7x128xf32> to vector<1x1x128xf32>
    %282 = vector.shape_cast %281 : vector<1x1x128xf32> to vector<128xf32>
    %283 = vector.shape_cast %282 : vector<128xf32> to vector<1x1x128xf32>
    %284 = vector.broadcast %283 : vector<1x1x128xf32> to vector<8x16x128xf32>
    %285 = arith.mulf %280, %284 : vector<8x16x128xf32>
    %286 = arith.addf %279, %285 : vector<8x16x128xf32>
    %287 = vector.extract_strided_slice %252 {offsets = [5, 0, 0], sizes = [8, 16, 128], strides = [1, 1, 1]} : vector<14x16x128xf32> to vector<8x16x128xf32>
    %288 = vector.extract_strided_slice %2 {offsets = [5, 5, 0], sizes = [1, 1, 128], strides = [1, 1, 1]} : vector<7x7x128xf32> to vector<1x1x128xf32>
    %289 = vector.shape_cast %288 : vector<1x1x128xf32> to vector<128xf32>
    %290 = vector.shape_cast %289 : vector<128xf32> to vector<1x1x128xf32>
    %291 = vector.broadcast %290 : vector<1x1x128xf32> to vector<8x16x128xf32>
    %292 = arith.mulf %287, %291 : vector<8x16x128xf32>
    %293 = arith.addf %286, %292 : vector<8x16x128xf32>
    %294 = vector.extract_strided_slice %252 {offsets = [6, 0, 0], sizes = [8, 16, 128], strides = [1, 1, 1]} : vector<14x16x128xf32> to vector<8x16x128xf32>
    %295 = vector.extract_strided_slice %2 {offsets = [6, 5, 0], sizes = [1, 1, 128], strides = [1, 1, 1]} : vector<7x7x128xf32> to vector<1x1x128xf32>
    %296 = vector.shape_cast %295 : vector<1x1x128xf32> to vector<128xf32>
    %297 = vector.shape_cast %296 : vector<128xf32> to vector<1x1x128xf32>
    %298 = vector.broadcast %297 : vector<1x1x128xf32> to vector<8x16x128xf32>
    %299 = arith.mulf %294, %298 : vector<8x16x128xf32>
    %300 = arith.addf %293, %299 : vector<8x16x128xf32>
    %301 = arith.addf %251, %300 : vector<8x16x128xf32>
    %302 = vector.extract_strided_slice %1 {offsets = [0, 6, 0], sizes = [14, 16, 128], strides = [1, 1, 1]} : vector<14x22x128xf32> to vector<14x16x128xf32>
    %303 = vector.extract_strided_slice %302 {offsets = [0, 0, 0], sizes = [8, 16, 128], strides = [1, 1, 1]} : vector<14x16x128xf32> to vector<8x16x128xf32>
    %304 = vector.extract_strided_slice %2 {offsets = [0, 6, 0], sizes = [1, 1, 128], strides = [1, 1, 1]} : vector<7x7x128xf32> to vector<1x1x128xf32>
    %305 = vector.shape_cast %304 : vector<1x1x128xf32> to vector<128xf32>
    %306 = vector.shape_cast %305 : vector<128xf32> to vector<1x1x128xf32>
    %307 = vector.broadcast %306 : vector<1x1x128xf32> to vector<8x16x128xf32>
    %308 = arith.mulf %303, %307 : vector<8x16x128xf32>
    %309 = vector.extract_strided_slice %302 {offsets = [1, 0, 0], sizes = [8, 16, 128], strides = [1, 1, 1]} : vector<14x16x128xf32> to vector<8x16x128xf32>
    %310 = vector.extract_strided_slice %2 {offsets = [1, 6, 0], sizes = [1, 1, 128], strides = [1, 1, 1]} : vector<7x7x128xf32> to vector<1x1x128xf32>
    %311 = vector.shape_cast %310 : vector<1x1x128xf32> to vector<128xf32>
    %312 = vector.shape_cast %311 : vector<128xf32> to vector<1x1x128xf32>
    %313 = vector.broadcast %312 : vector<1x1x128xf32> to vector<8x16x128xf32>
    %314 = arith.mulf %309, %313 : vector<8x16x128xf32>
    %315 = arith.addf %308, %314 : vector<8x16x128xf32>
    %316 = vector.extract_strided_slice %302 {offsets = [2, 0, 0], sizes = [8, 16, 128], strides = [1, 1, 1]} : vector<14x16x128xf32> to vector<8x16x128xf32>
    %317 = vector.extract_strided_slice %2 {offsets = [2, 6, 0], sizes = [1, 1, 128], strides = [1, 1, 1]} : vector<7x7x128xf32> to vector<1x1x128xf32>
    %318 = vector.shape_cast %317 : vector<1x1x128xf32> to vector<128xf32>
    %319 = vector.shape_cast %318 : vector<128xf32> to vector<1x1x128xf32>
    %320 = vector.broadcast %319 : vector<1x1x128xf32> to vector<8x16x128xf32>
    %321 = arith.mulf %316, %320 : vector<8x16x128xf32>
    %322 = arith.addf %315, %321 : vector<8x16x128xf32>
    %323 = vector.extract_strided_slice %302 {offsets = [3, 0, 0], sizes = [8, 16, 128], strides = [1, 1, 1]} : vector<14x16x128xf32> to vector<8x16x128xf32>
    %324 = vector.extract_strided_slice %2 {offsets = [3, 6, 0], sizes = [1, 1, 128], strides = [1, 1, 1]} : vector<7x7x128xf32> to vector<1x1x128xf32>
    %325 = vector.shape_cast %324 : vector<1x1x128xf32> to vector<128xf32>
    %326 = vector.shape_cast %325 : vector<128xf32> to vector<1x1x128xf32>
    %327 = vector.broadcast %326 : vector<1x1x128xf32> to vector<8x16x128xf32>
    %328 = arith.mulf %323, %327 : vector<8x16x128xf32>
    %329 = arith.addf %322, %328 : vector<8x16x128xf32>
    %330 = vector.extract_strided_slice %302 {offsets = [4, 0, 0], sizes = [8, 16, 128], strides = [1, 1, 1]} : vector<14x16x128xf32> to vector<8x16x128xf32>
    %331 = vector.extract_strided_slice %2 {offsets = [4, 6, 0], sizes = [1, 1, 128], strides = [1, 1, 1]} : vector<7x7x128xf32> to vector<1x1x128xf32>
    %332 = vector.shape_cast %331 : vector<1x1x128xf32> to vector<128xf32>
    %333 = vector.shape_cast %332 : vector<128xf32> to vector<1x1x128xf32>
    %334 = vector.broadcast %333 : vector<1x1x128xf32> to vector<8x16x128xf32>
    %335 = arith.mulf %330, %334 : vector<8x16x128xf32>
    %336 = arith.addf %329, %335 : vector<8x16x128xf32>
    %337 = vector.extract_strided_slice %302 {offsets = [5, 0, 0], sizes = [8, 16, 128], strides = [1, 1, 1]} : vector<14x16x128xf32> to vector<8x16x128xf32>
    %338 = vector.extract_strided_slice %2 {offsets = [5, 6, 0], sizes = [1, 1, 128], strides = [1, 1, 1]} : vector<7x7x128xf32> to vector<1x1x128xf32>
    %339 = vector.shape_cast %338 : vector<1x1x128xf32> to vector<128xf32>
    %340 = vector.shape_cast %339 : vector<128xf32> to vector<1x1x128xf32>
    %341 = vector.broadcast %340 : vector<1x1x128xf32> to vector<8x16x128xf32>
    %342 = arith.mulf %337, %341 : vector<8x16x128xf32>
    %343 = arith.addf %336, %342 : vector<8x16x128xf32>
    %344 = vector.extract_strided_slice %302 {offsets = [6, 0, 0], sizes = [8, 16, 128], strides = [1, 1, 1]} : vector<14x16x128xf32> to vector<8x16x128xf32>
    %345 = vector.extract_strided_slice %2 {offsets = [6, 6, 0], sizes = [1, 1, 128], strides = [1, 1, 1]} : vector<7x7x128xf32> to vector<1x1x128xf32>
    %346 = vector.shape_cast %345 : vector<1x1x128xf32> to vector<128xf32>
    %347 = vector.shape_cast %346 : vector<128xf32> to vector<1x1x128xf32>
    %348 = vector.broadcast %347 : vector<1x1x128xf32> to vector<8x16x128xf32>
    %349 = arith.mulf %344, %348 : vector<8x16x128xf32>
    %350 = arith.addf %343, %349 : vector<8x16x128xf32>
    %351 = arith.addf %301, %350 : vector<8x16x128xf32>
    %c0_7 = arith.constant 0 : index
    %c0_8 = arith.constant 0 : index
    %352 = vector.load %arg4[%c0_7, %c0_8] : memref<1x128xf32, #tpu.memory_space<vmem>>, vector<1x128xf32>
    %353 = vector.shape_cast %352 : vector<1x128xf32> to vector<128xf32>
    %354 = vector.shape_cast %353 : vector<128xf32> to vector<1x1x128xf32>
    %355 = vector.broadcast %354 : vector<1x1x128xf32> to vector<8x16x128xf32>
    %356 = arith.addf %351, %355 : vector<8x16x128xf32>
    %357 = vector.shape_cast %356 : vector<8x16x128xf32> to vector<128x128xf32>
    %cst = arith.constant dense<0.000000e+00> : vector<128xf32>
    %358 = vector.multi_reduction <add>, %357, %cst [1] : vector<128x128xf32> to vector<128xf32>
    %359 = vector.shape_cast %358 : vector<128xf32> to vector<128x1xf32>
    %cst_9 = arith.constant 2.500000e-01 : f32
    %360 = vector.broadcast %cst_9 : f32 to vector<128x1xf32>
    %361 = arith.mulf %359, %360 : vector<128x1xf32>
    %362 = arith.mulf %357, %357 : vector<128x128xf32>
    %cst_10 = arith.constant dense<0.000000e+00> : vector<128xf32>
    %363 = vector.multi_reduction <add>, %362, %cst_10 [1] : vector<128x128xf32> to vector<128xf32>
    %364 = vector.shape_cast %363 : vector<128xf32> to vector<128x1xf32>
    %cst_11 = arith.constant 2.500000e-01 : f32
    %365 = vector.broadcast %cst_11 : f32 to vector<128x1xf32>
    %366 = arith.mulf %364, %365 : vector<128x1xf32>
    %367 = arith.mulf %361, %361 : vector<128x1xf32>
    %368 = arith.subf %366, %367 : vector<128x1xf32>
    %369 = vector.broadcast %361 : vector<128x1xf32> to vector<128x128xf32>
    %370 = arith.subf %357, %369 : vector<128x128xf32>
    %cst_12 = arith.constant 9.99999997E-7 : f32
    %371 = vector.broadcast %cst_12 : f32 to vector<128x1xf32>
    %372 = arith.addf %368, %371 : vector<128x1xf32>
    %373 = math.rsqrt %372 : vector<128x1xf32>
    %374 = vector.broadcast %373 : vector<128x1xf32> to vector<128x128xf32>
    %375 = arith.mulf %370, %374 : vector<128x128xf32>
    %c0_13 = arith.constant 0 : index
    %c0_14 = arith.constant 0 : index
    %376 = vector.load %arg5[%c0_13, %c0_14] : memref<1x128xf32, #tpu.memory_space<vmem>>, vector<1x128xf32>
    %377 = vector.broadcast %376 : vector<1x128xf32> to vector<128x128xf32>
    %378 = arith.mulf %375, %377 : vector<128x128xf32>
    %c0_15 = arith.constant 0 : index
    %c0_16 = arith.constant 0 : index
    %379 = vector.load %arg6[%c0_15, %c0_16] : memref<1x128xf32, #tpu.memory_space<vmem>>, vector<1x128xf32>
    %380 = vector.broadcast %379 : vector<1x128xf32> to vector<128x128xf32>
    %381 = arith.addf %378, %380 : vector<128x128xf32>
    %382 = arith.truncf %381 : vector<128x128xf32> to vector<128x128xbf16>
    %c0_17 = arith.constant 0 : index
    %c0_18 = arith.constant 0 : index
    %383 = vector.load %arg7[%c0_17, %c0_18] : memref<128x128xbf16, #tpu.memory_space<vmem>>, vector<128x128xbf16>
    %cst_19 = arith.constant dense<0.000000e+00> : vector<128x128xf32>
    %384 = tpu.matmul %382, %383, %cst_19 {dimension_numbers = #tpu.dot_dimension_numbers<[1], [0], [0], [1], [0, 0, 1, 1], [], []>} : vector<128x128xbf16>, vector<128x128xbf16>, vector<128x128xf32> -> vector<128x128xf32>
    %c0_20 = arith.constant 0 : index
    %c0_21 = arith.constant 0 : index
    %385 = vector.load %arg8[%c0_20, %c0_21] : memref<1x128xf32, #tpu.memory_space<vmem>>, vector<1x128xf32>
    %386 = vector.broadcast %385 : vector<1x128xf32> to vector<128x128xf32>
    %387 = arith.addf %384, %386 : vector<128x128xf32>
    %cst_22 = arith.constant 5.000000e-01 : f32
    %388 = vector.broadcast %cst_22 : f32 to vector<128x128xf32>
    %389 = arith.mulf %388, %387 : vector<128x128xf32>
    %cst_23 = arith.constant 0.707106769 : f32
    %390 = vector.broadcast %cst_23 : f32 to vector<128x128xf32>
    %391 = arith.mulf %387, %390 : vector<128x128xf32>
    %392 = math.erf %391 : vector<128x128xf32>
    %cst_24 = arith.constant 1.000000e+00 : f32
    %393 = vector.broadcast %cst_24 : f32 to vector<128x128xf32>
    %394 = arith.addf %393, %392 : vector<128x128xf32>
    %395 = arith.mulf %389, %394 : vector<128x128xf32>
    %c0_25 = arith.constant 0 : index
    %c0_26 = arith.constant 0 : index
    %c0_27 = arith.constant 0 : index
    %c0_28 = arith.constant 0 : index
    %396 = vector.load %arg9[%c0_25, %c0_26, %c0_27, %c0_28] : memref<1x1x128x128xf32, #tpu.memory_space<vmem>>, vector<1x1x128x128xf32>
    %397 = vector.shape_cast %396 : vector<1x1x128x128xf32> to vector<128x128xf32>
    %398 = vector.shape_cast %395 : vector<128x128xf32> to vector<1x1x128x128xf32>
    tpu.vector_store %arg9[%c0_25, %c0_26, %c0_27, %c0_28], %398 {strides = array<i32>} : memref<1x1x128x128xf32, #tpu.memory_space<vmem>>, vector<1x1x128x128xf32>,
    %399 = arith.mulf %395, %395 : vector<128x128xf32>
    %cst_29 = arith.constant dense<0.000000e+00> : vector<128xf32>
    %400 = vector.multi_reduction <add>, %399, %cst_29 [0] : vector<128x128xf32> to vector<128xf32>
    %401 = vector.shape_cast %400 : vector<128xf32> to vector<1x128xf32>
    %402 = vector.shape_cast %401 : vector<1x128xf32> to vector<1x128xf32>
    %403 = vector.broadcast %402 : vector<1x128xf32> to vector<8x128xf32>
    %c0_30 = arith.constant 0 : index
    %c0_31 = arith.constant 0 : index
    %c0_32 = arith.constant 0 : index
    %c0_33 = arith.constant 0 : index
    %404 = vector.load %arg10[%c0_30, %c0_31, %c0_32, %c0_33] : memref<1x1x8x128xf32, #tpu.memory_space<vmem>>, vector<1x1x8x128xf32>
    %405 = vector.shape_cast %404 : vector<1x1x8x128xf32> to vector<8x128xf32>
    %406 = vector.shape_cast %403 : vector<8x128xf32> to vector<1x1x8x128xf32>
    tpu.vector_store %arg10[%c0_30, %c0_31, %c0_32, %c0_33], %406 {strides = array<i32>} : memref<1x1x8x128xf32, #tpu.memory_space<vmem>>, vector<1x1x8x128xf32>,
    return
  }
  func.func @transform_0(%arg0: i32, %arg1: i32) -> (i32, i32, i32, i32, i32) {
    %c0_i32 = arith.constant 0 : i32
    %c0_i32_0 = arith.constant 0 : i32
    %c0_i32_1 = arith.constant 0 : i32
    %c0_i32_2 = arith.constant 0 : i32
    return %arg0, %arg1, %c0_i32, %c0_i32_0, %c0_i32_1 : i32, i32, i32, i32, i32
  }
  func.func @transform_1(%arg0: i32, %arg1: i32) -> (i32, i32, i32) {
    %c0_i32 = arith.constant 0 : i32
    %c0_i32_0 = arith.constant 0 : i32
    %c0_i32_1 = arith.constant 0 : i32
    %c0_i32_2 = arith.constant 0 : i32
    return %c0_i32, %c0_i32_0, %c0_i32_1 : i32, i32, i32
  }
  func.func @transform_2(%arg0: i32, %arg1: i32) -> (i32, i32) {
    %c0_i32 = arith.constant 0 : i32
    %c0_i32_0 = arith.constant 0 : i32
    %c0_i32_1 = arith.constant 0 : i32
    return %c0_i32, %c0_i32_0 : i32, i32
  }
  func.func @transform_3(%arg0: i32, %arg1: i32) -> (i32, i32) {
    %c0_i32 = arith.constant 0 : i32
    %c0_i32_0 = arith.constant 0 : i32
    %c0_i32_1 = arith.constant 0 : i32
    return %c0_i32, %c0_i32_0 : i32, i32
  }
  func.func @transform_4(%arg0: i32, %arg1: i32) -> (i32, i32) {
    %c0_i32 = arith.constant 0 : i32
    %c0_i32_0 = arith.constant 0 : i32
    %c0_i32_1 = arith.constant 0 : i32
    return %c0_i32, %c0_i32_0 : i32, i32
  }
  func.func @transform_5(%arg0: i32, %arg1: i32) -> (i32, i32) {
    %c0_i32 = arith.constant 0 : i32
    %c0_i32_0 = arith.constant 0 : i32
    %c0_i32_1 = arith.constant 0 : i32
    return %c0_i32, %c0_i32_0 : i32, i32
  }
  func.func @transform_6(%arg0: i32, %arg1: i32) -> (i32, i32) {
    %c0_i32 = arith.constant 0 : i32
    %c0_i32_0 = arith.constant 0 : i32
    %c0_i32_1 = arith.constant 0 : i32
    return %c0_i32, %c0_i32_0 : i32, i32
  }
  func.func @transform_7(%arg0: i32, %arg1: i32) -> (i32, i32, i32, i32) {
    %c0_i32 = arith.constant 0 : i32
    %c0_i32_0 = arith.constant 0 : i32
    %c0_i32_1 = arith.constant 0 : i32
    return %arg0, %arg1, %c0_i32, %c0_i32_0 : i32, i32, i32, i32
  }
  func.func @transform_8(%arg0: i32, %arg1: i32) -> (i32, i32, i32, i32) {
    %c0_i32 = arith.constant 0 : i32
    %c0_i32_0 = arith.constant 0 : i32
    %c0_i32_1 = arith.constant 0 : i32
    return %arg0, %arg1, %c0_i32, %c0_i32_0 : i32, i32, i32, i32
  }
}

module attributes {stable_mosaic.version = 11 : i64} {
  func.func @stage2_kernel(%arg0: i32, %arg1: i32, %arg2: memref<1x1x128x128xf32, #tpu.memory_space<vmem>>, %arg3: memref<1x1x128xf32, #tpu.memory_space<vmem>>, %arg4: memref<1x1x128x128xf32, #tpu.memory_space<vmem>>, %arg5: memref<1x128xf32, #tpu.memory_space<vmem>>, %arg6: memref<1x128xf32, #tpu.memory_space<vmem>>, %arg7: memref<128x128xbf16, #tpu.memory_space<vmem>>, %arg8: memref<1x128xf32, #tpu.memory_space<vmem>>, %arg9: memref<1x1x128x128xf32, #tpu.memory_space<vmem>>) attributes {dimension_semantics = [#tpu.dimension_semantics<parallel>, #tpu.dimension_semantics<parallel>], iteration_bounds = array<i64: 2, 2>, scalar_prefetch = 0 : i64, scratch_operands = 0 : i64, tpu.core_type = #tpu.core_type<tc>, window_params = [{transform_indices = @transform_0, window_bounds = array<i64: 1, 1, 128, 128>}, {transform_indices = @transform_1, window_bounds = array<i64: 1, 1, 128>}, {transform_indices = @transform_2, window_bounds = array<i64: 1, 1, 128, 128>}, {pipeline_mode = #tpu.pipeline_mode<synchronous>, transform_indices = @transform_3, window_bounds = array<i64: 1, 128>}, {pipeline_mode = #tpu.pipeline_mode<synchronous>, transform_indices = @transform_4, window_bounds = array<i64: 1, 128>}, {pipeline_mode = #tpu.pipeline_mode<synchronous>, transform_indices = @transform_5, window_bounds = array<i64: 128, 128>}, {pipeline_mode = #tpu.pipeline_mode<synchronous>, transform_indices = @transform_6, window_bounds = array<i64: 1, 128>}, {transform_indices = @transform_7, window_bounds = array<i64: 1, 1, 128, 128>}]} {
    %c0 = arith.constant 0 : index
    %c0_0 = arith.constant 0 : index
    %c0_1 = arith.constant 0 : index
    %c0_2 = arith.constant 0 : index
    %0 = vector.load %arg2[%c0, %c0_0, %c0_1, %c0_2] : memref<1x1x128x128xf32, #tpu.memory_space<vmem>>, vector<1x1x128x128xf32>
    %1 = vector.shape_cast %0 : vector<1x1x128x128xf32> to vector<128x128xf32>
    %c0_3 = arith.constant 0 : index
    %c0_4 = arith.constant 0 : index
    %c0_5 = arith.constant 0 : index
    %2 = vector.load %arg3[%c0_3, %c0_4, %c0_5] : memref<1x1x128xf32, #tpu.memory_space<vmem>>, vector<1x1x128xf32>
    %3 = vector.shape_cast %2 : vector<1x1x128xf32> to vector<1x128xf32>
    %c0_6 = arith.constant 0 : index
    %c0_7 = arith.constant 0 : index
    %4 = vector.load %arg5[%c0_6, %c0_7] : memref<1x128xf32, #tpu.memory_space<vmem>>, vector<1x128xf32>
    %5 = vector.broadcast %3 : vector<1x128xf32> to vector<128x128xf32>
    %6 = arith.mulf %1, %5 : vector<128x128xf32>
    %7 = vector.broadcast %4 : vector<1x128xf32> to vector<128x128xf32>
    %8 = arith.mulf %7, %6 : vector<128x128xf32>
    %c0_8 = arith.constant 0 : index
    %c0_9 = arith.constant 0 : index
    %9 = vector.load %arg6[%c0_8, %c0_9] : memref<1x128xf32, #tpu.memory_space<vmem>>, vector<1x128xf32>
    %10 = vector.broadcast %9 : vector<1x128xf32> to vector<128x128xf32>
    %11 = arith.addf %8, %10 : vector<128x128xf32>
    %12 = arith.addf %11, %1 : vector<128x128xf32>
    %13 = arith.truncf %12 : vector<128x128xf32> to vector<128x128xbf16>
    %c0_10 = arith.constant 0 : index
    %c0_11 = arith.constant 0 : index
    %14 = vector.load %arg7[%c0_10, %c0_11] : memref<128x128xbf16, #tpu.memory_space<vmem>>, vector<128x128xbf16>
    %cst = arith.constant dense<0.000000e+00> : vector<128x128xf32>
    %15 = tpu.matmul %13, %14, %cst {dimension_numbers = #tpu.dot_dimension_numbers<[1], [0], [0], [1], [0, 0, 1, 1], [], []>} : vector<128x128xbf16>, vector<128x128xbf16>, vector<128x128xf32> -> vector<128x128xf32>
    %c0_12 = arith.constant 0 : index
    %c0_13 = arith.constant 0 : index
    %16 = vector.load %arg8[%c0_12, %c0_13] : memref<1x128xf32, #tpu.memory_space<vmem>>, vector<1x128xf32>
    %17 = vector.broadcast %16 : vector<1x128xf32> to vector<128x128xf32>
    %18 = arith.addf %15, %17 : vector<128x128xf32>
    %c0_14 = arith.constant 0 : index
    %c0_15 = arith.constant 0 : index
    %c0_16 = arith.constant 0 : index
    %c0_17 = arith.constant 0 : index
    %19 = vector.load %arg4[%c0_14, %c0_15, %c0_16, %c0_17] : memref<1x1x128x128xf32, #tpu.memory_space<vmem>>, vector<1x1x128x128xf32>
    %20 = vector.shape_cast %19 : vector<1x1x128x128xf32> to vector<128x128xf32>
    %21 = arith.addf %20, %18 : vector<128x128xf32>
    %c0_18 = arith.constant 0 : index
    %c0_19 = arith.constant 0 : index
    %c0_20 = arith.constant 0 : index
    %c0_21 = arith.constant 0 : index
    %22 = vector.load %arg9[%c0_18, %c0_19, %c0_20, %c0_21] : memref<1x1x128x128xf32, #tpu.memory_space<vmem>>, vector<1x1x128x128xf32>
    %23 = vector.shape_cast %22 : vector<1x1x128x128xf32> to vector<128x128xf32>
    %24 = vector.shape_cast %21 : vector<128x128xf32> to vector<1x1x128x128xf32>
    tpu.vector_store %arg9[%c0_18, %c0_19, %c0_20, %c0_21], %24 {strides = array<i32>} : memref<1x1x128x128xf32, #tpu.memory_space<vmem>>, vector<1x1x128x128xf32>,
    return
  }
  func.func @transform_0(%arg0: i32, %arg1: i32) -> (i32, i32, i32, i32) {
    %c0_i32 = arith.constant 0 : i32
    %c0_i32_0 = arith.constant 0 : i32
    %c0_i32_1 = arith.constant 0 : i32
    return %arg0, %arg1, %c0_i32, %c0_i32_0 : i32, i32, i32, i32
  }
  func.func @transform_1(%arg0: i32, %arg1: i32) -> (i32, i32, i32) {
    %c0_i32 = arith.constant 0 : i32
    %c0_i32_0 = arith.constant 0 : i32
    %c0_i32_1 = arith.constant 0 : i32
    return %arg0, %c0_i32, %c0_i32_0 : i32, i32, i32
  }
  func.func @transform_2(%arg0: i32, %arg1: i32) -> (i32, i32, i32, i32) {
    %c0_i32 = arith.constant 0 : i32
    %c0_i32_0 = arith.constant 0 : i32
    %c0_i32_1 = arith.constant 0 : i32
    return %arg0, %arg1, %c0_i32, %c0_i32_0 : i32, i32, i32, i32
  }
  func.func @transform_3(%arg0: i32, %arg1: i32) -> (i32, i32) {
    %c0_i32 = arith.constant 0 : i32
    %c0_i32_0 = arith.constant 0 : i32
    %c0_i32_1 = arith.constant 0 : i32
    return %c0_i32, %c0_i32_0 : i32, i32
  }
  func.func @transform_4(%arg0: i32, %arg1: i32) -> (i32, i32) {
    %c0_i32 = arith.constant 0 : i32
    %c0_i32_0 = arith.constant 0 : i32
    %c0_i32_1 = arith.constant 0 : i32
    return %c0_i32, %c0_i32_0 : i32, i32
  }
  func.func @transform_5(%arg0: i32, %arg1: i32) -> (i32, i32) {
    %c0_i32 = arith.constant 0 : i32
    %c0_i32_0 = arith.constant 0 : i32
    %c0_i32_1 = arith.constant 0 : i32
    return %c0_i32, %c0_i32_0 : i32, i32
  }
  func.func @transform_6(%arg0: i32, %arg1: i32) -> (i32, i32) {
    %c0_i32 = arith.constant 0 : i32
    %c0_i32_0 = arith.constant 0 : i32
    %c0_i32_1 = arith.constant 0 : i32
    return %c0_i32, %c0_i32_0 : i32, i32
  }
  func.func @transform_7(%arg0: i32, %arg1: i32) -> (i32, i32, i32, i32) {
    %c0_i32 = arith.constant 0 : i32
    %c0_i32_0 = arith.constant 0 : i32
    %c0_i32_1 = arith.constant 0 : i32
    return %arg0, %arg1, %c0_i32, %c0_i32_0 : i32, i32, i32, i32
  }
}

</mosaic_0001>

<llo_original>
// kernel: convnext_block.3
$region0: #{convnext_block.3}
  #allocation0 [shape = 'u32[]', space=smem, size = 0x4, offset = 0x4, fixed_abs, tag = 'smem constant byte address 0x4 - core index']
  #allocation1 [shape = 'u32[144,128]{1,0:T(1,128)}', space=vmem, size = 0x12000, scoped, tag = 'internal scratch']
  %s0 = inlined_call_operand.vmem [shape: f32[2,2,128,128], index: 0, kind: input, shape index: {}]
  %s1 = inlined_call_operand.vmem [shape: f32[2,1,128], index: 1, kind: input, shape index: {}]
  %s2 = inlined_call_operand.vmem [shape: f32[2,2,128,128], index: 2, kind: input, shape index: {}]
  %s3 = inlined_call_operand.vmem [shape: f32[1,128], index: 3, kind: input, shape index: {}]
  %s4 = inlined_call_operand.vmem [shape: f32[1,128], index: 4, kind: input, shape index: {}]
  %s5 = inlined_call_operand.vmem [shape: bf16[128,128], index: 5, kind: input, shape index: {}]
  %s6 = inlined_call_operand.vmem [shape: f32[1,128], index: 6, kind: input, shape index: {}]
  %s7 = inlined_call_operand.vmem [shape: f32[2,2,128,128], index: 7, kind: output, shape index: {}]
  %s8 = sld [smem:[#allocation0]]
  $region61: #{convnext_block.3} parent=0
    _
  %s10 = ssub.s32 1, %s8
  %s11 = scalar_select 0, %s10, %s8
  loop: start=0, step=1, limit=6
  $region2: #{convnext_block.3} parent=0 // loop_pre_header
    _
  $region3: #{convnext_block.3} parent=0 // loop_header
    %s13 = sphi 0, %s17
    %p14 = scmp.ge.s32.totalorder %s13, 6
    %s20 = sphi 0, %s32
    %s21 = sphi 0, %s28
    %s22 = sphi 0, %s20
    %s23 = sphi 0, %s21
    %s24 = sphi 0, %s22
    %s25 = sphi 0, %s23
    %s37 = sphi 0, %s39
    %s40 = sphi 0, %s37
    %s41 = sphi 0, %s40
    %s57 = sphi 0, %s41
    %s63 = sphi 0, %s65
    %s66 = sphi 0, %s63
    %s67 = sphi 0, %s66
    %s83 = sphi 0, %s67
    %s91 = sphi 0, %s93
    %s94 = sphi 0, %s91
    %s95 = sphi 0, %s94
    %s111 = sphi 0, %s95
    %s115 = sphi 0, %s115
    %s117 = sphi 0, %s115
    %s118 = sphi 0, %s117
    %s132 = sphi 0, %s118
    %s136 = sphi 0, %s136
    %s138 = sphi 0, %s136
    %s139 = sphi 0, %s138
    %s153 = sphi 0, %s139
    %s157 = sphi 0, %s157
    %s159 = sphi 0, %s157
    %s160 = sphi 0, %s159
    %s174 = sphi 0, %s160
    %s178 = sphi 0, %s178
    %s180 = sphi 0, %s178
    %s181 = sphi 0, %s180
    %s195 = sphi 0, %s181
    %s203 = sphi 0, %s205
    %s206 = sphi 0, %s203
    %s207 = sphi 0, %s206
    %s223 = sphi 0, %s207
  $region4: #{convnext_block.3} parent=0 // loop_header_branch
    %16 = sbr.rel (%p14) target = $region8
  $region5: #{convnext_block.3} parent=0 // loop_body
    %s18 = ssub.s32 %s13, 1
    %s19 = ssub.s32 %s13, 2
    %s26 = sadd.s32 1, %s21
    %p27 = scmp.ge.s32.totalorder %s26, 2
    %s28 = scalar_select %p27, 0, %s26
    %s29 = sadd.s32 1, %s20
    %s30 = scalar_select %p27, %s29, %s20
    %p31 = scmp.ge.s32.totalorder %s30, 2
    %s32 = scalar_select %p31, 0, %s30
    %s33 = ssub.s32 %s20, %s32
    %s34 = ssub.s32 %s21, %s28
    %s35 = sor.u32 %s33, %s34
    %p36 = scmp.eq.s32.totalorder %s35, 0
    %s38 = sadd.s32 %s37, 1
    %s39 = scalar_select %p36, %s37, %s38
    %p42 = pneg %p36
    %p43 = scmp.eq.s32.totalorder %s13, 3
    %p44 = por %p42, %p43
    %p45 = scmp.ne.s32.totalorder %s37, %s40
    %p46 = scmp.eq.s32.totalorder %s13, 0
    %p47 = por %p45, %p46
    %p48 = scmp.ne.s32.totalorder %s37, %s40
    %p49 = scmp.eq.s32.totalorder %s18, 3
    %p50 = por %p48, %p49
    %p51 = scmp.ne.s32.totalorder %s40, %s41
    %p52 = scmp.eq.s32.totalorder %s18, 0
    %p53 = por %p51, %p52
    %p54 = scmp.ne.s32.totalorder %s40, %s41
    %p55 = scmp.eq.s32.totalorder %s19, 3
    %p56 = por %p54, %p55
    %p58 = scmp.ne.s32.totalorder %s41, %s57
    %p59 = scmp.eq.s32.totalorder %s19, 0
    %p60 = por %p58, %p59
    %s61 = ssub.s32 %s20, %s32
    %p62 = scmp.eq.s32.totalorder %s61, 0
    %s64 = sadd.s32 %s63, 1
    %s65 = scalar_select %p62, %s63, %s64
    %p68 = pneg %p62
    %p69 = scmp.eq.s32.totalorder %s13, 3
    %p70 = por %p68, %p69
    %p71 = scmp.ne.s32.totalorder %s63, %s66
    %p72 = scmp.eq.s32.totalorder %s13, 0
    %p73 = por %p71, %p72
    %p74 = scmp.ne.s32.totalorder %s63, %s66
    %p75 = scmp.eq.s32.totalorder %s18, 3
    %p76 = por %p74, %p75
    %p77 = scmp.ne.s32.totalorder %s66, %s67
    %p78 = scmp.eq.s32.totalorder %s18, 0
    %p79 = por %p77, %p78
    %p80 = scmp.ne.s32.totalorder %s66, %s67
    %p81 = scmp.eq.s32.totalorder %s19, 3
    %p82 = por %p80, %p81
    %p84 = scmp.ne.s32.totalorder %s67, %s83
    %p85 = scmp.eq.s32.totalorder %s19, 0
    %p86 = por %p84, %p85
    %s87 = ssub.s32 %s20, %s32
    %s88 = ssub.s32 %s21, %s28
    %s89 = sor.u32 %s87, %s88
    %p90 = scmp.eq.s32.totalorder %s89, 0
    %s92 = sadd.s32 %s91, 1
    %s93 = scalar_select %p90, %s91, %s92
    %p96 = pneg %p90
    %p97 = scmp.eq.s32.totalorder %s13, 3
    %p98 = por %p96, %p97
    %p99 = scmp.ne.s32.totalorder %s91, %s94
    %p100 = scmp.eq.s32.totalorder %s13, 0
    %p101 = por %p99, %p100
    %p102 = scmp.ne.s32.totalorder %s91, %s94
    %p103 = scmp.eq.s32.totalorder %s18, 3
    %p104 = por %p102, %p103
    %p105 = scmp.ne.s32.totalorder %s94, %s95
    %p106 = scmp.eq.s32.totalorder %s18, 0
    %p107 = por %p105, %p106
    %p108 = scmp.ne.s32.totalorder %s94, %s95
    %p109 = scmp.eq.s32.totalorder %s19, 3
    %p110 = por %p108, %p109
    %p112 = scmp.ne.s32.totalorder %s95, %s111
    %p113 = scmp.eq.s32.totalorder %s19, 0
    %p114 = por %p112, %p113
    %s116 = sadd.s32 %s115, 1
    %p119 = scmp.eq.s32.totalorder %s13, 3
    %p120 = scmp.ne.s32.totalorder %s115, %s117
    %p121 = scmp.eq.s32.totalorder %s13, 0
    %p122 = por %p120, %p121
    %p123 = scmp.ne.s32.totalorder %s115, %s117
    %p124 = scmp.eq.s32.totalorder %s18, 3
    %p125 = por %p123, %p124
    %p126 = scmp.ne.s32.totalorder %s117, %s118
    %p127 = scmp.eq.s32.totalorder %s18, 0
    %p128 = por %p126, %p127
    %p129 = scmp.ne.s32.totalorder %s117, %s118
    %p130 = scmp.eq.s32.totalorder %s19, 3
    %p131 = por %p129, %p130
    %p133 = scmp.ne.s32.totalorder %s118, %s132
    %p134 = scmp.eq.s32.totalorder %s19, 0
    %p135 = por %p133, %p134
    %s137 = sadd.s32 %s136, 1
    %p140 = scmp.eq.s32.totalorder %s13, 3
    %p141 = scmp.ne.s32.totalorder %s136, %s138
    %p142 = scmp.eq.s32.totalorder %s13, 0
    %p143 = por %p141, %p142
    %p144 = scmp.ne.s32.totalorder %s136, %s138
    %p145 = scmp.eq.s32.totalorder %s18, 3
    %p146 = por %p144, %p145
    %p147 = scmp.ne.s32.totalorder %s138, %s139
    %p148 = scmp.eq.s32.totalorder %s18, 0
    %p149 = por %p147, %p148
    %p150 = scmp.ne.s32.totalorder %s138, %s139
    %p151 = scmp.eq.s32.totalorder %s19, 3
    %p152 = por %p150, %p151
    %p154 = scmp.ne.s32.totalorder %s139, %s153
    %p155 = scmp.eq.s32.totalorder %s19, 0
    %p156 = por %p154, %p155
    %s158 = sadd.s32 %s157, 1
    %p161 = scmp.eq.s32.totalorder %s13, 3
    %p162 = scmp.ne.s32.totalorder %s157, %s159
    %p163 = scmp.eq.s32.totalorder %s13, 0
    %p164 = por %p162, %p163
    %p165 = scmp.ne.s32.totalorder %s157, %s159
    %p166 = scmp.eq.s32.totalorder %s18, 3
    %p167 = por %p165, %p166
    %p168 = scmp.ne.s32.totalorder %s159, %s160
    %p169 = scmp.eq.s32.totalorder %s18, 0
    %p170 = por %p168, %p169
    %p171 = scmp.ne.s32.totalorder %s159, %s160
    %p172 = scmp.eq.s32.totalorder %s19, 3
    %p173 = por %p171, %p172
    %p175 = scmp.ne.s32.totalorder %s160, %s174
    %p176 = scmp.eq.s32.totalorder %s19, 0
    %p177 = por %p175, %p176
    %s179 = sadd.s32 %s178, 1
    %p182 = scmp.eq.s32.totalorder %s13, 3
    %p183 = scmp.ne.s32.totalorder %s178, %s180
    %p184 = scmp.eq.s32.totalorder %s13, 0
    %p185 = por %p183, %p184
    %p186 = scmp.ne.s32.totalorder %s178, %s180
    %p187 = scmp.eq.s32.totalorder %s18, 3
    %p188 = por %p186, %p187
    %p189 = scmp.ne.s32.totalorder %s180, %s181
    %p190 = scmp.eq.s32.totalorder %s18, 0
    %p191 = por %p189, %p190
    %p192 = scmp.ne.s32.totalorder %s180, %s181
    %p193 = scmp.eq.s32.totalorder %s19, 3
    %p194 = por %p192, %p193
    %p196 = scmp.ne.s32.totalorder %s181, %s195
    %p197 = scmp.eq.s32.totalorder %s19, 0
    %p198 = por %p196, %p197
    %s199 = ssub.s32 %s20, %s32
    %s200 = ssub.s32 %s21, %s28
    %s201 = sor.u32 %s199, %s200
    %p202 = scmp.eq.s32.totalorder %s201, 0
    %s204 = sadd.s32 %s203, 1
    %s205 = scalar_select %p202, %s203, %s204
    %p208 = pneg %p202
    %p209 = scmp.eq.s32.totalorder %s13, 3
    %p210 = por %p208, %p209
    %p211 = scmp.ne.s32.totalorder %s203, %s206
    %p212 = scmp.eq.s32.totalorder %s13, 0
    %p213 = por %p211, %p212
    %p214 = scmp.ne.s32.totalorder %s203, %s206
    %p215 = scmp.eq.s32.totalorder %s18, 3
    %p216 = por %p214, %p215
    %p217 = scmp.ne.s32.totalorder %s206, %s207
    %p218 = scmp.eq.s32.totalorder %s18, 0
    %p219 = por %p217, %p218
    %p220 = scmp.ne.s32.totalorder %s206, %s207
    %p221 = scmp.eq.s32.totalorder %s19, 3
    %p222 = por %p220, %p221
    %p224 = scmp.ne.s32.totalorder %s207, %s223
    %p225 = scmp.eq.s32.totalorder %s19, 0
    %p226 = por %p224, %p225
    %p227 = scmp.le.s32.totalorder 1, %s13
    %p228 = scmp.lt.s32.totalorder %s13, 5
    %p229 = pnand %p227, %p228
    %p230 = pneg %p229
    // Predicated region
    $region9: #{convnext_block.3} parent=5 // pred_check
      _
    $region10: #{convnext_block.3} parent=5 // pred_check_branch
      %232 = sbr.rel (%p229) target = $region12
    $region11: #{convnext_block.3} parent=5 // pred_region
      %s233 = ssub.s32 %s13, 1
      // Predicated region
      $region13: #{convnext_block.3} parent=11 // pred_check
        %p234 = pneg %p128
      $region14: #{convnext_block.3} parent=11 // pred_check_branch
        %236 = sbr.rel (%p234) target = $region16
      $region15: #{convnext_block.3} parent=11 // pred_region
        _
      $region16: #{convnext_block.3} parent=11 // pred_fallthru
        _
      // Predicated region
      $region17: #{convnext_block.3} parent=11 // pred_check
        %p237 = pneg %p149
      $region18: #{convnext_block.3} parent=11 // pred_check_branch
        %239 = sbr.rel (%p237) target = $region20
      $region19: #{convnext_block.3} parent=11 // pred_region
        _
      $region20: #{convnext_block.3} parent=11 // pred_fallthru
        _
      // Predicated region
      $region21: #{convnext_block.3} parent=11 // pred_check
        %p240 = pneg %p170
      $region22: #{convnext_block.3} parent=11 // pred_check_branch
        %242 = sbr.rel (%p240) target = $region24
      $region23: #{convnext_block.3} parent=11 // pred_region
        _
      $region24: #{convnext_block.3} parent=11 // pred_fallthru
        _
      // Predicated region
      $region25: #{convnext_block.3} parent=11 // pred_check
        %p243 = pneg %p191
      $region26: #{convnext_block.3} parent=11 // pred_check_branch
        %245 = sbr.rel (%p243) target = $region28
      $region27: #{convnext_block.3} parent=11 // pred_region
        _
      $region28: #{convnext_block.3} parent=11 // pred_fallthru
        _
    $region12: #{convnext_block.3} parent=5 // pred_fallthru
      _
    %p246 = scmp.lt.s32.totalorder %s13, 4
    // Predicated region
    $region29: #{convnext_block.3} parent=5 // pred_check
      %p247 = pneg %p246
    $region30: #{convnext_block.3} parent=5 // pred_check_branch
      %249 = sbr.rel (%p247) target = $region32
    $region31: #{convnext_block.3} parent=5 // pred_region
      // Predicated region
      $region33: #{convnext_block.3} parent=31 // pred_check
        %p250 = pneg %p47
      $region34: #{convnext_block.3} parent=31 // pred_check_branch
        %252 = sbr.rel (%p250) target = $region36
      $region35: #{convnext_block.3} parent=31 // pred_region
        %p253 = scmp.lt.s32.totalorder %s20, 1
        %s254 = scalar_select %p253, %s20, 1
        %p255 = scmp.lt.s32.totalorder %s21, 1
        %s256 = scalar_select %p255, %s21, 1
        %s257 = smul.addr %s256, 16
        %s258 = smul.addr %s254, 32
        %s259 = sadd.s32 %s257, %s258
        %s260 = smul.addr %s259, 8
        %s261 = scalar_lea.vmem %s0, %s260
      $region36: #{convnext_block.3} parent=31 // pred_fallthru
        _
      // Predicated region
      $region37: #{convnext_block.3} parent=31 // pred_check
        %p262 = pneg %p73
      $region38: #{convnext_block.3} parent=31 // pred_check_branch
        %264 = sbr.rel (%p262) target = $region40
      $region39: #{convnext_block.3} parent=31 // pred_region
        %p265 = scmp.lt.s32.totalorder %s20, 1
        %s266 = scalar_select %p265, %s20, 1
        %s267 = scalar_lea.vmem %s1, %s266
      $region40: #{convnext_block.3} parent=31 // pred_fallthru
        _
      // Predicated region
      $region41: #{convnext_block.3} parent=31 // pred_check
        %p268 = pneg %p101
      $region42: #{convnext_block.3} parent=31 // pred_check_branch
        %270 = sbr.rel (%p268) target = $region44
      $region43: #{convnext_block.3} parent=31 // pred_region
        %p271 = scmp.lt.s32.totalorder %s20, 1
        %s272 = scalar_select %p271, %s20, 1
        %p273 = scmp.lt.s32.totalorder %s21, 1
        %s274 = scalar_select %p273, %s21, 1
        %s275 = smul.addr %s274, 16
        %s276 = smul.addr %s272, 32
        %s277 = sadd.s32 %s275, %s276
        %s278 = smul.addr %s277, 8
        %s279 = scalar_lea.vmem %s2, %s278
      $region44: #{convnext_block.3} parent=31 // pred_fallthru
        _
    $region32: #{convnext_block.3} parent=5 // pred_fallthru
      _
    %p280 = scmp.le.s32.totalorder 1, %s13
    %p281 = scmp.lt.s32.totalorder %s13, 5
    %p282 = pnand %p280, %p281
    %p283 = pneg %p282
    // Predicated region
    $region45: #{convnext_block.3} parent=5 // pred_check
      _
    $region46: #{convnext_block.3} parent=5 // pred_check_branch
      %285 = sbr.rel (%p282) target = $region48
    $region47: #{convnext_block.3} parent=5 // pred_region
      %s286 = ssub.s32 %s13, 1
      %p287 = scmp.lt.s32.totalorder %s22, 1
      %s288 = scalar_select %p287, %s22, 1
      %p289 = scmp.lt.s32.totalorder %s23, 1
      %s290 = scalar_select %p289, %s23, 1
      %s291 = smul.addr %s290, 16
      %s292 = smul.addr %s288, 32
      %s293 = sadd.s32 %s291, %s292
      %s294 = smul.addr %s293, 8
      %s295 = scalar_lea.vmem %s0, %s294
      %p296 = pneg %p53
      %p297 = pneg %p50
      %p298 = scmp.lt.s32.totalorder %s22, 1
      %s299 = scalar_select %p298, %s22, 1
      %s300 = scalar_lea.vmem %s1, %s299
      %p301 = pneg %p79
      %p302 = pneg %p76
      %p303 = scmp.lt.s32.totalorder %s22, 1
      %s304 = scalar_select %p303, %s22, 1
      %p305 = scmp.lt.s32.totalorder %s23, 1
      %s306 = scalar_select %p305, %s23, 1
      %s307 = smul.addr %s306, 16
      %s308 = smul.addr %s304, 32
      %s309 = sadd.s32 %s307, %s308
      %s310 = smul.addr %s309, 8
      %s311 = scalar_lea.vmem %s2, %s310
      %p312 = pneg %p107
      %p313 = pneg %p104
      %p314 = pneg %p128
      %p315 = pneg %p125
      %p316 = pneg %p149
      %p317 = pneg %p146
      %p318 = pneg %p170
      %p319 = pneg %p167
      %p320 = pneg %p191
      %p321 = pneg %p188
      %p322 = pneg %p219
      %p323 = pneg %p216
      %p324 = scmp.lt.s32.totalorder %s22, 1
      %s325 = scalar_select %p324, %s22, 1
      %p326 = scmp.lt.s32.totalorder %s23, 1
      %s327 = scalar_select %p326, %s23, 1
      %s328 = smul.addr %s327, 16
      %s329 = smul.addr %s325, 32
      %s330 = sadd.s32 %s328, %s329
      %s331 = smul.addr %s330, 8
      %s332 = scalar_lea.vmem %s7, %s331
      %p333 = scmp.lt.s32.totalorder %s22, 1
      %s334 = scalar_select %p333, %s22, 1
      %p335 = scmp.lt.s32.totalorder %s23, 1
      %s336 = scalar_select %p335, %s23, 1
      %s337 = smul.addr %s336, 16
      %s338 = smul.addr %s334, 32
      %s339 = sadd.s32 %s337, %s338
      %s340 = smul.addr %s339, 8
      %s341 = scalar_lea.vmem %s0, %s340
      %p342 = scmp.lt.s32.totalorder %s22, 1
      %s343 = scalar_select %p342, %s22, 1
      %s344 = scalar_lea.vmem %s1, %s343
      %p345 = scmp.lt.s32.totalorder %s22, 1
      %s346 = scalar_select %p345, %s22, 1
      %p347 = scmp.lt.s32.totalorder %s23, 1
      %s348 = scalar_select %p347, %s23, 1
      %s349 = smul.addr %s348, 16
      %s350 = smul.addr %s346, 32
      %s351 = sadd.s32 %s349, %s350
      %s352 = smul.addr %s351, 8
      %s353 = scalar_lea.vmem %s2, %s352
      %p354 = scmp.lt.s32.totalorder %s22, 1
      %s355 = scalar_select %p354, %s22, 1
      %p356 = scmp.lt.s32.totalorder %s23, 1
      %s357 = scalar_select %p356, %s23, 1
      %s358 = smul.addr %s357, 16
      %s359 = smul.addr %s355, 32
      %s360 = sadd.s32 %s358, %s359
      %s361 = smul.addr %s360, 8
      %s362 = scalar_lea.vmem %s7, %s361
      %v364 = vld [vmem:[%s341] sm:$0xff]
      %v365 = vld [vmem:[%s341 + $0x8] sm:$0xff]
      %v366 = vld [vmem:[%s341 + $0x10] sm:$0xff]
      %v367 = vld [vmem:[%s341 + $0x18] sm:$0xff]
      %v368 = vld [vmem:[%s341 + $0x20] sm:$0xff]
      %v369 = vld [vmem:[%s341 + $0x28] sm:$0xff]
      %v370 = vld [vmem:[%s341 + $0x30] sm:$0xff]
      %v371 = vld [vmem:[%s341 + $0x38] sm:$0xff]
      %v372 = vld [vmem:[%s341 + $0x40] sm:$0xff]
      %v373 = vld [vmem:[%s341 + $0x48] sm:$0xff]
      %v374 = vld [vmem:[%s341 + $0x50] sm:$0xff]
      %v375 = vld [vmem:[%s341 + $0x58] sm:$0xff]
      %v376 = vld [vmem:[%s341 + $0x60] sm:$0xff]
      %v377 = vld [vmem:[%s341 + $0x68] sm:$0xff]
      %v378 = vld [vmem:[%s341 + $0x70] sm:$0xff]
      %v379 = vld [vmem:[%s341 + $0x78] sm:$0xff]
      %v380 = vld [vmem:[%s344] sm:$0x1]
      %v381 = vld [vmem:[%s3] sm:$0x1]
      %v383 = vlaneseq
      %v384 = vshrl.u32 %v383, 7
      %v385 = vsub.s32 0, %v384
      %v386 = vrot.slane %v380, %v385
      %v388 = vmul.f32 %v364, %v386
      %v389 = vmul.f32 %v365, %v386
      %v390 = vmul.f32 %v366, %v386
      %v391 = vmul.f32 %v367, %v386
      %v392 = vmul.f32 %v368, %v386
      %v393 = vmul.f32 %v369, %v386
      %v394 = vmul.f32 %v370, %v386
      %v395 = vmul.f32 %v371, %v386
      %v396 = vmul.f32 %v372, %v386
      %v397 = vmul.f32 %v373, %v386
      %v398 = vmul.f32 %v374, %v386
      %v399 = vmul.f32 %v375, %v386
      %v400 = vmul.f32 %v376, %v386
      %v401 = vmul.f32 %v377, %v386
      %v402 = vmul.f32 %v378, %v386
      %v403 = vmul.f32 %v379, %v386
      %v405 = vlaneseq
      %v406 = vshrl.u32 %v405, 7
      %v407 = vsub.s32 0, %v406
      %v408 = vrot.slane %v381, %v407
      %v410 = vmul.f32 %v408, %v388
      %v411 = vmul.f32 %v408, %v389
      %v412 = vmul.f32 %v408, %v390
      %v413 = vmul.f32 %v408, %v391
      %v414 = vmul.f32 %v408, %v392
      %v415 = vmul.f32 %v408, %v393
      %v416 = vmul.f32 %v408, %v394
      %v417 = vmul.f32 %v408, %v395
      %v418 = vmul.f32 %v408, %v396
      %v419 = vmul.f32 %v408, %v397
      %v420 = vmul.f32 %v408, %v398
      %v421 = vmul.f32 %v408, %v399
      %v422 = vmul.f32 %v408, %v400
      %v423 = vmul.f32 %v408, %v401
      %v424 = vmul.f32 %v408, %v402
      %v425 = vmul.f32 %v408, %v403
      %v426 = vld [vmem:[%s4] sm:$0x1]
      %v428 = vlaneseq
      %v429 = vshrl.u32 %v428, 7
      %v430 = vsub.s32 0, %v429
      %v431 = vrot.slane %v426, %v430
      %v433 = vadd.f32 %v410, %v431
      %v434 = vadd.f32 %v411, %v431
      %v435 = vadd.f32 %v412, %v431
      %v436 = vadd.f32 %v413, %v431
      %v437 = vadd.f32 %v414, %v431
      %v438 = vadd.f32 %v415, %v431
      %v439 = vadd.f32 %v416, %v431
      %v440 = vadd.f32 %v417, %v431
      %v441 = vadd.f32 %v418, %v431
      %v442 = vadd.f32 %v419, %v431
      %v443 = vadd.f32 %v420, %v431
      %v444 = vadd.f32 %v421, %v431
      %v445 = vadd.f32 %v422, %v431
      %v446 = vadd.f32 %v423, %v431
      %v447 = vadd.f32 %v424, %v431
      %v448 = vadd.f32 %v425, %v431
      %v449 = vadd.f32 %v433, %v364
      %v450 = vadd.f32 %v434, %v365
      %v451 = vadd.f32 %v435, %v366
      %v452 = vadd.f32 %v436, %v367
      %v453 = vadd.f32 %v437, %v368
      %v454 = vadd.f32 %v438, %v369
      %v455 = vadd.f32 %v439, %v370
      %v456 = vadd.f32 %v440, %v371
      %v457 = vadd.f32 %v441, %v372
      %v458 = vadd.f32 %v442, %v373
      %v459 = vadd.f32 %v443, %v374
      %v460 = vadd.f32 %v444, %v375
      %v461 = vadd.f32 %v445, %v376
      %v462 = vadd.f32 %v446, %v377
      %v463 = vadd.f32 %v447, %v378
      %v464 = vadd.f32 %v448, %v379
      %v465 = vpack.c.bf16 %v450, %v449
      %v466 = vpack.c.bf16 %v452, %v451
      %v467 = vpack.c.bf16 %v454, %v453
      %v468 = vpack.c.bf16 %v456, %v455
      %v469 = vpack.c.bf16 %v458, %v457
      %v470 = vpack.c.bf16 %v460, %v459
      %v471 = vpack.c.bf16 %v462, %v461
      %v472 = vpack.c.bf16 %v464, %v463
      %v473 = vld [vmem:[%s5] sm:$0xf]
      %v474 = vld [vmem:[%s5 + $0x4] sm:$0xf]
      %v475 = vld [vmem:[%s5 + $0x8] sm:$0xf]
      %v476 = vld [vmem:[%s5 + $0xc] sm:$0xf]
      %v477 = vld [vmem:[%s5 + $0x10] sm:$0xf]
      %v478 = vld [vmem:[%s5 + $0x14] sm:$0xf]
      %v479 = vld [vmem:[%s5 + $0x18] sm:$0xf]
      %v480 = vld [vmem:[%s5 + $0x1c] sm:$0xf]
      %v481 = vld [vmem:[%s5 + $0x20] sm:$0xf]
      %v482 = vld [vmem:[%s5 + $0x24] sm:$0xf]
      %v483 = vld [vmem:[%s5 + $0x28] sm:$0xf]
      %v484 = vld [vmem:[%s5 + $0x2c] sm:$0xf]
      %v485 = vld [vmem:[%s5 + $0x30] sm:$0xf]
      %v486 = vld [vmem:[%s5 + $0x34] sm:$0xf]
      %v487 = vld [vmem:[%s5 + $0x38] sm:$0xf]
      %v488 = vld [vmem:[%s5 + $0x3c] sm:$0xf]
      %v489 = vld [vmem:[%s6] sm:$0x1]
      %v491 = vlaneseq
      %v492 = vshrl.u32 %v491, 7
      %v493 = vsub.s32 0, %v492
      %v494 = vrot.slane %v489, %v493
      %v512 = vunpack.c.l.b16 %v473
      %v513 = vunpack.c.l.b16 %v474
      %v514 = vunpack.c.l.b16 %v475
      %v515 = vunpack.c.l.b16 %v476
      %v516 = vunpack.c.l.b16 %v477
      %v517 = vunpack.c.l.b16 %v478
      %v518 = vunpack.c.l.b16 %v479
      %v519 = vunpack.c.l.b16 %v480
      %v520 = vunpack.c.l.b16 %v481
      %v521 = vunpack.c.l.b16 %v482
      %v522 = vunpack.c.l.b16 %v483
      %v523 = vunpack.c.l.b16 %v484
      %v524 = vunpack.c.l.b16 %v485
      %v525 = vunpack.c.l.b16 %v486
      %v526 = vunpack.c.l.b16 %v487
      %v527 = vunpack.c.l.b16 %v488
      %v528 = vpack.c.b16 %v513, %v512
      %v529 = vpack.c.b16 %v515, %v514
      %v530 = vpack.c.b16 %v517, %v516
      %v531 = vpack.c.b16 %v519, %v518
      %v532 = vpack.c.b16 %v521, %v520
      %v533 = vpack.c.b16 %v523, %v522
      %v534 = vpack.c.b16 %v525, %v524
      %v535 = vpack.c.b16 %v527, %v526
      %544 = vmatprep.subr.bf16.mxu0 0
      %545 = vmatpush1.bf16.msra.mxu0 %v528
      %546 = vmatprep.subr.bf16.mxu0 0
      %547 = vmatpush1.bf16.msra.mxu0 %v529
      %548 = vmatprep.subr.bf16.mxu0 0
      %549 = vmatpush1.bf16.msra.mxu0 %v530
      %550 = vmatprep.subr.bf16.mxu0 0
      %551 = vmatpush1.bf16.msra.mxu0 %v531
      %552 = vmatprep.subr.bf16.mxu0 0
      %553 = vmatpush1.bf16.msra.mxu0 %v532
      %554 = vmatprep.subr.bf16.mxu0 0
      %555 = vmatpush1.bf16.msra.mxu0 %v533
      %556 = vmatprep.subr.bf16.mxu0 0
      %557 = vmatpush1.bf16.msra.mxu0 %v534
      %558 = vmatprep.subr.bf16.mxu0 0
      %559 = vmatpush1.bf16.msra.mxu0 %v535
      %560 = vmatprep.subr.bf16.mxu0 0
      %561 = vmatpush1.bf16.msra.mxu0 0
      %562 = vmatprep.subr.bf16.mxu0 0
      %563 = vmatpush1.bf16.msra.mxu0 0
      %564 = vmatprep.subr.bf16.mxu0 0
      %565 = vmatpush1.bf16.msra.mxu0 0
      %566 = vmatprep.subr.bf16.mxu0 0
      %567 = vmatpush1.bf16.msra.mxu0 0
      %568 = vmatprep.subr.bf16.mxu0 0
      %569 = vmatpush1.bf16.msra.mxu0 0
      %570 = vmatprep.subr.bf16.mxu0 0
      %571 = vmatpush1.bf16.msra.mxu0 0
      %572 = vmatprep.subr.bf16.mxu0 0
      %573 = vmatpush1.bf16.msra.mxu0 0
      %574 = vmatprep.subr.bf16.mxu0 0
      %575 = vmatpush1.bf16.msra.mxu0 0
      %576 = vmatprep.mubr.bf16.mxu0 0
      %577 = vmatmul.mubr.bf16.gmra.mrb[0].mxu0 %v465
      %v578 = vpop.f32.mrb[0].mxu0
      %v579 = vadd.f32 %v494, %v578
      %v580 = vpop.f32.mrb[0].mxu0
      %v581 = vpop.f32.mrb[0].mxu0
      %v582 = vadd.f32 %v494, %v581
      %v583 = vpop.f32.mrb[0].mxu0
      %584 = vmatprep.mubr.bf16.mxu0 0
      %585 = vmatmul.mubr.bf16.gmra.mrb[0].mxu0 %v466
      %v586 = vpop.f32.mrb[0].mxu0
      %v587 = vadd.f32 %v494, %v586
      %v588 = vpop.f32.mrb[0].mxu0
      %v589 = vpop.f32.mrb[0].mxu0
      %v590 = vadd.f32 %v494, %v589
      %v591 = vpop.f32.mrb[0].mxu0
      %592 = vmatprep.mubr.bf16.mxu0 0
      %593 = vmatmul.mubr.bf16.gmra.mrb[0].mxu0 %v467
      %v594 = vpop.f32.mrb[0].mxu0
      %v595 = vadd.f32 %v494, %v594
      %v596 = vpop.f32.mrb[0].mxu0
      %v597 = vpop.f32.mrb[0].mxu0
      %v598 = vadd.f32 %v494, %v597
      %v599 = vpop.f32.mrb[0].mxu0
      %600 = vmatprep.mubr.bf16.mxu0 0
      %601 = vmatmul.mubr.bf16.gmra.mrb[0].mxu0 %v468
      %v602 = vpop.f32.mrb[0].mxu0
      %v603 = vadd.f32 %v494, %v602
      %v604 = vpop.f32.mrb[0].mxu0
      %v605 = vpop.f32.mrb[0].mxu0
      %v606 = vadd.f32 %v494, %v605
      %v607 = vpop.f32.mrb[0].mxu0
      %608 = vmatprep.mubr.bf16.mxu0 0
      %609 = vmatmul.mubr.bf16.gmra.mrb[0].mxu0 %v469
      %v610 = vpop.f32.mrb[0].mxu0
      %v611 = vadd.f32 %v494, %v610
      %v612 = vpop.f32.mrb[0].mxu0
      %v613 = vpop.f32.mrb[0].mxu0
      %v614 = vadd.f32 %v494, %v613
      %v615 = vpop.f32.mrb[0].mxu0
      %616 = vmatprep.mubr.bf16.mxu0 0
      %617 = vmatmul.mubr.bf16.gmra.mrb[0].mxu0 %v470
      %v618 = vpop.f32.mrb[0].mxu0
      %v619 = vadd.f32 %v494, %v618
      %v620 = vpop.f32.mrb[0].mxu0
      %v621 = vpop.f32.mrb[0].mxu0
      %v622 = vadd.f32 %v494, %v621
      %v623 = vpop.f32.mrb[0].mxu0
      %624 = vmatprep.mubr.bf16.mxu0 0
      %625 = vmatmul.mubr.bf16.gmra.mrb[0].mxu0 %v471
      %v626 = vpop.f32.mrb[0].mxu0
      %v627 = vadd.f32 %v494, %v626
      %v628 = vpop.f32.mrb[0].mxu0
      %v629 = vpop.f32.mrb[0].mxu0
      %v630 = vadd.f32 %v494, %v629
      %v631 = vpop.f32.mrb[0].mxu0
      %632 = vmatprep.mubr.bf16.mxu0 0
      %633 = vmatmul.mubr.bf16.gmra.mrb[0].mxu0 %v472
      %v634 = vpop.f32.mrb[0].mxu0
      %v635 = vadd.f32 %v494, %v634
      %v636 = vpop.f32.mrb[0].mxu0
      %v637 = vpop.f32.mrb[0].mxu0
      %v638 = vadd.f32 %v494, %v637
      %v639 = vpop.f32.mrb[0].mxu0
      %640 = vdwg.mxu0
      %v641 = vld [vmem:[%s353] sm:$0xff]
      %v642 = vld [vmem:[%s353 + $0x8] sm:$0xff]
      %v643 = vld [vmem:[%s353 + $0x10] sm:$0xff]
      %v644 = vld [vmem:[%s353 + $0x18] sm:$0xff]
      %v645 = vld [vmem:[%s353 + $0x20] sm:$0xff]
      %v646 = vld [vmem:[%s353 + $0x28] sm:$0xff]
      %v647 = vld [vmem:[%s353 + $0x30] sm:$0xff]
      %v648 = vld [vmem:[%s353 + $0x38] sm:$0xff]
      %v649 = vld [vmem:[%s353 + $0x40] sm:$0xff]
      %v650 = vld [vmem:[%s353 + $0x48] sm:$0xff]
      %v651 = vld [vmem:[%s353 + $0x50] sm:$0xff]
      %v652 = vld [vmem:[%s353 + $0x58] sm:$0xff]
      %v653 = vld [vmem:[%s353 + $0x60] sm:$0xff]
      %v654 = vld [vmem:[%s353 + $0x68] sm:$0xff]
      %v655 = vld [vmem:[%s353 + $0x70] sm:$0xff]
      %v656 = vld [vmem:[%s353 + $0x78] sm:$0xff]
      %v657 = vadd.f32 %v641, %v579
      %v658 = vadd.f32 %v642, %v582
      %v659 = vadd.f32 %v643, %v587
      %v660 = vadd.f32 %v644, %v590
      %v661 = vadd.f32 %v645, %v595
      %v662 = vadd.f32 %v646, %v598
      %v663 = vadd.f32 %v647, %v603
      %v664 = vadd.f32 %v648, %v606
      %v665 = vadd.f32 %v649, %v611
      %v666 = vadd.f32 %v650, %v614
      %v667 = vadd.f32 %v651, %v619
      %v668 = vadd.f32 %v652, %v622
      %v669 = vadd.f32 %v653, %v627
      %v670 = vadd.f32 %v654, %v630
      %v671 = vadd.f32 %v655, %v635
      %v672 = vadd.f32 %v656, %v638
      %673 = vst [vmem:[%s362] sm:$0xff] %v657
      %674 = vst [vmem:[%s362 + $0x8] sm:$0xff] %v658
      %675 = vst [vmem:[%s362 + $0x10] sm:$0xff] %v659
      %676 = vst [vmem:[%s362 + $0x18] sm:$0xff] %v660
      %677 = vst [vmem:[%s362 + $0x20] sm:$0xff] %v661
      %678 = vst [vmem:[%s362 + $0x28] sm:$0xff] %v662
      %679 = vst [vmem:[%s362 + $0x30] sm:$0xff] %v663
      %680 = vst [vmem:[%s362 + $0x38] sm:$0xff] %v664
      %681 = vst [vmem:[%s362 + $0x40] sm:$0xff] %v665
      %682 = vst [vmem:[%s362 + $0x48] sm:$0xff] %v666
      %683 = vst [vmem:[%s362 + $0x50] sm:$0xff] %v667
      %684 = vst [vmem:[%s362 + $0x58] sm:$0xff] %v668
      %685 = vst [vmem:[%s362 + $0x60] sm:$0xff] %v669
      %686 = vst [vmem:[%s362 + $0x68] sm:$0xff] %v670
      %687 = vst [vmem:[%s362 + $0x70] sm:$0xff] %v671
      %688 = vst [vmem:[%s362 + $0x78] sm:$0xff] %v672
      %p689 = scmp.lt.s32.totalorder %s22, 1
      %s690 = scalar_select %p689, %s22, 1
      %p691 = scmp.lt.s32.totalorder %s23, 1
      %s692 = scalar_select %p691, %s23, 1
      %s693 = smul.addr %s692, 16
      %s694 = smul.addr %s690, 32
      %s695 = sadd.s32 %s693, %s694
      %s696 = smul.addr %s695, 8
      %s697 = scalar_lea.vmem %s7, %s696
      // Predicated region
      $region49: #{convnext_block.3} parent=47 // pred_check
        %p698 = pneg %p216
      $region50: #{convnext_block.3} parent=47 // pred_check_branch
        %700 = sbr.rel (%p698) target = $region52
      $region51: #{convnext_block.3} parent=47 // pred_region
        _
      $region52: #{convnext_block.3} parent=47 // pred_fallthru
        _
    $region48: #{convnext_block.3} parent=5 // pred_fallthru
      _
    %p701 = scmp.le.s32.totalorder 2, %s13
    // Predicated region
    $region53: #{convnext_block.3} parent=5 // pred_check
      %p702 = pneg %p701
    $region54: #{convnext_block.3} parent=5 // pred_check_branch
      %704 = sbr.rel (%p702) target = $region56
    $region55: #{convnext_block.3} parent=5 // pred_region
      %s705 = ssub.s32 %s13, 2
      // Predicated region
      $region57: #{convnext_block.3} parent=55 // pred_check
        %p706 = pneg %p222
      $region58: #{convnext_block.3} parent=55 // pred_check_branch
        %708 = sbr.rel (%p706) target = $region60
      $region59: #{convnext_block.3} parent=55 // pred_region
        %p709 = scmp.lt.s32.totalorder %s24, 1
        %s710 = scalar_select %p709, %s24, 1
        %p711 = scmp.lt.s32.totalorder %s25, 1
        %s712 = scalar_select %p711, %s25, 1
        %s713 = smul.addr %s712, 16
        %s714 = smul.addr %s710, 32
        %s715 = sadd.s32 %s713, %s714
        %s716 = smul.addr %s715, 8
        %s717 = scalar_lea.vmem %s7, %s716
      $region60: #{convnext_block.3} parent=55 // pred_fallthru
        _
    $region56: #{convnext_block.3} parent=5 // pred_fallthru
      _
  $region6: #{convnext_block.3} parent=0 // loop_footer
    %s17 = sadd.s32 1, %s13
  $region7: #{convnext_block.3} parent=0 // loop_footer_branch
    %12 = sbr.rel target = $region3
  $region8: #{convnext_block.3} parent=0 // loop_exit
    _

// kernel: convnext_block.2
$region0: #{convnext_block.2}
  #allocation0 [shape = 'u32[]', space=smem, size = 0x4, offset = 0x4, fixed_abs, tag = 'smem constant byte address 0x4 - core index']
  #allocation1 [shape = 'u32[144,128]{1,0:T(1,128)}', space=vmem, size = 0x12000, scoped, tag = 'internal scratch']
  %s0 = inlined_call_operand.vmem [shape: f32[2,2,14,22,128], index: 0, kind: input, shape index: {}]
  %s1 = inlined_call_operand.vmem [shape: f32[7,7,128], index: 1, kind: input, shape index: {}]
  %s2 = inlined_call_operand.vmem [shape: f32[1,128], index: 2, kind: input, shape index: {}]
  %s3 = inlined_call_operand.vmem [shape: f32[1,128], index: 3, kind: input, shape index: {}]
  %s4 = inlined_call_operand.vmem [shape: f32[1,128], index: 4, kind: input, shape index: {}]
  %s5 = inlined_call_operand.vmem [shape: bf16[128,128], index: 5, kind: input, shape index: {}]
  %s6 = inlined_call_operand.vmem [shape: f32[1,128], index: 6, kind: input, shape index: {}]
  %s7 = inlined_call_operand.vmem [shape: f32[2,2,128,128], index: 7, kind: output, shape index: {0}]
  %s8 = inlined_call_operand.vmem [shape: f32[2,2,8,128], index: 8, kind: output, shape index: {1}]
  %9 = xla_tuple %s7, %s8
  %s10 = sld [smem:[#allocation0]]
  $region69: #{convnext_block.2} parent=0
    _
  %s12 = ssub.s32 1, %s10
  %s13 = scalar_select 0, %s12, %s10
  loop: start=0, step=1, limit=6
  $region2: #{convnext_block.2} parent=0 // loop_pre_header
    _
  $region3: #{convnext_block.2} parent=0 // loop_header
    %s15 = sphi 0, %s19
    %p16 = scmp.ge.s32.totalorder %s15, 6
    %s22 = sphi 0, %s34
    %s23 = sphi 0, %s30
    %s24 = sphi 0, %s22
    %s25 = sphi 0, %s23
    %s26 = sphi 0, %s24
    %s27 = sphi 0, %s25
    %s39 = sphi 0, %s41
    %s42 = sphi 0, %s39
    %s43 = sphi 0, %s42
    %s59 = sphi 0, %s43
    %s63 = sphi 0, %s63
    %s65 = sphi 0, %s63
    %s66 = sphi 0, %s65
    %s80 = sphi 0, %s66
    %s84 = sphi 0, %s84
    %s86 = sphi 0, %s84
    %s87 = sphi 0, %s86
    %s101 = sphi 0, %s87
    %s105 = sphi 0, %s105
    %s107 = sphi 0, %s105
    %s108 = sphi 0, %s107
    %s122 = sphi 0, %s108
    %s126 = sphi 0, %s126
    %s128 = sphi 0, %s126
    %s129 = sphi 0, %s128
    %s143 = sphi 0, %s129
    %s147 = sphi 0, %s147
    %s149 = sphi 0, %s147
    %s150 = sphi 0, %s149
    %s164 = sphi 0, %s150
    %s168 = sphi 0, %s168
    %s170 = sphi 0, %s168
    %s171 = sphi 0, %s170
    %s185 = sphi 0, %s171
    %s193 = sphi 0, %s195
    %s196 = sphi 0, %s193
    %s197 = sphi 0, %s196
    %s213 = sphi 0, %s197
    %s221 = sphi 0, %s223
    %s224 = sphi 0, %s221
    %s225 = sphi 0, %s224
    %s241 = sphi 0, %s225
  $region4: #{convnext_block.2} parent=0 // loop_header_branch
    %18 = sbr.rel (%p16) target = $region8
  $region5: #{convnext_block.2} parent=0 // loop_body
    %s20 = ssub.s32 %s15, 1
    %s21 = ssub.s32 %s15, 2
    %s28 = sadd.s32 1, %s23
    %p29 = scmp.ge.s32.totalorder %s28, 2
    %s30 = scalar_select %p29, 0, %s28
    %s31 = sadd.s32 1, %s22
    %s32 = scalar_select %p29, %s31, %s22
    %p33 = scmp.ge.s32.totalorder %s32, 2
    %s34 = scalar_select %p33, 0, %s32
    %s35 = ssub.s32 %s22, %s34
    %s36 = ssub.s32 %s23, %s30
    %s37 = sor.u32 %s35, %s36
    %p38 = scmp.eq.s32.totalorder %s37, 0
    %s40 = sadd.s32 %s39, 1
    %s41 = scalar_select %p38, %s39, %s40
    %p44 = pneg %p38
    %p45 = scmp.eq.s32.totalorder %s15, 3
    %p46 = por %p44, %p45
    %p47 = scmp.ne.s32.totalorder %s39, %s42
    %p48 = scmp.eq.s32.totalorder %s15, 0
    %p49 = por %p47, %p48
    %p50 = scmp.ne.s32.totalorder %s39, %s42
    %p51 = scmp.eq.s32.totalorder %s20, 3
    %p52 = por %p50, %p51
    %p53 = scmp.ne.s32.totalorder %s42, %s43
    %p54 = scmp.eq.s32.totalorder %s20, 0
    %p55 = por %p53, %p54
    %p56 = scmp.ne.s32.totalorder %s42, %s43
    %p57 = scmp.eq.s32.totalorder %s21, 3
    %p58 = por %p56, %p57
    %p60 = scmp.ne.s32.totalorder %s43, %s59
    %p61 = scmp.eq.s32.totalorder %s21, 0
    %p62 = por %p60, %p61
    %s64 = sadd.s32 %s63, 1
    %p67 = scmp.eq.s32.totalorder %s15, 3
    %p68 = scmp.ne.s32.totalorder %s63, %s65
    %p69 = scmp.eq.s32.totalorder %s15, 0
    %p70 = por %p68, %p69
    %p71 = scmp.ne.s32.totalorder %s63, %s65
    %p72 = scmp.eq.s32.totalorder %s20, 3
    %p73 = por %p71, %p72
    %p74 = scmp.ne.s32.totalorder %s65, %s66
    %p75 = scmp.eq.s32.totalorder %s20, 0
    %p76 = por %p74, %p75
    %p77 = scmp.ne.s32.totalorder %s65, %s66
    %p78 = scmp.eq.s32.totalorder %s21, 3
    %p79 = por %p77, %p78
    %p81 = scmp.ne.s32.totalorder %s66, %s80
    %p82 = scmp.eq.s32.totalorder %s21, 0
    %p83 = por %p81, %p82
    %s85 = sadd.s32 %s84, 1
    %p88 = scmp.eq.s32.totalorder %s15, 3
    %p89 = scmp.ne.s32.totalorder %s84, %s86
    %p90 = scmp.eq.s32.totalorder %s15, 0
    %p91 = por %p89, %p90
    %p92 = scmp.ne.s32.totalorder %s84, %s86
    %p93 = scmp.eq.s32.totalorder %s20, 3
    %p94 = por %p92, %p93
    %p95 = scmp.ne.s32.totalorder %s86, %s87
    %p96 = scmp.eq.s32.totalorder %s20, 0
    %p97 = por %p95, %p96
    %p98 = scmp.ne.s32.totalorder %s86, %s87
    %p99 = scmp.eq.s32.totalorder %s21, 3
    %p100 = por %p98, %p99
    %p102 = scmp.ne.s32.totalorder %s87, %s101
    %p103 = scmp.eq.s32.totalorder %s21, 0
    %p104 = por %p102, %p103
    %s106 = sadd.s32 %s105, 1
    %p109 = scmp.eq.s32.totalorder %s15, 3
    %p110 = scmp.ne.s32.totalorder %s105, %s107
    %p111 = scmp.eq.s32.totalorder %s15, 0
    %p112 = por %p110, %p111
    %p113 = scmp.ne.s32.totalorder %s105, %s107
    %p114 = scmp.eq.s32.totalorder %s20, 3
    %p115 = por %p113, %p114
    %p116 = scmp.ne.s32.totalorder %s107, %s108
    %p117 = scmp.eq.s32.totalorder %s20, 0
    %p118 = por %p116, %p117
    %p119 = scmp.ne.s32.totalorder %s107, %s108
    %p120 = scmp.eq.s32.totalorder %s21, 3
    %p121 = por %p119, %p120
    %p123 = scmp.ne.s32.totalorder %s108, %s122
    %p124 = scmp.eq.s32.totalorder %s21, 0
    %p125 = por %p123, %p124
    %s127 = sadd.s32 %s126, 1
    %p130 = scmp.eq.s32.totalorder %s15, 3
    %p131 = scmp.ne.s32.totalorder %s126, %s128
    %p132 = scmp.eq.s32.totalorder %s15, 0
    %p133 = por %p131, %p132
    %p134 = scmp.ne.s32.totalorder %s126, %s128
    %p135 = scmp.eq.s32.totalorder %s20, 3
    %p136 = por %p134, %p135
    %p137 = scmp.ne.s32.totalorder %s128, %s129
    %p138 = scmp.eq.s32.totalorder %s20, 0
    %p139 = por %p137, %p138
    %p140 = scmp.ne.s32.totalorder %s128, %s129
    %p141 = scmp.eq.s32.totalorder %s21, 3
    %p142 = por %p140, %p141
    %p144 = scmp.ne.s32.totalorder %s129, %s143
    %p145 = scmp.eq.s32.totalorder %s21, 0
    %p146 = por %p144, %p145
    %s148 = sadd.s32 %s147, 1
    %p151 = scmp.eq.s32.totalorder %s15, 3
    %p152 = scmp.ne.s32.totalorder %s147, %s149
    %p153 = scmp.eq.s32.totalorder %s15, 0
    %p154 = por %p152, %p153
    %p155 = scmp.ne.s32.totalorder %s147, %s149
    %p156 = scmp.eq.s32.totalorder %s20, 3
    %p157 = por %p155, %p156
    %p158 = scmp.ne.s32.totalorder %s149, %s150
    %p159 = scmp.eq.s32.totalorder %s20, 0
    %p160 = por %p158, %p159
    %p161 = scmp.ne.s32.totalorder %s149, %s150
    %p162 = scmp.eq.s32.totalorder %s21, 3
    %p163 = por %p161, %p162
    %p165 = scmp.ne.s32.totalorder %s150, %s164
    %p166 = scmp.eq.s32.totalorder %s21, 0
    %p167 = por %p165, %p166
    %s169 = sadd.s32 %s168, 1
    %p172 = scmp.eq.s32.totalorder %s15, 3
    %p173 = scmp.ne.s32.totalorder %s168, %s170
    %p174 = scmp.eq.s32.totalorder %s15, 0
    %p175 = por %p173, %p174
    %p176 = scmp.ne.s32.totalorder %s168, %s170
    %p177 = scmp.eq.s32.totalorder %s20, 3
    %p178 = por %p176, %p177
    %p179 = scmp.ne.s32.totalorder %s170, %s171
    %p180 = scmp.eq.s32.totalorder %s20, 0
    %p181 = por %p179, %p180
    %p182 = scmp.ne.s32.totalorder %s170, %s171
    %p183 = scmp.eq.s32.totalorder %s21, 3
    %p184 = por %p182, %p183
    %p186 = scmp.ne.s32.totalorder %s171, %s185
    %p187 = scmp.eq.s32.totalorder %s21, 0
    %p188 = por %p186, %p187
    %s189 = ssub.s32 %s22, %s34
    %s190 = ssub.s32 %s23, %s30
    %s191 = sor.u32 %s189, %s190
    %p192 = scmp.eq.s32.totalorder %s191, 0
    %s194 = sadd.s32 %s193, 1
    %s195 = scalar_select %p192, %s193, %s194
    %p198 = pneg %p192
    %p199 = scmp.eq.s32.totalorder %s15, 3
    %p200 = por %p198, %p199
    %p201 = scmp.ne.s32.totalorder %s193, %s196
    %p202 = scmp.eq.s32.totalorder %s15, 0
    %p203 = por %p201, %p202
    %p204 = scmp.ne.s32.totalorder %s193, %s196
    %p205 = scmp.eq.s32.totalorder %s20, 3
    %p206 = por %p204, %p205
    %p207 = scmp.ne.s32.totalorder %s196, %s197
    %p208 = scmp.eq.s32.totalorder %s20, 0
    %p209 = por %p207, %p208
    %p210 = scmp.ne.s32.totalorder %s196, %s197
    %p211 = scmp.eq.s32.totalorder %s21, 3
    %p212 = por %p210, %p211
    %p214 = scmp.ne.s32.totalorder %s197, %s213
    %p215 = scmp.eq.s32.totalorder %s21, 0
    %p216 = por %p214, %p215
    %s217 = ssub.s32 %s22, %s34
    %s218 = ssub.s32 %s23, %s30
    %s219 = sor.u32 %s217, %s218
    %p220 = scmp.eq.s32.totalorder %s219, 0
    %s222 = sadd.s32 %s221, 1
    %s223 = scalar_select %p220, %s221, %s222
    %p226 = pneg %p220
    %p227 = scmp.eq.s32.totalorder %s15, 3
    %p228 = por %p226, %p227
    %p229 = scmp.ne.s32.totalorder %s221, %s224
    %p230 = scmp.eq.s32.totalorder %s15, 0
    %p231 = por %p229, %p230
    %p232 = scmp.ne.s32.totalorder %s221, %s224
    %p233 = scmp.eq.s32.totalorder %s20, 3
    %p234 = por %p232, %p233
    %p235 = scmp.ne.s32.totalorder %s224, %s225
    %p236 = scmp.eq.s32.totalorder %s20, 0
    %p237 = por %p235, %p236
    %p238 = scmp.ne.s32.totalorder %s224, %s225
    %p239 = scmp.eq.s32.totalorder %s21, 3
    %p240 = por %p238, %p239
    %p242 = scmp.ne.s32.totalorder %s225, %s241
    %p243 = scmp.eq.s32.totalorder %s21, 0
    %p244 = por %p242, %p243
    %p245 = scmp.le.s32.totalorder 1, %s15
    %p246 = scmp.lt.s32.totalorder %s15, 5
    %p247 = pnand %p245, %p246
    %p248 = pneg %p247
    // Predicated region
    $region9: #{convnext_block.2} parent=5 // pred_check
      _
    $region10: #{convnext_block.2} parent=5 // pred_check_branch
      %250 = sbr.rel (%p247) target = $region12
    $region11: #{convnext_block.2} parent=5 // pred_region
      %s251 = ssub.s32 %s15, 1
      // Predicated region
      $region13: #{convnext_block.2} parent=11 // pred_check
        %p252 = pneg %p76
      $region14: #{convnext_block.2} parent=11 // pred_check_branch
        %254 = sbr.rel (%p252) target = $region16
      $region15: #{convnext_block.2} parent=11 // pred_region
        _
      $region16: #{convnext_block.2} parent=11 // pred_fallthru
        _
      // Predicated region
      $region17: #{convnext_block.2} parent=11 // pred_check
        %p255 = pneg %p97
      $region18: #{convnext_block.2} parent=11 // pred_check_branch
        %257 = sbr.rel (%p255) target = $region20
      $region19: #{convnext_block.2} parent=11 // pred_region
        _
      $region20: #{convnext_block.2} parent=11 // pred_fallthru
        _
      // Predicated region
      $region21: #{convnext_block.2} parent=11 // pred_check
        %p258 = pneg %p118
      $region22: #{convnext_block.2} parent=11 // pred_check_branch
        %260 = sbr.rel (%p258) target = $region24
      $region23: #{convnext_block.2} parent=11 // pred_region
        _
      $region24: #{convnext_block.2} parent=11 // pred_fallthru
        _
      // Predicated region
      $region25: #{convnext_block.2} parent=11 // pred_check
        %p261 = pneg %p139
      $region26: #{convnext_block.2} parent=11 // pred_check_branch
        %263 = sbr.rel (%p261) target = $region28
      $region27: #{convnext_block.2} parent=11 // pred_region
        _
      $region28: #{convnext_block.2} parent=11 // pred_fallthru
        _
      // Predicated region
      $region29: #{convnext_block.2} parent=11 // pred_check
        %p264 = pneg %p160
      $region30: #{convnext_block.2} parent=11 // pred_check_branch
        %266 = sbr.rel (%p264) target = $region32
      $region31: #{convnext_block.2} parent=11 // pred_region
        _
      $region32: #{convnext_block.2} parent=11 // pred_fallthru
        _
      // Predicated region
      $region33: #{convnext_block.2} parent=11 // pred_check
        %p267 = pneg %p181
      $region34: #{convnext_block.2} parent=11 // pred_check_branch
        %269 = sbr.rel (%p267) target = $region36
      $region35: #{convnext_block.2} parent=11 // pred_region
        _
      $region36: #{convnext_block.2} parent=11 // pred_fallthru
        _
    $region12: #{convnext_block.2} parent=5 // pred_fallthru
      _
    %p270 = scmp.lt.s32.totalorder %s15, 4
    // Predicated region
    $region37: #{convnext_block.2} parent=5 // pred_check
      %p271 = pneg %p270
    $region38: #{convnext_block.2} parent=5 // pred_check_branch
      %273 = sbr.rel (%p271) target = $region40
    $region39: #{convnext_block.2} parent=5 // pred_region
      // Predicated region
      $region41: #{convnext_block.2} parent=39 // pred_check
        %p274 = pneg %p49
      $region42: #{convnext_block.2} parent=39 // pred_check_branch
        %276 = sbr.rel (%p274) target = $region44
      $region43: #{convnext_block.2} parent=39 // pred_region
        %p277 = scmp.lt.s32.totalorder %s22, 1
        %s278 = scalar_select %p277, %s22, 1
        %p279 = scmp.lt.s32.totalorder %s23, 1
        %s280 = scalar_select %p279, %s23, 1
        %s281 = smul.addr %s280, 42
        %s282 = smul.addr %s278, 84
        %s283 = sadd.s32 %s281, %s282
        %s284 = smul.addr %s283, 8
        %s285 = scalar_lea.vmem %s0, %s284
      $region44: #{convnext_block.2} parent=39 // pred_fallthru
        _
    $region40: #{convnext_block.2} parent=5 // pred_fallthru
      _
    %p286 = scmp.le.s32.totalorder 1, %s15
    %p287 = scmp.lt.s32.totalorder %s15, 5
    %p288 = pnand %p286, %p287
    %p289 = pneg %p288
    // Predicated region
    $region45: #{convnext_block.2} parent=5 // pred_check
      _
    $region46: #{convnext_block.2} parent=5 // pred_check_branch
      %291 = sbr.rel (%p288) target = $region48
    $region47: #{convnext_block.2} parent=5 // pred_region
      %s292 = ssub.s32 %s15, 1
      %p293 = scmp.lt.s32.totalorder %s24, 1
      %s294 = scalar_select %p293, %s24, 1
      %p295 = scmp.lt.s32.totalorder %s25, 1
      %s296 = scalar_select %p295, %s25, 1
      %s297 = smul.addr %s296, 42
      %s298 = smul.addr %s294, 84
      %s299 = sadd.s32 %s297, %s298
      %s300 = smul.addr %s299, 8
      %s301 = scalar_lea.vmem %s0, %s300
      %p302 = pneg %p55
      %p303 = pneg %p52
      %p304 = pneg %p76
      %p305 = pneg %p73
      %p306 = pneg %p97
      %p307 = pneg %p94
      %p308 = pneg %p118
      %p309 = pneg %p115
      %p310 = pneg %p139
      %p311 = pneg %p136
      %p312 = pneg %p160
      %p313 = pneg %p157
      %p314 = pneg %p181
      %p315 = pneg %p178
      %p316 = pneg %p209
      %p317 = pneg %p206
      %p318 = scmp.lt.s32.totalorder %s24, 1
      %s319 = scalar_select %p318, %s24, 1
      %p320 = scmp.lt.s32.totalorder %s25, 1
      %s321 = scalar_select %p320, %s25, 1
      %s322 = smul.addr %s321, 16
      %s323 = smul.addr %s319, 32
      %s324 = sadd.s32 %s322, %s323
      %s325 = smul.addr %s324, 8
      %s326 = scalar_lea.vmem %s7, %s325
      %p327 = pneg %p237
      %p328 = pneg %p234
      %p329 = scmp.lt.s32.totalorder %s24, 1
      %s330 = scalar_select %p329, %s24, 1
      %p331 = scmp.lt.s32.totalorder %s25, 1
      %s332 = scalar_select %p331, %s25, 1
      %s333 = smul.addr %s330, 2
      %s334 = sadd.s32 %s332, %s333
      %s335 = smul.addr %s334, 8
      %s336 = scalar_lea.vmem %s8, %s335
      %p337 = scmp.lt.s32.totalorder %s24, 1
      %s338 = scalar_select %p337, %s24, 1
      %p339 = scmp.lt.s32.totalorder %s25, 1
      %s340 = scalar_select %p339, %s25, 1
      %s341 = smul.addr %s340, 42
      %s342 = smul.addr %s338, 84
      %s343 = sadd.s32 %s341, %s342
      %s344 = smul.addr %s343, 8
      %s345 = scalar_lea.vmem %s0, %s344
      %p346 = scmp.lt.s32.totalorder %s24, 1
      %s347 = scalar_select %p346, %s24, 1
      %p348 = scmp.lt.s32.totalorder %s25, 1
      %s349 = scalar_select %p348, %s25, 1
      %s350 = smul.addr %s349, 16
      %s351 = smul.addr %s347, 32
      %s352 = sadd.s32 %s350, %s351
      %s353 = smul.addr %s352, 8
      %s354 = scalar_lea.vmem %s7, %s353
      %p355 = scmp.lt.s32.totalorder %s24, 1
      %s356 = scalar_select %p355, %s24, 1
      %p357 = scmp.lt.s32.totalorder %s25, 1
      %s358 = scalar_select %p357, %s25, 1
      %s359 = smul.addr %s356, 2
      %s360 = sadd.s32 %s358, %s359
      %s361 = smul.addr %s360, 8
      %s362 = scalar_lea.vmem %s8, %s361
      %v364 = vld [vmem:[%s345] sm:$0xff]
      %v365 = vld [vmem:[%s345 + $0x8] sm:$0xff]
      %v366 = vld [vmem:[%s345 + $0x10] sm:$0x3f]
      %v367 = vld [vmem:[%s345 + $0x18] sm:$0xff]
      %v368 = vld [vmem:[%s345 + $0x20] sm:$0xff]
      %v369 = vld [vmem:[%s345 + $0x28] sm:$0x3f]
      %v370 = vld [vmem:[%s345 + $0x30] sm:$0xff]
      %v371 = vld [vmem:[%s345 + $0x38] sm:$0xff]
      %v372 = vld [vmem:[%s345 + $0x40] sm:$0x3f]
      %v373 = vld [vmem:[%s345 + $0x48] sm:$0xff]
      %v374 = vld [vmem:[%s345 + $0x50] sm:$0xff]
      %v375 = vld [vmem:[%s345 + $0x58] sm:$0x3f]
      %v376 = vld [vmem:[%s345 + $0x60] sm:$0xff]
      %v377 = vld [vmem:[%s345 + $0x68] sm:$0xff]
      %v378 = vld [vmem:[%s345 + $0x70] sm:$0x3f]
      %v379 = vld [vmem:[%s345 + $0x78] sm:$0xff]
      %v380 = vld [vmem:[%s345 + $0x80] sm:$0xff]
      %v381 = vld [vmem:[%s345 + $0x88] sm:$0x3f]
      %v382 = vld [vmem:[%s345 + $0x90] sm:$0xff]
      %v383 = vld [vmem:[%s345 + $0x98] sm:$0xff]
      %v384 = vld [vmem:[%s345 + $0xa0] sm:$0x3f]
      %v385 = vld [vmem:[%s345 + $0xa8] sm:$0xff]
      %v386 = vld [vmem:[%s345 + $0xb0] sm:$0xff]
      %v387 = vld [vmem:[%s345 + $0xb8] sm:$0x3f]
      %v388 = vld [vmem:[%s345 + $0xc0] sm:$0xff]
      %v389 = vld [vmem:[%s345 + $0xc8] sm:$0xff]
      %v390 = vld [vmem:[%s345 + $0xd0] sm:$0x3f]
      %v391 = vld [vmem:[%s345 + $0xd8] sm:$0xff]
      %v392 = vld [vmem:[%s345 + $0xe0] sm:$0xff]
      %v393 = vld [vmem:[%s345 + $0xe8] sm:$0x3f]
      %v394 = vld [vmem:[%s345 + $0xf0] sm:$0xff]
      %v395 = vld [vmem:[%s345 + $0xf8] sm:$0xff]
      %v396 = vld [vmem:[%s345 + $0x100] sm:$0x3f]
      %v397 = vld [vmem:[%s345 + $0x108] sm:$0xff]
      %v398 = vld [vmem:[%s345 + $0x110] sm:$0xff]
      %v399 = vld [vmem:[%s345 + $0x118] sm:$0x3f]
      %v400 = vld [vmem:[%s345 + $0x120] sm:$0xff]
      %v401 = vld [vmem:[%s345 + $0x128] sm:$0xff]
      %v402 = vld [vmem:[%s345 + $0x130] sm:$0x3f]
      %v403 = vld [vmem:[%s345 + $0x138] sm:$0xff]
      %v404 = vld [vmem:[%s345 + $0x140] sm:$0xff]
      %v405 = vld [vmem:[%s345 + $0x148] sm:$0x3f]
      %v406 = vld [vmem:[%s1] sm:$0x7f]
      %v407 = vld [vmem:[%s1 + $0x8] sm:$0x7f]
      %v408 = vld [vmem:[%s1 + $0x10] sm:$0x7f]
      %v409 = vld [vmem:[%s1 + $0x18] sm:$0x7f]
      %v410 = vld [vmem:[%s1 + $0x20] sm:$0x7f]
      %v411 = vld [vmem:[%s1 + $0x28] sm:$0x7f]
      %v412 = vld [vmem:[%s1 + $0x30] sm:$0x7f]
      %v413 = vlaneseq
      %v414 = vshrl.u32 %v413, 7
      %v415 = vsub.s32 0, %v414
      %v416 = vrot.slane %v406, %v415
      %v417 = vmul.f32 %v364, %v416
      %v418 = vmul.f32 %v365, %v416
      %v419 = vmul.f32 %v367, %v416
      %v420 = vmul.f32 %v368, %v416
      %v421 = vmul.f32 %v370, %v416
      %v422 = vmul.f32 %v371, %v416
      %v423 = vmul.f32 %v373, %v416
      %v424 = vmul.f32 %v374, %v416
      %v425 = vmul.f32 %v376, %v416
      %v426 = vmul.f32 %v377, %v416
      %v427 = vmul.f32 %v379, %v416
      %v428 = vmul.f32 %v380, %v416
      %v429 = vmul.f32 %v382, %v416
      %v430 = vmul.f32 %v383, %v416
      %v431 = vmul.f32 %v385, %v416
      %v432 = vmul.f32 %v386, %v416
      %v433 = vlaneseq
      %v434 = vshrl.u32 %v433, 7
      %v435 = vsub.s32 0, %v434
      %v436 = vrot.slane %v407, %v435
      %v437 = vmul.f32 %v367, %v436
      %v438 = vmul.f32 %v368, %v436
      %v439 = vmul.f32 %v370, %v436
      %v440 = vmul.f32 %v371, %v436
      %v441 = vmul.f32 %v373, %v436
      %v442 = vmul.f32 %v374, %v436
      %v443 = vmul.f32 %v376, %v436
      %v444 = vmul.f32 %v377, %v436
      %v445 = vmul.f32 %v379, %v436
      %v446 = vmul.f32 %v380, %v436
      %v447 = vmul.f32 %v382, %v436
      %v448 = vmul.f32 %v383, %v436
      %v449 = vmul.f32 %v385, %v436
      %v450 = vmul.f32 %v386, %v436
      %v451 = vmul.f32 %v388, %v436
      %v452 = vmul.f32 %v389, %v436
      %v453 = vadd.f32 %v417, %v437
      %v454 = vadd.f32 %v418, %v438
      %v455 = vadd.f32 %v419, %v439
      %v456 = vadd.f32 %v420, %v440
      %v457 = vadd.f32 %v421, %v441
      %v458 = vadd.f32 %v422, %v442
      %v459 = vadd.f32 %v423, %v443
      %v460 = vadd.f32 %v424, %v444
      %v461 = vadd.f32 %v425, %v445
      %v462 = vadd.f32 %v426, %v446
      %v463 = vadd.f32 %v427, %v447
      %v464 = vadd.f32 %v428, %v448
      %v465 = vadd.f32 %v429, %v449
      %v466 = vadd.f32 %v430, %v450
      %v467 = vadd.f32 %v431, %v451
      %v468 = vadd.f32 %v432, %v452
      %v469 = vlaneseq
      %v470 = vshrl.u32 %v469, 7
      %v471 = vsub.s32 0, %v470
      %v472 = vrot.slane %v408, %v471
      %v473 = vmul.f32 %v370, %v472
      %v474 = vmul.f32 %v371, %v472
      %v475 = vmul.f32 %v373, %v472
      %v476 = vmul.f32 %v374, %v472
      %v477 = vmul.f32 %v376, %v472
      %v478 = vmul.f32 %v377, %v472
      %v479 = vmul.f32 %v379, %v472
      %v480 = vmul.f32 %v380, %v472
      %v481 = vmul.f32 %v382, %v472
      %v482 = vmul.f32 %v383, %v472
      %v483 = vmul.f32 %v385, %v472
      %v484 = vmul.f32 %v386, %v472
      %v485 = vmul.f32 %v388, %v472
      %v486 = vmul.f32 %v389, %v472
      %v487 = vmul.f32 %v391, %v472
      %v488 = vmul.f32 %v392, %v472
      %v489 = vadd.f32 %v453, %v473
      %v490 = vadd.f32 %v454, %v474
      %v491 = vadd.f32 %v455, %v475
      %v492 = vadd.f32 %v456, %v476
      %v493 = vadd.f32 %v457, %v477
      %v494 = vadd.f32 %v458, %v478
      %v495 = vadd.f32 %v459, %v479
      %v496 = vadd.f32 %v460, %v480
      %v497 = vadd.f32 %v461, %v481
      %v498 = vadd.f32 %v462, %v482
      %v499 = vadd.f32 %v463, %v483
      %v500 = vadd.f32 %v464, %v484
      %v501 = vadd.f32 %v465, %v485
      %v502 = vadd.f32 %v466, %v486
      %v503 = vadd.f32 %v467, %v487
      %v504 = vadd.f32 %v468, %v488
      %v505 = vlaneseq
      %v506 = vshrl.u32 %v505, 7
      %v507 = vsub.s32 0, %v506
      %v508 = vrot.slane %v409, %v507
      %v509 = vmul.f32 %v373, %v508
      %v510 = vmul.f32 %v374, %v508
      %v511 = vmul.f32 %v376, %v508
      %v512 = vmul.f32 %v377, %v508
      %v513 = vmul.f32 %v379, %v508
      %v514 = vmul.f32 %v380, %v508
      %v515 = vmul.f32 %v382, %v508
      %v516 = vmul.f32 %v383, %v508
      %v517 = vmul.f32 %v385, %v508
      %v518 = vmul.f32 %v386, %v508
      %v519 = vmul.f32 %v388, %v508
      %v520 = vmul.f32 %v389, %v508
      %v521 = vmul.f32 %v391, %v508
      %v522 = vmul.f32 %v392, %v508
      %v523 = vmul.f32 %v394, %v508
      %v524 = vmul.f32 %v395, %v508
      %v525 = vadd.f32 %v489, %v509
      %v526 = vadd.f32 %v490, %v510
      %v527 = vadd.f32 %v491, %v511
      %v528 = vadd.f32 %v492, %v512
      %v529 = vadd.f32 %v493, %v513
      %v530 = vadd.f32 %v494, %v514
      %v531 = vadd.f32 %v495, %v515
      %v532 = vadd.f32 %v496, %v516
      %v533 = vadd.f32 %v497, %v517
      %v534 = vadd.f32 %v498, %v518
      %v535 = vadd.f32 %v499, %v519
      %v536 = vadd.f32 %v500, %v520
      %v537 = vadd.f32 %v501, %v521
      %v538 = vadd.f32 %v502, %v522
      %v539 = vadd.f32 %v503, %v523
      %v540 = vadd.f32 %v504, %v524
      %v541 = vlaneseq
      %v542 = vshrl.u32 %v541, 7
      %v543 = vsub.s32 0, %v542
      %v544 = vrot.slane %v410, %v543
      %v545 = vmul.f32 %v376, %v544
      %v546 = vmul.f32 %v377, %v544
      %v547 = vmul.f32 %v379, %v544
      %v548 = vmul.f32 %v380, %v544
      %v549 = vmul.f32 %v382, %v544
      %v550 = vmul.f32 %v383, %v544
      %v551 = vmul.f32 %v385, %v544
      %v552 = vmul.f32 %v386, %v544
      %v553 = vmul.f32 %v388, %v544
      %v554 = vmul.f32 %v389, %v544
      %v555 = vmul.f32 %v391, %v544
      %v556 = vmul.f32 %v392, %v544
      %v557 = vmul.f32 %v394, %v544
      %v558 = vmul.f32 %v395, %v544
      %v559 = vmul.f32 %v397, %v544
      %v560 = vmul.f32 %v398, %v544
      %v561 = vadd.f32 %v525, %v545
      %v562 = vadd.f32 %v526, %v546
      %v563 = vadd.f32 %v527, %v547
      %v564 = vadd.f32 %v528, %v548
      %v565 = vadd.f32 %v529, %v549
      %v566 = vadd.f32 %v530, %v550
      %v567 = vadd.f32 %v531, %v551
      %v568 = vadd.f32 %v532, %v552
      %v569 = vadd.f32 %v533, %v553
      %v570 = vadd.f32 %v534, %v554
      %v571 = vadd.f32 %v535, %v555
      %v572 = vadd.f32 %v536, %v556
      %v573 = vadd.f32 %v537, %v557
      %v574 = vadd.f32 %v538, %v558
      %v575 = vadd.f32 %v539, %v559
      %v576 = vadd.f32 %v540, %v560
      %v577 = vlaneseq
      %v578 = vshrl.u32 %v577, 7
      %v579 = vsub.s32 0, %v578
      %v580 = vrot.slane %v411, %v579
      %v581 = vmul.f32 %v379, %v580
      %v582 = vmul.f32 %v380, %v580
      %v583 = vmul.f32 %v382, %v580
      %v584 = vmul.f32 %v383, %v580
      %v585 = vmul.f32 %v385, %v580
      %v586 = vmul.f32 %v386, %v580
      %v587 = vmul.f32 %v388, %v580
      %v588 = vmul.f32 %v389, %v580
      %v589 = vmul.f32 %v391, %v580
      %v590 = vmul.f32 %v392, %v580
      %v591 = vmul.f32 %v394, %v580
      %v592 = vmul.f32 %v395, %v580
      %v593 = vmul.f32 %v397, %v580
      %v594 = vmul.f32 %v398, %v580
      %v595 = vmul.f32 %v400, %v580
      %v596 = vmul.f32 %v401, %v580
      %v597 = vadd.f32 %v561, %v581
      %v598 = vadd.f32 %v562, %v582
      %v599 = vadd.f32 %v563, %v583
      %v600 = vadd.f32 %v564, %v584
      %v601 = vadd.f32 %v565, %v585
      %v602 = vadd.f32 %v566, %v586
      %v603 = vadd.f32 %v567, %v587
      %v604 = vadd.f32 %v568, %v588
      %v605 = vadd.f32 %v569, %v589
      %v606 = vadd.f32 %v570, %v590
      %v607 = vadd.f32 %v571, %v591
      %v608 = vadd.f32 %v572, %v592
      %v609 = vadd.f32 %v573, %v593
      %v610 = vadd.f32 %v574, %v594
      %v611 = vadd.f32 %v575, %v595
      %v612 = vadd.f32 %v576, %v596
      %v613 = vlaneseq
      %v614 = vshrl.u32 %v613, 7
      %v615 = vsub.s32 0, %v614
      %v616 = vrot.slane %v412, %v615
      %v617 = vmul.f32 %v382, %v616
      %v618 = vmul.f32 %v383, %v616
      %v619 = vmul.f32 %v385, %v616
      %v620 = vmul.f32 %v386, %v616
      %v621 = vmul.f32 %v388, %v616
      %v622 = vmul.f32 %v389, %v616
      %v623 = vmul.f32 %v391, %v616
      %v624 = vmul.f32 %v392, %v616
      %v625 = vmul.f32 %v394, %v616
      %v626 = vmul.f32 %v395, %v616
      %v627 = vmul.f32 %v397, %v616
      %v628 = vmul.f32 %v398, %v616
      %v629 = vmul.f32 %v400, %v616
      %v630 = vmul.f32 %v401, %v616
      %v631 = vmul.f32 %v403, %v616
      %v632 = vmul.f32 %v404, %v616
      %v633 = vadd.f32 %v597, %v617
      %v634 = vadd.f32 %v598, %v618
      %v635 = vadd.f32 %v599, %v619
      %v636 = vadd.f32 %v600, %v620
      %v637 = vadd.f32 %v601, %v621
      %v638 = vadd.f32 %v602, %v622
      %v639 = vadd.f32 %v603, %v623
      %v640 = vadd.f32 %v604, %v624
      %v641 = vadd.f32 %v605, %v625
      %v642 = vadd.f32 %v606, %v626
      %v643 = vadd.f32 %v607, %v627
      %v644 = vadd.f32 %v608, %v628
      %v645 = vadd.f32 %v609, %v629
      %v646 = vadd.f32 %v610, %v630
      %v647 = vadd.f32 %v611, %v631
      %v648 = vadd.f32 %v612, %v632
      %v649 = vlaneseq
      %v650 = vshrl.u32 %v649, 7
      %v651 = vsub.s32 1, %v650
      %v652 = vrot.slane %v406, %v651
      %v653 = vmul.f32 %v364, %v652
      %v654 = vmul.f32 %v365, %v652
      %v655 = vmul.f32 %v366, %v652
      %v656 = vmul.f32 %v367, %v652
      %v657 = vmul.f32 %v368, %v652
      %v658 = vmul.f32 %v369, %v652
      %v659 = vmul.f32 %v370, %v652
      %v660 = vmul.f32 %v371, %v652
      %v661 = vmul.f32 %v372, %v652
      %v662 = vmul.f32 %v373, %v652
      %v663 = vmul.f32 %v374, %v652
      %v664 = vmul.f32 %v375, %v652
      %v665 = vmul.f32 %v376, %v652
      %v666 = vmul.f32 %v377, %v652
      %v667 = vmul.f32 %v378, %v652
      %v668 = vmul.f32 %v379, %v652
      %v669 = vmul.f32 %v380, %v652
      %v670 = vmul.f32 %v381, %v652
      %v671 = vmul.f32 %v382, %v652
      %v672 = vmul.f32 %v383, %v652
      %v673 = vmul.f32 %v384, %v652
      %v674 = vmul.f32 %v385, %v652
      %v675 = vmul.f32 %v386, %v652
      %v676 = vmul.f32 %v387, %v652
      %v677 = vlaneseq
      %v678 = vshrl.u32 %v677, 7
      %v679 = vsub.s32 1, %v678
      %v680 = vrot.slane %v407, %v679
      %v681 = vmul.f32 %v367, %v680
      %v682 = vmul.f32 %v368, %v680
      %v683 = vmul.f32 %v369, %v680
      %v684 = vmul.f32 %v370, %v680
      %v685 = vmul.f32 %v371, %v680
      %v686 = vmul.f32 %v372, %v680
      %v687 = vmul.f32 %v373, %v680
      %v688 = vmul.f32 %v374, %v680
      %v689 = vmul.f32 %v375, %v680
      %v690 = vmul.f32 %v376, %v680
      %v691 = vmul.f32 %v377, %v680
      %v692 = vmul.f32 %v378, %v680
      %v693 = vmul.f32 %v379, %v680
      %v694 = vmul.f32 %v380, %v680
      %v695 = vmul.f32 %v381, %v680
      %v696 = vmul.f32 %v382, %v680
      %v697 = vmul.f32 %v383, %v680
      %v698 = vmul.f32 %v384, %v680
      %v699 = vmul.f32 %v385, %v680
      %v700 = vmul.f32 %v386, %v680
      %v701 = vmul.f32 %v387, %v680
      %v702 = vmul.f32 %v388, %v680
      %v703 = vmul.f32 %v389, %v680
      %v704 = vmul.f32 %v390, %v680
      %v705 = vadd.f32 %v653, %v681
      %v706 = vadd.f32 %v654, %v682
      %v707 = vadd.f32 %v655, %v683
      %v708 = vadd.f32 %v656, %v684
      %v709 = vadd.f32 %v657, %v685
      %v710 = vadd.f32 %v658, %v686
      %v711 = vadd.f32 %v659, %v687
      %v712 = vadd.f32 %v660, %v688
      %v713 = vadd.f32 %v661, %v689
      %v714 = vadd.f32 %v662, %v690
      %v715 = vadd.f32 %v663, %v691
      %v716 = vadd.f32 %v664, %v692
      %v717 = vadd.f32 %v665, %v693
      %v718 = vadd.f32 %v666, %v694
      %v719 = vadd.f32 %v667, %v695
      %v720 = vadd.f32 %v668, %v696
      %v721 = vadd.f32 %v669, %v697
      %v722 = vadd.f32 %v670, %v698
      %v723 = vadd.f32 %v671, %v699
      %v724 = vadd.f32 %v672, %v700
      %v725 = vadd.f32 %v673, %v701
      %v726 = vadd.f32 %v674, %v702
      %v727 = vadd.f32 %v675, %v703
      %v728 = vadd.f32 %v676, %v704
      %v729 = vlaneseq
      %v730 = vshrl.u32 %v729, 7
      %v731 = vsub.s32 1, %v730
      %v732 = vrot.slane %v408, %v731
      %v733 = vmul.f32 %v370, %v732
      %v734 = vmul.f32 %v371, %v732
      %v735 = vmul.f32 %v372, %v732
      %v736 = vmul.f32 %v373, %v732
      %v737 = vmul.f32 %v374, %v732
      %v738 = vmul.f32 %v375, %v732
      %v739 = vmul.f32 %v376, %v732
      %v740 = vmul.f32 %v377, %v732
      %v741 = vmul.f32 %v378, %v732
      %v742 = vmul.f32 %v379, %v732
      %v743 = vmul.f32 %v380, %v732
      %v744 = vmul.f32 %v381, %v732
      %v745 = vmul.f32 %v382, %v732
      %v746 = vmul.f32 %v383, %v732
      %v747 = vmul.f32 %v384, %v732
      %v748 = vmul.f32 %v385, %v732
      %v749 = vmul.f32 %v386, %v732
      %v750 = vmul.f32 %v387, %v732
      %v751 = vmul.f32 %v388, %v732
      %v752 = vmul.f32 %v389, %v732
      %v753 = vmul.f32 %v390, %v732
      %v754 = vmul.f32 %v391, %v732
      %v755 = vmul.f32 %v392, %v732
      %v756 = vmul.f32 %v393, %v732
      %v757 = vadd.f32 %v705, %v733
      %v758 = vadd.f32 %v706, %v734
      %v759 = vadd.f32 %v707, %v735
      %v760 = vadd.f32 %v708, %v736
      %v761 = vadd.f32 %v709, %v737
      %v762 = vadd.f32 %v710, %v738
      %v763 = vadd.f32 %v711, %v739
      %v764 = vadd.f32 %v712, %v740
      %v765 = vadd.f32 %v713, %v741
      %v766 = vadd.f32 %v714, %v742
      %v767 = vadd.f32 %v715, %v743
      %v768 = vadd.f32 %v716, %v744
      %v769 = vadd.f32 %v717, %v745
      %v770 = vadd.f32 %v718, %v746
      %v771 = vadd.f32 %v719, %v747
      %v772 = vadd.f32 %v720, %v748
      %v773 = vadd.f32 %v721, %v749
      %v774 = vadd.f32 %v722, %v750
      %v775 = vadd.f32 %v723, %v751
      %v776 = vadd.f32 %v724, %v752
      %v777 = vadd.f32 %v725, %v753
      %v778 = vadd.f32 %v726, %v754
      %v779 = vadd.f32 %v727, %v755
      %v780 = vadd.f32 %v728, %v756
      %v781 = vlaneseq
      %v782 = vshrl.u32 %v781, 7
      %v783 = vsub.s32 1, %v782
      %v784 = vrot.slane %v409, %v783
      %v785 = vmul.f32 %v373, %v784
      %v786 = vmul.f32 %v374, %v784
      %v787 = vmul.f32 %v375, %v784
      %v788 = vmul.f32 %v376, %v784
      %v789 = vmul.f32 %v377, %v784
      %v790 = vmul.f32 %v378, %v784
      %v791 = vmul.f32 %v379, %v784
      %v792 = vmul.f32 %v380, %v784
      %v793 = vmul.f32 %v381, %v784
      %v794 = vmul.f32 %v382, %v784
      %v795 = vmul.f32 %v383, %v784
      %v796 = vmul.f32 %v384, %v784
      %v797 = vmul.f32 %v385, %v784
      %v798 = vmul.f32 %v386, %v784
      %v799 = vmul.f32 %v387, %v784
      %v800 = vmul.f32 %v388, %v784
      %v801 = vmul.f32 %v389, %v784
      %v802 = vmul.f32 %v390, %v784
      %v803 = vmul.f32 %v391, %v784
      %v804 = vmul.f32 %v392, %v784
      %v805 = vmul.f32 %v393, %v784
      %v806 = vmul.f32 %v394, %v784
      %v807 = vmul.f32 %v395, %v784
      %v808 = vmul.f32 %v396, %v784
      %v809 = vadd.f32 %v757, %v785
      %v810 = vadd.f32 %v758, %v786
      %v811 = vadd.f32 %v759, %v787
      %v812 = vadd.f32 %v760, %v788
      %v813 = vadd.f32 %v761, %v789
      %v814 = vadd.f32 %v762, %v790
      %v815 = vadd.f32 %v763, %v791
      %v816 = vadd.f32 %v764, %v792
      %v817 = vadd.f32 %v765, %v793
      %v818 = vadd.f32 %v766, %v794
      %v819 = vadd.f32 %v767, %v795
      %v820 = vadd.f32 %v768, %v796
      %v821 = vadd.f32 %v769, %v797
      %v822 = vadd.f32 %v770, %v798
      %v823 = vadd.f32 %v771, %v799
      %v824 = vadd.f32 %v772, %v800
      %v825 = vadd.f32 %v773, %v801
      %v826 = vadd.f32 %v774, %v802
      %v827 = vadd.f32 %v775, %v803
      %v828 = vadd.f32 %v776, %v804
      %v829 = vadd.f32 %v777, %v805
      %v830 = vadd.f32 %v778, %v806
      %v831 = vadd.f32 %v779, %v807
      %v832 = vadd.f32 %v780, %v808
      %v833 = vlaneseq
      %v834 = vshrl.u32 %v833, 7
      %v835 = vsub.s32 1, %v834
      %v836 = vrot.slane %v410, %v835
      %v837 = vmul.f32 %v376, %v836
      %v838 = vmul.f32 %v377, %v836
      %v839 = vmul.f32 %v378, %v836
      %v840 = vmul.f32 %v379, %v836
      %v841 = vmul.f32 %v380, %v836
      %v842 = vmul.f32 %v381, %v836
      %v843 = vmul.f32 %v382, %v836
      %v844 = vmul.f32 %v383, %v836
      %v845 = vmul.f32 %v384, %v836
      %v846 = vmul.f32 %v385, %v836
      %v847 = vmul.f32 %v386, %v836
      %v848 = vmul.f32 %v387, %v836
      %v849 = vmul.f32 %v388, %v836
      %v850 = vmul.f32 %v389, %v836
      %v851 = vmul.f32 %v390, %v836
      %v852 = vmul.f32 %v391, %v836
      %v853 = vmul.f32 %v392, %v836
      %v854 = vmul.f32 %v393, %v836
      %v855 = vmul.f32 %v394, %v836
      %v856 = vmul.f32 %v395, %v836
      %v857 = vmul.f32 %v396, %v836
      %v858 = vmul.f32 %v397, %v836
      %v859 = vmul.f32 %v398, %v836
      %v860 = vmul.f32 %v399, %v836
      %v861 = vadd.f32 %v809, %v837
      %v862 = vadd.f32 %v810, %v838
      %v863 = vadd.f32 %v811, %v839
      %v864 = vadd.f32 %v812, %v840
      %v865 = vadd.f32 %v813, %v841
      %v866 = vadd.f32 %v814, %v842
      %v867 = vadd.f32 %v815, %v843
      %v868 = vadd.f32 %v816, %v844
      %v869 = vadd.f32 %v817, %v845
      %v870 = vadd.f32 %v818, %v846
      %v871 = vadd.f32 %v819, %v847
      %v872 = vadd.f32 %v820, %v848
      %v873 = vadd.f32 %v821, %v849
      %v874 = vadd.f32 %v822, %v850
      %v875 = vadd.f32 %v823, %v851
      %v876 = vadd.f32 %v824, %v852
      %v877 = vadd.f32 %v825, %v853
      %v878 = vadd.f32 %v826, %v854
      %v879 = vadd.f32 %v827, %v855
      %v880 = vadd.f32 %v828, %v856
      %v881 = vadd.f32 %v829, %v857
      %v882 = vadd.f32 %v830, %v858
      %v883 = vadd.f32 %v831, %v859
      %v884 = vadd.f32 %v832, %v860
      %v885 = vlaneseq
      %v886 = vshrl.u32 %v885, 7
      %v887 = vsub.s32 1, %v886
      %v888 = vrot.slane %v411, %v887
      %v889 = vmul.f32 %v379, %v888
      %v890 = vmul.f32 %v380, %v888
      %v891 = vmul.f32 %v381, %v888
      %v892 = vmul.f32 %v382, %v888
      %v893 = vmul.f32 %v383, %v888
      %v894 = vmul.f32 %v384, %v888
      %v895 = vmul.f32 %v385, %v888
      %v896 = vmul.f32 %v386, %v888
      %v897 = vmul.f32 %v387, %v888
      %v898 = vmul.f32 %v388, %v888
      %v899 = vmul.f32 %v389, %v888
      %v900 = vmul.f32 %v390, %v888
      %v901 = vmul.f32 %v391, %v888
      %v902 = vmul.f32 %v392, %v888
      %v903 = vmul.f32 %v393, %v888
      %v904 = vmul.f32 %v394, %v888
      %v905 = vmul.f32 %v395, %v888
      %v906 = vmul.f32 %v396, %v888
      %v907 = vmul.f32 %v397, %v888
      %v908 = vmul.f32 %v398, %v888
      %v909 = vmul.f32 %v399, %v888
      %v910 = vmul.f32 %v400, %v888
      %v911 = vmul.f32 %v401, %v888
      %v912 = vmul.f32 %v402, %v888
      %v913 = vadd.f32 %v861, %v889
      %v914 = vadd.f32 %v862, %v890
      %v915 = vadd.f32 %v863, %v891
      %v916 = vadd.f32 %v864, %v892
      %v917 = vadd.f32 %v865, %v893
      %v918 = vadd.f32 %v866, %v894
      %v919 = vadd.f32 %v867, %v895
      %v920 = vadd.f32 %v868, %v896
      %v921 = vadd.f32 %v869, %v897
      %v922 = vadd.f32 %v870, %v898
      %v923 = vadd.f32 %v871, %v899
      %v924 = vadd.f32 %v872, %v900
      %v925 = vadd.f32 %v873, %v901
      %v926 = vadd.f32 %v874, %v902
      %v927 = vadd.f32 %v875, %v903
      %v928 = vadd.f32 %v876, %v904
      %v929 = vadd.f32 %v877, %v905
      %v930 = vadd.f32 %v878, %v906
      %v931 = vadd.f32 %v879, %v907
      %v932 = vadd.f32 %v880, %v908
      %v933 = vadd.f32 %v881, %v909
      %v934 = vadd.f32 %v882, %v910
      %v935 = vadd.f32 %v883, %v911
      %v936 = vadd.f32 %v884, %v912
      %v937 = vlaneseq
      %v938 = vshrl.u32 %v937, 7
      %v939 = vsub.s32 1, %v938
      %v940 = vrot.slane %v412, %v939
      %v941 = vmul.f32 %v382, %v940
      %v942 = vmul.f32 %v383, %v940
      %v943 = vmul.f32 %v384, %v940
      %v944 = vmul.f32 %v385, %v940
      %v945 = vmul.f32 %v386, %v940
      %v946 = vmul.f32 %v387, %v940
      %v947 = vmul.f32 %v388, %v940
      %v948 = vmul.f32 %v389, %v940
      %v949 = vmul.f32 %v390, %v940
      %v950 = vmul.f32 %v391, %v940
      %v951 = vmul.f32 %v392, %v940
      %v952 = vmul.f32 %v393, %v940
      %v953 = vmul.f32 %v394, %v940
      %v954 = vmul.f32 %v395, %v940
      %v955 = vmul.f32 %v396, %v940
      %v956 = vmul.f32 %v397, %v940
      %v957 = vmul.f32 %v398, %v940
      %v958 = vmul.f32 %v399, %v940
      %v959 = vmul.f32 %v400, %v940
      %v960 = vmul.f32 %v401, %v940
      %v961 = vmul.f32 %v402, %v940
      %v962 = vmul.f32 %v403, %v940
      %v963 = vmul.f32 %v404, %v940
      %v964 = vmul.f32 %v405, %v940
      %v965 = vadd.f32 %v913, %v941
      %v966 = vadd.f32 %v914, %v942
      %v967 = vadd.f32 %v915, %v943
      %v968 = vadd.f32 %v916, %v944
      %v969 = vadd.f32 %v917, %v945
      %v970 = vadd.f32 %v918, %v946
      %v971 = vadd.f32 %v919, %v947
      %v972 = vadd.f32 %v920, %v948
      %v973 = vadd.f32 %v921, %v949
      %v974 = vadd.f32 %v922, %v950
      %v975 = vadd.f32 %v923, %v951
      %v976 = vadd.f32 %v924, %v952
      %v977 = vadd.f32 %v925, %v953
      %v978 = vadd.f32 %v926, %v954
      %v979 = vadd.f32 %v927, %v955
      %v980 = vadd.f32 %v928, %v956
      %v981 = vadd.f32 %v929, %v957
      %v982 = vadd.f32 %v930, %v958
      %v983 = vadd.f32 %v931, %v959
      %v984 = vadd.f32 %v932, %v960
      %v985 = vadd.f32 %v933, %v961
      %v986 = vadd.f32 %v934, %v962
      %v987 = vadd.f32 %v935, %v963
      %v988 = vadd.f32 %v936, %v964
      %vm1013 = vcmask 1046528
      %v1014 = vrot.slane %v965, 1
      %v1015 = vrot.slane %v966, 1
      %v1016 = vsel %vm1013, %v1014, %v1015
      %v1017 = vrot.slane %v967, 1
      %v1018 = vsel %vm1013, %v1015, %v1017
      %v1019 = vrot.slane %v968, 1
      %v1020 = vrot.slane %v969, 1
      %v1021 = vsel %vm1013, %v1019, %v1020
      %v1022 = vrot.slane %v970, 1
      %v1023 = vsel %vm1013, %v1020, %v1022
      %v1024 = vrot.slane %v971, 1
      %v1025 = vrot.slane %v972, 1
      %v1026 = vsel %vm1013, %v1024, %v1025
      %v1027 = vrot.slane %v973, 1
      %v1028 = vsel %vm1013, %v1025, %v1027
      %v1029 = vrot.slane %v974, 1
      %v1030 = vrot.slane %v975, 1
      %v1031 = vsel %vm1013, %v1029, %v1030
      %v1032 = vrot.slane %v976, 1
      %v1033 = vsel %vm1013, %v1030, %v1032
      %v1034 = vrot.slane %v977, 1
      %v1035 = vrot.slane %v978, 1
      %v1036 = vsel %vm1013, %v1034, %v1035
      %v1037 = vrot.slane %v979, 1
      %v1038 = vsel %vm1013, %v1035, %v1037
      %v1039 = vrot.slane %v980, 1
      %v1040 = vrot.slane %v981, 1
      %v1041 = vsel %vm1013, %v1039, %v1040
      %v1042 = vrot.slane %v982, 1
      %v1043 = vsel %vm1013, %v1040, %v1042
      %v1044 = vrot.slane %v983, 1
      %v1045 = vrot.slane %v984, 1
      %v1046 = vsel %vm1013, %v1044, %v1045
      %v1047 = vrot.slane %v985, 1
      %v1048 = vsel %vm1013, %v1045, %v1047
      %v1049 = vrot.slane %v986, 1
      %v1050 = vrot.slane %v987, 1
      %v1051 = vsel %vm1013, %v1049, %v1050
      %v1052 = vrot.slane %v988, 1
      %v1053 = vsel %vm1013, %v1050, %v1052
      %v1070 = vadd.f32 %v633, %v1016
      %v1071 = vadd.f32 %v634, %v1018
      %v1072 = vadd.f32 %v635, %v1021
      %v1073 = vadd.f32 %v636, %v1023
      %v1074 = vadd.f32 %v637, %v1026
      %v1075 = vadd.f32 %v638, %v1028
      %v1076 = vadd.f32 %v639, %v1031
      %v1077 = vadd.f32 %v640, %v1033
      %v1078 = vadd.f32 %v641, %v1036
      %v1079 = vadd.f32 %v642, %v1038
      %v1080 = vadd.f32 %v643, %v1041
      %v1081 = vadd.f32 %v644, %v1043
      %v1082 = vadd.f32 %v645, %v1046
      %v1083 = vadd.f32 %v646, %v1048
      %v1084 = vadd.f32 %v647, %v1051
      %v1085 = vadd.f32 %v648, %v1053
      %v1086 = vlaneseq
      %v1087 = vshrl.u32 %v1086, 7
      %v1088 = vsub.s32 2, %v1087
      %v1089 = vrot.slane %v406, %v1088
      %v1090 = vmul.f32 %v364, %v1089
      %v1091 = vmul.f32 %v365, %v1089
      %v1092 = vmul.f32 %v366, %v1089
      %v1093 = vmul.f32 %v367, %v1089
      %v1094 = vmul.f32 %v368, %v1089
      %v1095 = vmul.f32 %v369, %v1089
      %v1096 = vmul.f32 %v370, %v1089
      %v1097 = vmul.f32 %v371, %v1089
      %v1098 = vmul.f32 %v372, %v1089
      %v1099 = vmul.f32 %v373, %v1089
      %v1100 = vmul.f32 %v374, %v1089
      %v1101 = vmul.f32 %v375, %v1089
      %v1102 = vmul.f32 %v376, %v1089
      %v1103 = vmul.f32 %v377, %v1089
      %v1104 = vmul.f32 %v378, %v1089
      %v1105 = vmul.f32 %v379, %v1089
      %v1106 = vmul.f32 %v380, %v1089
      %v1107 = vmul.f32 %v381, %v1089
      %v1108 = vmul.f32 %v382, %v1089
      %v1109 = vmul.f32 %v383, %v1089
      %v1110 = vmul.f32 %v384, %v1089
      %v1111 = vmul.f32 %v385, %v1089
      %v1112 = vmul.f32 %v386, %v1089
      %v1113 = vmul.f32 %v387, %v1089
      %v1114 = vlaneseq
      %v1115 = vshrl.u32 %v1114, 7
      %v1116 = vsub.s32 2, %v1115
      %v1117 = vrot.slane %v407, %v1116
      %v1118 = vmul.f32 %v367, %v1117
      %v1119 = vmul.f32 %v368, %v1117
      %v1120 = vmul.f32 %v369, %v1117
      %v1121 = vmul.f32 %v370, %v1117
      %v1122 = vmul.f32 %v371, %v1117
      %v1123 = vmul.f32 %v372, %v1117
      %v1124 = vmul.f32 %v373, %v1117
      %v1125 = vmul.f32 %v374, %v1117
      %v1126 = vmul.f32 %v375, %v1117
      %v1127 = vmul.f32 %v376, %v1117
      %v1128 = vmul.f32 %v377, %v1117
      %v1129 = vmul.f32 %v378, %v1117
      %v1130 = vmul.f32 %v379, %v1117
      %v1131 = vmul.f32 %v380, %v1117
      %v1132 = vmul.f32 %v381, %v1117
      %v1133 = vmul.f32 %v382, %v1117
      %v1134 = vmul.f32 %v383, %v1117
      %v1135 = vmul.f32 %v384, %v1117
      %v1136 = vmul.f32 %v385, %v1117
      %v1137 = vmul.f32 %v386, %v1117
      %v1138 = vmul.f32 %v387, %v1117
      %v1139 = vmul.f32 %v388, %v1117
      %v1140 = vmul.f32 %v389, %v1117
      %v1141 = vmul.f32 %v390, %v1117
      %v1142 = vadd.f32 %v1090, %v1118
      %v1143 = vadd.f32 %v1091, %v1119
      %v1144 = vadd.f32 %v1092, %v1120
      %v1145 = vadd.f32 %v1093, %v1121
      %v1146 = vadd.f32 %v1094, %v1122
      %v1147 = vadd.f32 %v1095, %v1123
      %v1148 = vadd.f32 %v1096, %v1124
      %v1149 = vadd.f32 %v1097, %v1125
      %v1150 = vadd.f32 %v1098, %v1126
      %v1151 = vadd.f32 %v1099, %v1127
      %v1152 = vadd.f32 %v1100, %v1128
      %v1153 = vadd.f32 %v1101, %v1129
      %v1154 = vadd.f32 %v1102, %v1130
      %v1155 = vadd.f32 %v1103, %v1131
      %v1156 = vadd.f32 %v1104, %v1132
      %v1157 = vadd.f32 %v1105, %v1133
      %v1158 = vadd.f32 %v1106, %v1134
      %v1159 = vadd.f32 %v1107, %v1135
      %v1160 = vadd.f32 %v1108, %v1136
      %v1161 = vadd.f32 %v1109, %v1137
      %v1162 = vadd.f32 %v1110, %v1138
      %v1163 = vadd.f32 %v1111, %v1139
      %v1164 = vadd.f32 %v1112, %v1140
      %v1165 = vadd.f32 %v1113, %v1141
      %v1166 = vlaneseq
      %v1167 = vshrl.u32 %v1166, 7
      %v1168 = vsub.s32 2, %v1167
      %v1169 = vrot.slane %v408, %v1168
      %v1170 = vmul.f32 %v370, %v1169
      %v1171 = vmul.f32 %v371, %v1169
      %v1172 = vmul.f32 %v372, %v1169
      %v1173 = vmul.f32 %v373, %v1169
      %v1174 = vmul.f32 %v374, %v1169
      %v1175 = vmul.f32 %v375, %v1169
      %v1176 = vmul.f32 %v376, %v1169
      %v1177 = vmul.f32 %v377, %v1169
      %v1178 = vmul.f32 %v378, %v1169
      %v1179 = vmul.f32 %v379, %v1169
      %v1180 = vmul.f32 %v380, %v1169
      %v1181 = vmul.f32 %v381, %v1169
      %v1182 = vmul.f32 %v382, %v1169
      %v1183 = vmul.f32 %v383, %v1169
      %v1184 = vmul.f32 %v384, %v1169
      %v1185 = vmul.f32 %v385, %v1169
      %v1186 = vmul.f32 %v386, %v1169
      %v1187 = vmul.f32 %v387, %v1169
      %v1188 = vmul.f32 %v388, %v1169
      %v1189 = vmul.f32 %v389, %v1169
      %v1190 = vmul.f32 %v390, %v1169
      %v1191 = vmul.f32 %v391, %v1169
      %v1192 = vmul.f32 %v392, %v1169
      %v1193 = vmul.f32 %v393, %v1169
      %v1194 = vadd.f32 %v1142, %v1170
      %v1195 = vadd.f32 %v1143, %v1171
      %v1196 = vadd.f32 %v1144, %v1172
      %v1197 = vadd.f32 %v1145, %v1173
      %v1198 = vadd.f32 %v1146, %v1174
      %v1199 = vadd.f32 %v1147, %v1175
      %v1200 = vadd.f32 %v1148, %v1176
      %v1201 = vadd.f32 %v1149, %v1177
      %v1202 = vadd.f32 %v1150, %v1178
      %v1203 = vadd.f32 %v1151, %v1179
      %v1204 = vadd.f32 %v1152, %v1180
      %v1205 = vadd.f32 %v1153, %v1181
      %v1206 = vadd.f32 %v1154, %v1182
      %v1207 = vadd.f32 %v1155, %v1183
      %v1208 = vadd.f32 %v1156, %v1184
      %v1209 = vadd.f32 %v1157, %v1185
      %v1210 = vadd.f32 %v1158, %v1186
      %v1211 = vadd.f32 %v1159, %v1187
      %v1212 = vadd.f32 %v1160, %v1188
      %v1213 = vadd.f32 %v1161, %v1189
      %v1214 = vadd.f32 %v1162, %v1190
      %v1215 = vadd.f32 %v1163, %v1191
      %v1216 = vadd.f32 %v1164, %v1192
      %v1217 = vadd.f32 %v1165, %v1193
      %v1218 = vlaneseq
      %v1219 = vshrl.u32 %v1218, 7
      %v1220 = vsub.s32 2, %v1219
      %v1221 = vrot.slane %v409, %v1220
      %v1222 = vmul.f32 %v373, %v1221
      %v1223 = vmul.f32 %v374, %v1221
      %v1224 = vmul.f32 %v375, %v1221
      %v1225 = vmul.f32 %v376, %v1221
      %v1226 = vmul.f32 %v377, %v1221
      %v1227 = vmul.f32 %v378, %v1221
      %v1228 = vmul.f32 %v379, %v1221
      %v1229 = vmul.f32 %v380, %v1221
      %v1230 = vmul.f32 %v381, %v1221
      %v1231 = vmul.f32 %v382, %v1221
      %v1232 = vmul.f32 %v383, %v1221
      %v1233 = vmul.f32 %v384, %v1221
      %v1234 = vmul.f32 %v385, %v1221
      %v1235 = vmul.f32 %v386, %v1221
      %v1236 = vmul.f32 %v387, %v1221
      %v1237 = vmul.f32 %v388, %v1221
      %v1238 = vmul.f32 %v389, %v1221
      %v1239 = vmul.f32 %v390, %v1221
      %v1240 = vmul.f32 %v391, %v1221
      %v1241 = vmul.f32 %v392, %v1221
      %v1242 = vmul.f32 %v393, %v1221
      %v1243 = vmul.f32 %v394, %v1221
      %v1244 = vmul.f32 %v395, %v1221
      %v1245 = vmul.f32 %v396, %v1221
      %v1246 = vadd.f32 %v1194, %v1222
      %v1247 = vadd.f32 %v1195, %v1223
      %v1248 = vadd.f32 %v1196, %v1224
      %v1249 = vadd.f32 %v1197, %v1225
      %v1250 = vadd.f32 %v1198, %v1226
      %v1251 = vadd.f32 %v1199, %v1227
      %v1252 = vadd.f32 %v1200, %v1228
      %v1253 = vadd.f32 %v1201, %v1229
      %v1254 = vadd.f32 %v1202, %v1230
      %v1255 = vadd.f32 %v1203, %v1231
      %v1256 = vadd.f32 %v1204, %v1232
      %v1257 = vadd.f32 %v1205, %v1233
      %v1258 = vadd.f32 %v1206, %v1234
      %v1259 = vadd.f32 %v1207, %v1235
      %v1260 = vadd.f32 %v1208, %v1236
      %v1261 = vadd.f32 %v1209, %v1237
      %v1262 = vadd.f32 %v1210, %v1238
      %v1263 = vadd.f32 %v1211, %v1239
      %v1264 = vadd.f32 %v1212, %v1240
      %v1265 = vadd.f32 %v1213, %v1241
      %v1266 = vadd.f32 %v1214, %v1242
      %v1267 = vadd.f32 %v1215, %v1243
      %v1268 = vadd.f32 %v1216, %v1244
      %v1269 = vadd.f32 %v1217, %v1245
      %v1270 = vlaneseq
      %v1271 = vshrl.u32 %v1270, 7
      %v1272 = vsub.s32 2, %v1271
      %v1273 = vrot.slane %v410, %v1272
      %v1274 = vmul.f32 %v376, %v1273
      %v1275 = vmul.f32 %v377, %v1273
      %v1276 = vmul.f32 %v378, %v1273
      %v1277 = vmul.f32 %v379, %v1273
      %v1278 = vmul.f32 %v380, %v1273
      %v1279 = vmul.f32 %v381, %v1273
      %v1280 = vmul.f32 %v382, %v1273
      %v1281 = vmul.f32 %v383, %v1273
      %v1282 = vmul.f32 %v384, %v1273
      %v1283 = vmul.f32 %v385, %v1273
      %v1284 = vmul.f32 %v386, %v1273
      %v1285 = vmul.f32 %v387, %v1273
      %v1286 = vmul.f32 %v388, %v1273
      %v1287 = vmul.f32 %v389, %v1273
      %v1288 = vmul.f32 %v390, %v1273
      %v1289 = vmul.f32 %v391, %v1273
      %v1290 = vmul.f32 %v392, %v1273
      %v1291 = vmul.f32 %v393, %v1273
      %v1292 = vmul.f32 %v394, %v1273
      %v1293 = vmul.f32 %v395, %v1273
      %v1294 = vmul.f32 %v396, %v1273
      %v1295 = vmul.f32 %v397, %v1273
      %v1296 = vmul.f32 %v398, %v1273
      %v1297 = vmul.f32 %v399, %v1273
      %v1298 = vadd.f32 %v1246, %v1274
      %v1299 = vadd.f32 %v1247, %v1275
      %v1300 = vadd.f32 %v1248, %v1276
      %v1301 = vadd.f32 %v1249, %v1277
      %v1302 = vadd.f32 %v1250, %v1278
      %v1303 = vadd.f32 %v1251, %v1279
      %v1304 = vadd.f32 %v1252, %v1280
      %v1305 = vadd.f32 %v1253, %v1281
      %v1306 = vadd.f32 %v1254, %v1282
      %v1307 = vadd.f32 %v1255, %v1283
      %v1308 = vadd.f32 %v1256, %v1284
      %v1309 = vadd.f32 %v1257, %v1285
      %v1310 = vadd.f32 %v1258, %v1286
      %v1311 = vadd.f32 %v1259, %v1287
      %v1312 = vadd.f32 %v1260, %v1288
      %v1313 = vadd.f32 %v1261, %v1289
      %v1314 = vadd.f32 %v1262, %v1290
      %v1315 = vadd.f32 %v1263, %v1291
      %v1316 = vadd.f32 %v1264, %v1292
      %v1317 = vadd.f32 %v1265, %v1293
      %v1318 = vadd.f32 %v1266, %v1294
      %v1319 = vadd.f32 %v1267, %v1295
      %v1320 = vadd.f32 %v1268, %v1296
      %v1321 = vadd.f32 %v1269, %v1297
      %v1322 = vlaneseq
      %v1323 = vshrl.u32 %v1322, 7
      %v1324 = vsub.s32 2, %v1323
      %v1325 = vrot.slane %v411, %v1324
      %v1326 = vmul.f32 %v379, %v1325
      %v1327 = vmul.f32 %v380, %v1325
      %v1328 = vmul.f32 %v381, %v1325
      %v1329 = vmul.f32 %v382, %v1325
      %v1330 = vmul.f32 %v383, %v1325
      %v1331 = vmul.f32 %v384, %v1325
      %v1332 = vmul.f32 %v385, %v1325
      %v1333 = vmul.f32 %v386, %v1325
      %v1334 = vmul.f32 %v387, %v1325
      %v1335 = vmul.f32 %v388, %v1325
      %v1336 = vmul.f32 %v389, %v1325
      %v1337 = vmul.f32 %v390, %v1325
      %v1338 = vmul.f32 %v391, %v1325
      %v1339 = vmul.f32 %v392, %v1325
      %v1340 = vmul.f32 %v393, %v1325
      %v1341 = vmul.f32 %v394, %v1325
      %v1342 = vmul.f32 %v395, %v1325
      %v1343 = vmul.f32 %v396, %v1325
      %v1344 = vmul.f32 %v397, %v1325
      %v1345 = vmul.f32 %v398, %v1325
      %v1346 = vmul.f32 %v399, %v1325
      %v1347 = vmul.f32 %v400, %v1325
      %v1348 = vmul.f32 %v401, %v1325
      %v1349 = vmul.f32 %v402, %v1325
      %v1350 = vadd.f32 %v1298, %v1326
      %v1351 = vadd.f32 %v1299, %v1327
      %v1352 = vadd.f32 %v1300, %v1328
      %v1353 = vadd.f32 %v1301, %v1329
      %v1354 = vadd.f32 %v1302, %v1330
      %v1355 = vadd.f32 %v1303, %v1331
      %v1356 = vadd.f32 %v1304, %v1332
      %v1357 = vadd.f32 %v1305, %v1333
      %v1358 = vadd.f32 %v1306, %v1334
      %v1359 = vadd.f32 %v1307, %v1335
      %v1360 = vadd.f32 %v1308, %v1336
      %v1361 = vadd.f32 %v1309, %v1337
      %v1362 = vadd.f32 %v1310, %v1338
      %v1363 = vadd.f32 %v1311, %v1339
      %v1364 = vadd.f32 %v1312, %v1340
      %v1365 = vadd.f32 %v1313, %v1341
      %v1366 = vadd.f32 %v1314, %v1342
      %v1367 = vadd.f32 %v1315, %v1343
      %v1368 = vadd.f32 %v1316, %v1344
      %v1369 = vadd.f32 %v1317, %v1345
      %v1370 = vadd.f32 %v1318, %v1346
      %v1371 = vadd.f32 %v1319, %v1347
      %v1372 = vadd.f32 %v1320, %v1348
      %v1373 = vadd.f32 %v1321, %v1349
      %v1374 = vlaneseq
      %v1375 = vshrl.u32 %v1374, 7
      %v1376 = vsub.s32 2, %v1375
      %v1377 = vrot.slane %v412, %v1376
      %v1378 = vmul.f32 %v382, %v1377
      %v1379 = vmul.f32 %v383, %v1377
      %v1380 = vmul.f32 %v384, %v1377
      %v1381 = vmul.f32 %v385, %v1377
      %v1382 = vmul.f32 %v386, %v1377
      %v1383 = vmul.f32 %v387, %v1377
      %v1384 = vmul.f32 %v388, %v1377
      %v1385 = vmul.f32 %v389, %v1377
      %v1386 = vmul.f32 %v390, %v1377
      %v1387 = vmul.f32 %v391, %v1377
      %v1388 = vmul.f32 %v392, %v1377
      %v1389 = vmul.f32 %v393, %v1377
      %v1390 = vmul.f32 %v394, %v1377
      %v1391 = vmul.f32 %v395, %v1377
      %v1392 = vmul.f32 %v396, %v1377
      %v1393 = vmul.f32 %v397, %v1377
      %v1394 = vmul.f32 %v398, %v1377
      %v1395 = vmul.f32 %v399, %v1377
      %v1396 = vmul.f32 %v400, %v1377
      %v1397 = vmul.f32 %v401, %v1377
      %v1398 = vmul.f32 %v402, %v1377
      %v1399 = vmul.f32 %v403, %v1377
      %v1400 = vmul.f32 %v404, %v1377
      %v1401 = vmul.f32 %v405, %v1377
      %v1402 = vadd.f32 %v1350, %v1378
      %v1403 = vadd.f32 %v1351, %v1379
      %v1404 = vadd.f32 %v1352, %v1380
      %v1405 = vadd.f32 %v1353, %v1381
      %v1406 = vadd.f32 %v1354, %v1382
      %v1407 = vadd.f32 %v1355, %v1383
      %v1408 = vadd.f32 %v1356, %v1384
      %v1409 = vadd.f32 %v1357, %v1385
      %v1410 = vadd.f32 %v1358, %v1386
      %v1411 = vadd.f32 %v1359, %v1387
      %v1412 = vadd.f32 %v1360, %v1388
      %v1413 = vadd.f32 %v1361, %v1389
      %v1414 = vadd.f32 %v1362, %v1390
      %v1415 = vadd.f32 %v1363, %v1391
      %v1416 = vadd.f32 %v1364, %v1392
      %v1417 = vadd.f32 %v1365, %v1393
      %v1418 = vadd.f32 %v1366, %v1394
      %v1419 = vadd.f32 %v1367, %v1395
      %v1420 = vadd.f32 %v1368, %v1396
      %v1421 = vadd.f32 %v1369, %v1397
      %v1422 = vadd.f32 %v1370, %v1398
      %v1423 = vadd.f32 %v1371, %v1399
      %v1424 = vadd.f32 %v1372, %v1400
      %v1425 = vadd.f32 %v1373, %v1401
      %vm1450 = vcmask 1045504
      %v1451 = vrot.slane %v1402, 2
      %v1452 = vrot.slane %v1403, 2
      %v1453 = vsel %vm1450, %v1451, %v1452
      %v1454 = vrot.slane %v1404, 2
      %v1455 = vsel %vm1450, %v1452, %v1454
      %v1456 = vrot.slane %v1405, 2
      %v1457 = vrot.slane %v1406, 2
      %v1458 = vsel %vm1450, %v1456, %v1457
      %v1459 = vrot.slane %v1407, 2
      %v1460 = vsel %vm1450, %v1457, %v1459
      %v1461 = vrot.slane %v1408, 2
      %v1462 = vrot.slane %v1409, 2
      %v1463 = vsel %vm1450, %v1461, %v1462
      %v1464 = vrot.slane %v1410, 2
      %v1465 = vsel %vm1450, %v1462, %v1464
      %v1466 = vrot.slane %v1411, 2
      %v1467 = vrot.slane %v1412, 2
      %v1468 = vsel %vm1450, %v1466, %v1467
      %v1469 = vrot.slane %v1413, 2
      %v1470 = vsel %vm1450, %v1467, %v1469
      %v1471 = vrot.slane %v1414, 2
      %v1472 = vrot.slane %v1415, 2
      %v1473 = vsel %vm1450, %v1471, %v1472
      %v1474 = vrot.slane %v1416, 2
      %v1475 = vsel %vm1450, %v1472, %v1474
      %v1476 = vrot.slane %v1417, 2
      %v1477 = vrot.slane %v1418, 2
      %v1478 = vsel %vm1450, %v1476, %v1477
      %v1479 = vrot.slane %v1419, 2
      %v1480 = vsel %vm1450, %v1477, %v1479
      %v1481 = vrot.slane %v1420, 2
      %v1482 = vrot.slane %v1421, 2
      %v1483 = vsel %vm1450, %v1481, %v1482
      %v1484 = vrot.slane %v1422, 2
      %v1485 = vsel %vm1450, %v1482, %v1484
      %v1486 = vrot.slane %v1423, 2
      %v1487 = vrot.slane %v1424, 2
      %v1488 = vsel %vm1450, %v1486, %v1487
      %v1489 = vrot.slane %v1425, 2
      %v1490 = vsel %vm1450, %v1487, %v1489
      %v1507 = vadd.f32 %v1070, %v1453
      %v1508 = vadd.f32 %v1071, %v1455
      %v1509 = vadd.f32 %v1072, %v1458
      %v1510 = vadd.f32 %v1073, %v1460
      %v1511 = vadd.f32 %v1074, %v1463
      %v1512 = vadd.f32 %v1075, %v1465
      %v1513 = vadd.f32 %v1076, %v1468
      %v1514 = vadd.f32 %v1077, %v1470
      %v1515 = vadd.f32 %v1078, %v1473
      %v1516 = vadd.f32 %v1079, %v1475
      %v1517 = vadd.f32 %v1080, %v1478
      %v1518 = vadd.f32 %v1081, %v1480
      %v1519 = vadd.f32 %v1082, %v1483
      %v1520 = vadd.f32 %v1083, %v1485
      %v1521 = vadd.f32 %v1084, %v1488
      %v1522 = vadd.f32 %v1085, %v1490
      %v1523 = vlaneseq
      %v1524 = vshrl.u32 %v1523, 7
      %v1525 = vsub.s32 3, %v1524
      %v1526 = vrot.slane %v406, %v1525
      %v1527 = vmul.f32 %v364, %v1526
      %v1528 = vmul.f32 %v365, %v1526
      %v1529 = vmul.f32 %v366, %v1526
      %v1530 = vmul.f32 %v367, %v1526
      %v1531 = vmul.f32 %v368, %v1526
      %v1532 = vmul.f32 %v369, %v1526
      %v1533 = vmul.f32 %v370, %v1526
      %v1534 = vmul.f32 %v371, %v1526
      %v1535 = vmul.f32 %v372, %v1526
      %v1536 = vmul.f32 %v373, %v1526
      %v1537 = vmul.f32 %v374, %v1526
      %v1538 = vmul.f32 %v375, %v1526
      %v1539 = vmul.f32 %v376, %v1526
      %v1540 = vmul.f32 %v377, %v1526
      %v1541 = vmul.f32 %v378, %v1526
      %v1542 = vmul.f32 %v379, %v1526
      %v1543 = vmul.f32 %v380, %v1526
      %v1544 = vmul.f32 %v381, %v1526
      %v1545 = vmul.f32 %v382, %v1526
      %v1546 = vmul.f32 %v383, %v1526
      %v1547 = vmul.f32 %v384, %v1526
      %v1548 = vmul.f32 %v385, %v1526
      %v1549 = vmul.f32 %v386, %v1526
      %v1550 = vmul.f32 %v387, %v1526
      %v1551 = vlaneseq
      %v1552 = vshrl.u32 %v1551, 7
      %v1553 = vsub.s32 3, %v1552
      %v1554 = vrot.slane %v407, %v1553
      %v1555 = vmul.f32 %v367, %v1554
      %v1556 = vmul.f32 %v368, %v1554
      %v1557 = vmul.f32 %v369, %v1554
      %v1558 = vmul.f32 %v370, %v1554
      %v1559 = vmul.f32 %v371, %v1554
      %v1560 = vmul.f32 %v372, %v1554
      %v1561 = vmul.f32 %v373, %v1554
      %v1562 = vmul.f32 %v374, %v1554
      %v1563 = vmul.f32 %v375, %v1554
      %v1564 = vmul.f32 %v376, %v1554
      %v1565 = vmul.f32 %v377, %v1554
      %v1566 = vmul.f32 %v378, %v1554
      %v1567 = vmul.f32 %v379, %v1554
      %v1568 = vmul.f32 %v380, %v1554
      %v1569 = vmul.f32 %v381, %v1554
      %v1570 = vmul.f32 %v382, %v1554
      %v1571 = vmul.f32 %v383, %v1554
      %v1572 = vmul.f32 %v384, %v1554
      %v1573 = vmul.f32 %v385, %v1554
      %v1574 = vmul.f32 %v386, %v1554
      %v1575 = vmul.f32 %v387, %v1554
      %v1576 = vmul.f32 %v388, %v1554
      %v1577 = vmul.f32 %v389, %v1554
      %v1578 = vmul.f32 %v390, %v1554
      %v1579 = vadd.f32 %v1527, %v1555
      %v1580 = vadd.f32 %v1528, %v1556
      %v1581 = vadd.f32 %v1529, %v1557
      %v1582 = vadd.f32 %v1530, %v1558
      %v1583 = vadd.f32 %v1531, %v1559
      %v1584 = vadd.f32 %v1532, %v1560
      %v1585 = vadd.f32 %v1533, %v1561
      %v1586 = vadd.f32 %v1534, %v1562
      %v1587 = vadd.f32 %v1535, %v1563
      %v1588 = vadd.f32 %v1536, %v1564
      %v1589 = vadd.f32 %v1537, %v1565
      %v1590 = vadd.f32 %v1538, %v1566
      %v1591 = vadd.f32 %v1539, %v1567
      %v1592 = vadd.f32 %v1540, %v1568
      %v1593 = vadd.f32 %v1541, %v1569
      %v1594 = vadd.f32 %v1542, %v1570
      %v1595 = vadd.f32 %v1543, %v1571
      %v1596 = vadd.f32 %v1544, %v1572
      %v1597 = vadd.f32 %v1545, %v1573
      %v1598 = vadd.f32 %v1546, %v1574
      %v1599 = vadd.f32 %v1547, %v1575
      %v1600 = vadd.f32 %v1548, %v1576
      %v1601 = vadd.f32 %v1549, %v1577
      %v1602 = vadd.f32 %v1550, %v1578
      %v1603 = vlaneseq
      %v1604 = vshrl.u32 %v1603, 7
      %v1605 = vsub.s32 3, %v1604
      %v1606 = vrot.slane %v408, %v1605
      %v1607 = vmul.f32 %v370, %v1606
      %v1608 = vmul.f32 %v371, %v1606
      %v1609 = vmul.f32 %v372, %v1606
      %v1610 = vmul.f32 %v373, %v1606
      %v1611 = vmul.f32 %v374, %v1606
      %v1612 = vmul.f32 %v375, %v1606
      %v1613 = vmul.f32 %v376, %v1606
      %v1614 = vmul.f32 %v377, %v1606
      %v1615 = vmul.f32 %v378, %v1606
      %v1616 = vmul.f32 %v379, %v1606
      %v1617 = vmul.f32 %v380, %v1606
      %v1618 = vmul.f32 %v381, %v1606
      %v1619 = vmul.f32 %v382, %v1606
      %v1620 = vmul.f32 %v383, %v1606
      %v1621 = vmul.f32 %v384, %v1606
      %v1622 = vmul.f32 %v385, %v1606
      %v1623 = vmul.f32 %v386, %v1606
      %v1624 = vmul.f32 %v387, %v1606
      %v1625 = vmul.f32 %v388, %v1606
      %v1626 = vmul.f32 %v389, %v1606
      %v1627 = vmul.f32 %v390, %v1606
      %v1628 = vmul.f32 %v391, %v1606
      %v1629 = vmul.f32 %v392, %v1606
      %v1630 = vmul.f32 %v393, %v1606
      %v1631 = vadd.f32 %v1579, %v1607
      %v1632 = vadd.f32 %v1580, %v1608
      %v1633 = vadd.f32 %v1581, %v1609
      %v1634 = vadd.f32 %v1582, %v1610
      %v1635 = vadd.f32 %v1583, %v1611
      %v1636 = vadd.f32 %v1584, %v1612
      %v1637 = vadd.f32 %v1585, %v1613
      %v1638 = vadd.f32 %v1586, %v1614
      %v1639 = vadd.f32 %v1587, %v1615
      %v1640 = vadd.f32 %v1588, %v1616
      %v1641 = vadd.f32 %v1589, %v1617
      %v1642 = vadd.f32 %v1590, %v1618
      %v1643 = vadd.f32 %v1591, %v1619
      %v1644 = vadd.f32 %v1592, %v1620
      %v1645 = vadd.f32 %v1593, %v1621
      %v1646 = vadd.f32 %v1594, %v1622
      %v1647 = vadd.f32 %v1595, %v1623
      %v1648 = vadd.f32 %v1596, %v1624
      %v1649 = vadd.f32 %v1597, %v1625
      %v1650 = vadd.f32 %v1598, %v1626
      %v1651 = vadd.f32 %v1599, %v1627
      %v1652 = vadd.f32 %v1600, %v1628
      %v1653 = vadd.f32 %v1601, %v1629
      %v1654 = vadd.f32 %v1602, %v1630
      %v1655 = vlaneseq
      %v1656 = vshrl.u32 %v1655, 7
      %v1657 = vsub.s32 3, %v1656
      %v1658 = vrot.slane %v409, %v1657
      %v1659 = vmul.f32 %v373, %v1658
      %v1660 = vmul.f32 %v374, %v1658
      %v1661 = vmul.f32 %v375, %v1658
      %v1662 = vmul.f32 %v376, %v1658
      %v1663 = vmul.f32 %v377, %v1658
      %v1664 = vmul.f32 %v378, %v1658
      %v1665 = vmul.f32 %v379, %v1658
      %v1666 = vmul.f32 %v380, %v1658
      %v1667 = vmul.f32 %v381, %v1658
      %v1668 = vmul.f32 %v382, %v1658
      %v1669 = vmul.f32 %v383, %v1658
      %v1670 = vmul.f32 %v384, %v1658
      %v1671 = vmul.f32 %v385, %v1658
      %v1672 = vmul.f32 %v386, %v1658
      %v1673 = vmul.f32 %v387, %v1658
      %v1674 = vmul.f32 %v388, %v1658
      %v1675 = vmul.f32 %v389, %v1658
      %v1676 = vmul.f32 %v390, %v1658
      %v1677 = vmul.f32 %v391, %v1658
      %v1678 = vmul.f32 %v392, %v1658
      %v1679 = vmul.f32 %v393, %v1658
      %v1680 = vmul.f32 %v394, %v1658
      %v1681 = vmul.f32 %v395, %v1658
      %v1682 = vmul.f32 %v396, %v1658
      %v1683 = vadd.f32 %v1631, %v1659
      %v1684 = vadd.f32 %v1632, %v1660
      %v1685 = vadd.f32 %v1633, %v1661
      %v1686 = vadd.f32 %v1634, %v1662
      %v1687 = vadd.f32 %v1635, %v1663
      %v1688 = vadd.f32 %v1636, %v1664
      %v1689 = vadd.f32 %v1637, %v1665
      %v1690 = vadd.f32 %v1638, %v1666
      %v1691 = vadd.f32 %v1639, %v1667
      %v1692 = vadd.f32 %v1640, %v1668
      %v1693 = vadd.f32 %v1641, %v1669
      %v1694 = vadd.f32 %v1642, %v1670
      %v1695 = vadd.f32 %v1643, %v1671
      %v1696 = vadd.f32 %v1644, %v1672
      %v1697 = vadd.f32 %v1645, %v1673
      %v1698 = vadd.f32 %v1646, %v1674
      %v1699 = vadd.f32 %v1647, %v1675
      %v1700 = vadd.f32 %v1648, %v1676
      %v1701 = vadd.f32 %v1649, %v1677
      %v1702 = vadd.f32 %v1650, %v1678
      %v1703 = vadd.f32 %v1651, %v1679
      %v1704 = vadd.f32 %v1652, %v1680
      %v1705 = vadd.f32 %v1653, %v1681
      %v1706 = vadd.f32 %v1654, %v1682
      %v1707 = vlaneseq
      %v1708 = vshrl.u32 %v1707, 7
      %v1709 = vsub.s32 3, %v1708
      %v1710 = vrot.slane %v410, %v1709
      %v1711 = vmul.f32 %v376, %v1710
      %v1712 = vmul.f32 %v377, %v1710
      %v1713 = vmul.f32 %v378, %v1710
      %v1714 = vmul.f32 %v379, %v1710
      %v1715 = vmul.f32 %v380, %v1710
      %v1716 = vmul.f32 %v381, %v1710
      %v1717 = vmul.f32 %v382, %v1710
      %v1718 = vmul.f32 %v383, %v1710
      %v1719 = vmul.f32 %v384, %v1710
      %v1720 = vmul.f32 %v385, %v1710
      %v1721 = vmul.f32 %v386, %v1710
      %v1722 = vmul.f32 %v387, %v1710
      %v1723 = vmul.f32 %v388, %v1710
      %v1724 = vmul.f32 %v389, %v1710
      %v1725 = vmul.f32 %v390, %v1710
      %v1726 = vmul.f32 %v391, %v1710
      %v1727 = vmul.f32 %v392, %v1710
      %v1728 = vmul.f32 %v393, %v1710
      %v1729 = vmul.f32 %v394, %v1710
      %v1730 = vmul.f32 %v395, %v1710
      %v1731 = vmul.f32 %v396, %v1710
      %v1732 = vmul.f32 %v397, %v1710
      %v1733 = vmul.f32 %v398, %v1710
      %v1734 = vmul.f32 %v399, %v1710
      %v1735 = vadd.f32 %v1683, %v1711
      %v1736 = vadd.f32 %v1684, %v1712
      %v1737 = vadd.f32 %v1685, %v1713
      %v1738 = vadd.f32 %v1686, %v1714
      %v1739 = vadd.f32 %v1687, %v1715
      %v1740 = vadd.f32 %v1688, %v1716
      %v1741 = vadd.f32 %v1689, %v1717
      %v1742 = vadd.f32 %v1690, %v1718
      %v1743 = vadd.f32 %v1691, %v1719
      %v1744 = vadd.f32 %v1692, %v1720
      %v1745 = vadd.f32 %v1693, %v1721
      %v1746 = vadd.f32 %v1694, %v1722
      %v1747 = vadd.f32 %v1695, %v1723
      %v1748 = vadd.f32 %v1696, %v1724
      %v1749 = vadd.f32 %v1697, %v1725
      %v1750 = vadd.f32 %v1698, %v1726
      %v1751 = vadd.f32 %v1699, %v1727
      %v1752 = vadd.f32 %v1700, %v1728
      %v1753 = vadd.f32 %v1701, %v1729
      %v1754 = vadd.f32 %v1702, %v1730
      %v1755 = vadd.f32 %v1703, %v1731
      %v1756 = vadd.f32 %v1704, %v1732
      %v1757 = vadd.f32 %v1705, %v1733
      %v1758 = vadd.f32 %v1706, %v1734
      %v1759 = vlaneseq
      %v1760 = vshrl.u32 %v1759, 7
      %v1761 = vsub.s32 3, %v1760
      %v1762 = vrot.slane %v411, %v1761
      %v1763 = vmul.f32 %v379, %v1762
      %v1764 = vmul.f32 %v380, %v1762
      %v1765 = vmul.f32 %v381, %v1762
      %v1766 = vmul.f32 %v382, %v1762
      %v1767 = vmul.f32 %v383, %v1762
      %v1768 = vmul.f32 %v384, %v1762
      %v1769 = vmul.f32 %v385, %v1762
      %v1770 = vmul.f32 %v386, %v1762
      %v1771 = vmul.f32 %v387, %v1762
      %v1772 = vmul.f32 %v388, %v1762
      %v1773 = vmul.f32 %v389, %v1762
      %v1774 = vmul.f32 %v390, %v1762
      %v1775 = vmul.f32 %v391, %v1762
      %v1776 = vmul.f32 %v392, %v1762
      %v1777 = vmul.f32 %v393, %v1762
      %v1778 = vmul.f32 %v394, %v1762
      %v1779 = vmul.f32 %v395, %v1762
      %v1780 = vmul.f32 %v396, %v1762
      %v1781 = vmul.f32 %v397, %v1762
      %v1782 = vmul.f32 %v398, %v1762
      %v1783 = vmul.f32 %v399, %v1762
      %v1784 = vmul.f32 %v400, %v1762
      %v1785 = vmul.f32 %v401, %v1762
      %v1786 = vmul.f32 %v402, %v1762
      %v1787 = vadd.f32 %v1735, %v1763
      %v1788 = vadd.f32 %v1736, %v1764
      %v1789 = vadd.f32 %v1737, %v1765
      %v1790 = vadd.f32 %v1738, %v1766
      %v1791 = vadd.f32 %v1739, %v1767
      %v1792 = vadd.f32 %v1740, %v1768
      %v1793 = vadd.f32 %v1741, %v1769
      %v1794 = vadd.f32 %v1742, %v1770
      %v1795 = vadd.f32 %v1743, %v1771
      %v1796 = vadd.f32 %v1744, %v1772
      %v1797 = vadd.f32 %v1745, %v1773
      %v1798 = vadd.f32 %v1746, %v1774
      %v1799 = vadd.f32 %v1747, %v1775
      %v1800 = vadd.f32 %v1748, %v1776
      %v1801 = vadd.f32 %v1749, %v1777
      %v1802 = vadd.f32 %v1750, %v1778
      %v1803 = vadd.f32 %v1751, %v1779
      %v1804 = vadd.f32 %v1752, %v1780
      %v1805 = vadd.f32 %v1753, %v1781
      %v1806 = vadd.f32 %v1754, %v1782
      %v1807 = vadd.f32 %v1755, %v1783
      %v1808 = vadd.f32 %v1756, %v1784
      %v1809 = vadd.f32 %v1757, %v1785
      %v1810 = vadd.f32 %v1758, %v1786
      %v1811 = vlaneseq
      %v1812 = vshrl.u32 %v1811, 7
      %v1813 = vsub.s32 3, %v1812
      %v1814 = vrot.slane %v412, %v1813
      %v1815 = vmul.f32 %v382, %v1814
      %v1816 = vmul.f32 %v383, %v1814
      %v1817 = vmul.f32 %v384, %v1814
      %v1818 = vmul.f32 %v385, %v1814
      %v1819 = vmul.f32 %v386, %v1814
      %v1820 = vmul.f32 %v387, %v1814
      %v1821 = vmul.f32 %v388, %v1814
      %v1822 = vmul.f32 %v389, %v1814
      %v1823 = vmul.f32 %v390, %v1814
      %v1824 = vmul.f32 %v391, %v1814
      %v1825 = vmul.f32 %v392, %v1814
      %v1826 = vmul.f32 %v393, %v1814
      %v1827 = vmul.f32 %v394, %v1814
      %v1828 = vmul.f32 %v395, %v1814
      %v1829 = vmul.f32 %v396, %v1814
      %v1830 = vmul.f32 %v397, %v1814
      %v1831 = vmul.f32 %v398, %v1814
      %v1832 = vmul.f32 %v399, %v1814
      %v1833 = vmul.f32 %v400, %v1814
      %v1834 = vmul.f32 %v401, %v1814
      %v1835 = vmul.f32 %v402, %v1814
      %v1836 = vmul.f32 %v403, %v1814
      %v1837 = vmul.f32 %v404, %v1814
      %v1838 = vmul.f32 %v405, %v1814
      %v1839 = vadd.f32 %v1787, %v1815
      %v1840 = vadd.f32 %v1788, %v1816
      %v1841 = vadd.f32 %v1789, %v1817
      %v1842 = vadd.f32 %v1790, %v1818
      %v1843 = vadd.f32 %v1791, %v1819
      %v1844 = vadd.f32 %v1792, %v1820
      %v1845 = vadd.f32 %v1793, %v1821
      %v1846 = vadd.f32 %v1794, %v1822
      %v1847 = vadd.f32 %v1795, %v1823
      %v1848 = vadd.f32 %v1796, %v1824
      %v1849 = vadd.f32 %v1797, %v1825
      %v1850 = vadd.f32 %v1798, %v1826
      %v1851 = vadd.f32 %v1799, %v1827
      %v1852 = vadd.f32 %v1800, %v1828
      %v1853 = vadd.f32 %v1801, %v1829
      %v1854 = vadd.f32 %v1802, %v1830
      %v1855 = vadd.f32 %v1803, %v1831
      %v1856 = vadd.f32 %v1804, %v1832
      %v1857 = vadd.f32 %v1805, %v1833
      %v1858 = vadd.f32 %v1806, %v1834
      %v1859 = vadd.f32 %v1807, %v1835
      %v1860 = vadd.f32 %v1808, %v1836
      %v1861 = vadd.f32 %v1809, %v1837
      %v1862 = vadd.f32 %v1810, %v1838
      %vm1887 = vcmask 1044480
      %v1888 = vrot.slane %v1839, 3
      %v1889 = vrot.slane %v1840, 3
      %v1890 = vsel %vm1887, %v1888, %v1889
      %v1891 = vrot.slane %v1841, 3
      %v1892 = vsel %vm1887, %v1889, %v1891
      %v1893 = vrot.slane %v1842, 3
      %v1894 = vrot.slane %v1843, 3
      %v1895 = vsel %vm1887, %v1893, %v1894
      %v1896 = vrot.slane %v1844, 3
      %v1897 = vsel %vm1887, %v1894, %v1896
      %v1898 = vrot.slane %v1845, 3
      %v1899 = vrot.slane %v1846, 3
      %v1900 = vsel %vm1887, %v1898, %v1899
      %v1901 = vrot.slane %v1847, 3
      %v1902 = vsel %vm1887, %v1899, %v1901
      %v1903 = vrot.slane %v1848, 3
      %v1904 = vrot.slane %v1849, 3
      %v1905 = vsel %vm1887, %v1903, %v1904
      %v1906 = vrot.slane %v1850, 3
      %v1907 = vsel %vm1887, %v1904, %v1906
      %v1908 = vrot.slane %v1851, 3
      %v1909 = vrot.slane %v1852, 3
      %v1910 = vsel %vm1887, %v1908, %v1909
      %v1911 = vrot.slane %v1853, 3
      %v1912 = vsel %vm1887, %v1909, %v1911
      %v1913 = vrot.slane %v1854, 3
      %v1914 = vrot.slane %v1855, 3
      %v1915 = vsel %vm1887, %v1913, %v1914
      %v1916 = vrot.slane %v1856, 3
      %v1917 = vsel %vm1887, %v1914, %v1916
      %v1918 = vrot.slane %v1857, 3
      %v1919 = vrot.slane %v1858, 3
      %v1920 = vsel %vm1887, %v1918, %v1919
      %v1921 = vrot.slane %v1859, 3
      %v1922 = vsel %vm1887, %v1919, %v1921
      %v1923 = vrot.slane %v1860, 3
      %v1924 = vrot.slane %v1861, 3
      %v1925 = vsel %vm1887, %v1923, %v1924
      %v1926 = vrot.slane %v1862, 3
      %v1927 = vsel %vm1887, %v1924, %v1926
      %v1944 = vadd.f32 %v1507, %v1890
      %v1945 = vadd.f32 %v1508, %v1892
      %v1946 = vadd.f32 %v1509, %v1895
      %v1947 = vadd.f32 %v1510, %v1897
      %v1948 = vadd.f32 %v1511, %v1900
      %v1949 = vadd.f32 %v1512, %v1902
      %v1950 = vadd.f32 %v1513, %v1905
      %v1951 = vadd.f32 %v1514, %v1907
      %v1952 = vadd.f32 %v1515, %v1910
      %v1953 = vadd.f32 %v1516, %v1912
      %v1954 = vadd.f32 %v1517, %v1915
      %v1955 = vadd.f32 %v1518, %v1917
      %v1956 = vadd.f32 %v1519, %v1920
      %v1957 = vadd.f32 %v1520, %v1922
      %v1958 = vadd.f32 %v1521, %v1925
      %v1959 = vadd.f32 %v1522, %v1927
      %v1960 = vlaneseq
      %v1961 = vshrl.u32 %v1960, 7
      %v1962 = vsub.s32 4, %v1961
      %v1963 = vrot.slane %v406, %v1962
      %v1964 = vmul.f32 %v364, %v1963
      %v1965 = vmul.f32 %v365, %v1963
      %v1966 = vmul.f32 %v366, %v1963
      %v1967 = vmul.f32 %v367, %v1963
      %v1968 = vmul.f32 %v368, %v1963
      %v1969 = vmul.f32 %v369, %v1963
      %v1970 = vmul.f32 %v370, %v1963
      %v1971 = vmul.f32 %v371, %v1963
      %v1972 = vmul.f32 %v372, %v1963
      %v1973 = vmul.f32 %v373, %v1963
      %v1974 = vmul.f32 %v374, %v1963
      %v1975 = vmul.f32 %v375, %v1963
      %v1976 = vmul.f32 %v376, %v1963
      %v1977 = vmul.f32 %v377, %v1963
      %v1978 = vmul.f32 %v378, %v1963
      %v1979 = vmul.f32 %v379, %v1963
      %v1980 = vmul.f32 %v380, %v1963
      %v1981 = vmul.f32 %v381, %v1963
      %v1982 = vmul.f32 %v382, %v1963
      %v1983 = vmul.f32 %v383, %v1963
      %v1984 = vmul.f32 %v384, %v1963
      %v1985 = vmul.f32 %v385, %v1963
      %v1986 = vmul.f32 %v386, %v1963
      %v1987 = vmul.f32 %v387, %v1963
      %v1988 = vlaneseq
      %v1989 = vshrl.u32 %v1988, 7
      %v1990 = vsub.s32 4, %v1989
      %v1991 = vrot.slane %v407, %v1990
      %v1992 = vmul.f32 %v367, %v1991
      %v1993 = vmul.f32 %v368, %v1991
      %v1994 = vmul.f32 %v369, %v1991
      %v1995 = vmul.f32 %v370, %v1991
      %v1996 = vmul.f32 %v371, %v1991
      %v1997 = vmul.f32 %v372, %v1991
      %v1998 = vmul.f32 %v373, %v1991
      %v1999 = vmul.f32 %v374, %v1991
      %v2000 = vmul.f32 %v375, %v1991
      %v2001 = vmul.f32 %v376, %v1991
      %v2002 = vmul.f32 %v377, %v1991
      %v2003 = vmul.f32 %v378, %v1991
      %v2004 = vmul.f32 %v379, %v1991
      %v2005 = vmul.f32 %v380, %v1991
      %v2006 = vmul.f32 %v381, %v1991
      %v2007 = vmul.f32 %v382, %v1991
      %v2008 = vmul.f32 %v383, %v1991
      %v2009 = vmul.f32 %v384, %v1991
      %v2010 = vmul.f32 %v385, %v1991
      %v2011 = vmul.f32 %v386, %v1991
      %v2012 = vmul.f32 %v387, %v1991
      %v2013 = vmul.f32 %v388, %v1991
      %v2014 = vmul.f32 %v389, %v1991
      %v2015 = vmul.f32 %v390, %v1991
      %v2016 = vadd.f32 %v1964, %v1992
      %v2017 = vadd.f32 %v1965, %v1993
      %v2018 = vadd.f32 %v1966, %v1994
      %v2019 = vadd.f32 %v1967, %v1995
      %v2020 = vadd.f32 %v1968, %v1996
      %v2021 = vadd.f32 %v1969, %v1997
      %v2022 = vadd.f32 %v1970, %v1998
      %v2023 = vadd.f32 %v1971, %v1999
      %v2024 = vadd.f32 %v1972, %v2000
      %v2025 = vadd.f32 %v1973, %v2001
      %v2026 = vadd.f32 %v1974, %v2002
      %v2027 = vadd.f32 %v1975, %v2003
      %v2028 = vadd.f32 %v1976, %v2004
      %v2029 = vadd.f32 %v1977, %v2005
      %v2030 = vadd.f32 %v1978, %v2006
      %v2031 = vadd.f32 %v1979, %v2007
      %v2032 = vadd.f32 %v1980, %v2008
      %v2033 = vadd.f32 %v1981, %v2009
      %v2034 = vadd.f32 %v1982, %v2010
      %v2035 = vadd.f32 %v1983, %v2011
      %v2036 = vadd.f32 %v1984, %v2012
      %v2037 = vadd.f32 %v1985, %v2013
      %v2038 = vadd.f32 %v1986, %v2014
      %v2039 = vadd.f32 %v1987, %v2015
      %v2040 = vlaneseq
      %v2041 = vshrl.u32 %v2040, 7
      %v2042 = vsub.s32 4, %v2041
      %v2043 = vrot.slane %v408, %v2042
      %v2044 = vmul.f32 %v370, %v2043
      %v2045 = vmul.f32 %v371, %v2043
      %v2046 = vmul.f32 %v372, %v2043
      %v2047 = vmul.f32 %v373, %v2043
      %v2048 = vmul.f32 %v374, %v2043
      %v2049 = vmul.f32 %v375, %v2043
      %v2050 = vmul.f32 %v376, %v2043
      %v2051 = vmul.f32 %v377, %v2043
      %v2052 = vmul.f32 %v378, %v2043
      %v2053 = vmul.f32 %v379, %v2043
      %v2054 = vmul.f32 %v380, %v2043
      %v2055 = vmul.f32 %v381, %v2043
      %v2056 = vmul.f32 %v382, %v2043
      %v2057 = vmul.f32 %v383, %v2043
      %v2058 = vmul.f32 %v384, %v2043
      %v2059 = vmul.f32 %v385, %v2043
      %v2060 = vmul.f32 %v386, %v2043
      %v2061 = vmul.f32 %v387, %v2043
      %v2062 = vmul.f32 %v388, %v2043
      %v2063 = vmul.f32 %v389, %v2043
      %v2064 = vmul.f32 %v390, %v2043
      %v2065 = vmul.f32 %v391, %v2043
      %v2066 = vmul.f32 %v392, %v2043
      %v2067 = vmul.f32 %v393, %v2043
      %v2068 = vadd.f32 %v2016, %v2044
      %v2069 = vadd.f32 %v2017, %v2045
      %v2070 = vadd.f32 %v2018, %v2046
      %v2071 = vadd.f32 %v2019, %v2047
      %v2072 = vadd.f32 %v2020, %v2048
      %v2073 = vadd.f32 %v2021, %v2049
      %v2074 = vadd.f32 %v2022, %v2050
      %v2075 = vadd.f32 %v2023, %v2051
      %v2076 = vadd.f32 %v2024, %v2052
      %v2077 = vadd.f32 %v2025, %v2053
      %v2078 = vadd.f32 %v2026, %v2054
      %v2079 = vadd.f32 %v2027, %v2055
      %v2080 = vadd.f32 %v2028, %v2056
      %v2081 = vadd.f32 %v2029, %v2057
      %v2082 = vadd.f32 %v2030, %v2058
      %v2083 = vadd.f32 %v2031, %v2059
      %v2084 = vadd.f32 %v2032, %v2060
      %v2085 = vadd.f32 %v2033, %v2061
      %v2086 = vadd.f32 %v2034, %v2062
      %v2087 = vadd.f32 %v2035, %v2063
      %v2088 = vadd.f32 %v2036, %v2064
      %v2089 = vadd.f32 %v2037, %v2065
      %v2090 = vadd.f32 %v2038, %v2066
      %v2091 = vadd.f32 %v2039, %v2067
      %v2092 = vlaneseq
      %v2093 = vshrl.u32 %v2092, 7
      %v2094 = vsub.s32 4, %v2093
      %v2095 = vrot.slane %v409, %v2094
      %v2096 = vmul.f32 %v373, %v2095
      %v2097 = vmul.f32 %v374, %v2095
      %v2098 = vmul.f32 %v375, %v2095
      %v2099 = vmul.f32 %v376, %v2095
      %v2100 = vmul.f32 %v377, %v2095
      %v2101 = vmul.f32 %v378, %v2095
      %v2102 = vmul.f32 %v379, %v2095
      %v2103 = vmul.f32 %v380, %v2095
      %v2104 = vmul.f32 %v381, %v2095
      %v2105 = vmul.f32 %v382, %v2095
      %v2106 = vmul.f32 %v383, %v2095
      %v2107 = vmul.f32 %v384, %v2095
      %v2108 = vmul.f32 %v385, %v2095
      %v2109 = vmul.f32 %v386, %v2095
      %v2110 = vmul.f32 %v387, %v2095
      %v2111 = vmul.f32 %v388, %v2095
      %v2112 = vmul.f32 %v389, %v2095
      %v2113 = vmul.f32 %v390, %v2095
      %v2114 = vmul.f32 %v391, %v2095
      %v2115 = vmul.f32 %v392, %v2095
      %v2116 = vmul.f32 %v393, %v2095
      %v2117 = vmul.f32 %v394, %v2095
      %v2118 = vmul.f32 %v395, %v2095
      %v2119 = vmul.f32 %v396, %v2095
      %v2120 = vadd.f32 %v2068, %v2096
      %v2121 = vadd.f32 %v2069, %v2097
      %v2122 = vadd.f32 %v2070, %v2098
      %v2123 = vadd.f32 %v2071, %v2099
      %v2124 = vadd.f32 %v2072, %v2100
      %v2125 = vadd.f32 %v2073, %v2101
      %v2126 = vadd.f32 %v2074, %v2102
      %v2127 = vadd.f32 %v2075, %v2103
      %v2128 = vadd.f32 %v2076, %v2104
      %v2129 = vadd.f32 %v2077, %v2105
      %v2130 = vadd.f32 %v2078, %v2106
      %v2131 = vadd.f32 %v2079, %v2107
      %v2132 = vadd.f32 %v2080, %v2108
      %v2133 = vadd.f32 %v2081, %v2109
      %v2134 = vadd.f32 %v2082, %v2110
      %v2135 = vadd.f32 %v2083, %v2111
      %v2136 = vadd.f32 %v2084, %v2112
      %v2137 = vadd.f32 %v2085, %v2113
      %v2138 = vadd.f32 %v2086, %v2114
      %v2139 = vadd.f32 %v2087, %v2115
      %v2140 = vadd.f32 %v2088, %v2116
      %v2141 = vadd.f32 %v2089, %v2117
      %v2142 = vadd.f32 %v2090, %v2118
      %v2143 = vadd.f32 %v2091, %v2119
      %v2144 = vlaneseq
      %v2145 = vshrl.u32 %v2144, 7
      %v2146 = vsub.s32 4, %v2145
      %v2147 = vrot.slane %v410, %v2146
      %v2148 = vmul.f32 %v376, %v2147
      %v2149 = vmul.f32 %v377, %v2147
      %v2150 = vmul.f32 %v378, %v2147
      %v2151 = vmul.f32 %v379, %v2147
      %v2152 = vmul.f32 %v380, %v2147
      %v2153 = vmul.f32 %v381, %v2147
      %v2154 = vmul.f32 %v382, %v2147
      %v2155 = vmul.f32 %v383, %v2147
      %v2156 = vmul.f32 %v384, %v2147
      %v2157 = vmul.f32 %v385, %v2147
      %v2158 = vmul.f32 %v386, %v2147
      %v2159 = vmul.f32 %v387, %v2147
      %v2160 = vmul.f32 %v388, %v2147
      %v2161 = vmul.f32 %v389, %v2147
      %v2162 = vmul.f32 %v390, %v2147
      %v2163 = vmul.f32 %v391, %v2147
      %v2164 = vmul.f32 %v392, %v2147
      %v2165 = vmul.f32 %v393, %v2147
      %v2166 = vmul.f32 %v394, %v2147
      %v2167 = vmul.f32 %v395, %v2147
      %v2168 = vmul.f32 %v396, %v2147
      %v2169 = vmul.f32 %v397, %v2147
      %v2170 = vmul.f32 %v398, %v2147
      %v2171 = vmul.f32 %v399, %v2147
      %v2172 = vadd.f32 %v2120, %v2148
      %v2173 = vadd.f32 %v2121, %v2149
      %v2174 = vadd.f32 %v2122, %v2150
      %v2175 = vadd.f32 %v2123, %v2151
      %v2176 = vadd.f32 %v2124, %v2152
      %v2177 = vadd.f32 %v2125, %v2153
      %v2178 = vadd.f32 %v2126, %v2154
      %v2179 = vadd.f32 %v2127, %v2155
      %v2180 = vadd.f32 %v2128, %v2156
      %v2181 = vadd.f32 %v2129, %v2157
      %v2182 = vadd.f32 %v2130, %v2158
      %v2183 = vadd.f32 %v2131, %v2159
      %v2184 = vadd.f32 %v2132, %v2160
      %v2185 = vadd.f32 %v2133, %v2161
      %v2186 = vadd.f32 %v2134, %v2162
      %v2187 = vadd.f32 %v2135, %v2163
      %v2188 = vadd.f32 %v2136, %v2164
      %v2189 = vadd.f32 %v2137, %v2165
      %v2190 = vadd.f32 %v2138, %v2166
      %v2191 = vadd.f32 %v2139, %v2167
      %v2192 = vadd.f32 %v2140, %v2168
      %v2193 = vadd.f32 %v2141, %v2169
      %v2194 = vadd.f32 %v2142, %v2170
      %v2195 = vadd.f32 %v2143, %v2171
      %v2196 = vlaneseq
      %v2197 = vshrl.u32 %v2196, 7
      %v2198 = vsub.s32 4, %v2197
      %v2199 = vrot.slane %v411, %v2198
      %v2200 = vmul.f32 %v379, %v2199
      %v2201 = vmul.f32 %v380, %v2199
      %v2202 = vmul.f32 %v381, %v2199
      %v2203 = vmul.f32 %v382, %v2199
      %v2204 = vmul.f32 %v383, %v2199
      %v2205 = vmul.f32 %v384, %v2199
      %v2206 = vmul.f32 %v385, %v2199
      %v2207 = vmul.f32 %v386, %v2199
      %v2208 = vmul.f32 %v387, %v2199
      %v2209 = vmul.f32 %v388, %v2199
      %v2210 = vmul.f32 %v389, %v2199
      %v2211 = vmul.f32 %v390, %v2199
      %v2212 = vmul.f32 %v391, %v2199
      %v2213 = vmul.f32 %v392, %v2199
      %v2214 = vmul.f32 %v393, %v2199
      %v2215 = vmul.f32 %v394, %v2199
      %v2216 = vmul.f32 %v395, %v2199
      %v2217 = vmul.f32 %v396, %v2199
      %v2218 = vmul.f32 %v397, %v2199
      %v2219 = vmul.f32 %v398, %v2199
      %v2220 = vmul.f32 %v399, %v2199
      %v2221 = vmul.f32 %v400, %v2199
      %v2222 = vmul.f32 %v401, %v2199
      %v2223 = vmul.f32 %v402, %v2199
      %v2224 = vadd.f32 %v2172, %v2200
      %v2225 = vadd.f32 %v2173, %v2201
      %v2226 = vadd.f32 %v2174, %v2202
      %v2227 = vadd.f32 %v2175, %v2203
      %v2228 = vadd.f32 %v2176, %v2204
      %v2229 = vadd.f32 %v2177, %v2205
      %v2230 = vadd.f32 %v2178, %v2206
      %v2231 = vadd.f32 %v2179, %v2207
      %v2232 = vadd.f32 %v2180, %v2208
      %v2233 = vadd.f32 %v2181, %v2209
      %v2234 = vadd.f32 %v2182, %v2210
      %v2235 = vadd.f32 %v2183, %v2211
      %v2236 = vadd.f32 %v2184, %v2212
      %v2237 = vadd.f32 %v2185, %v2213
      %v2238 = vadd.f32 %v2186, %v2214
      %v2239 = vadd.f32 %v2187, %v2215
      %v2240 = vadd.f32 %v2188, %v2216
      %v2241 = vadd.f32 %v2189, %v2217
      %v2242 = vadd.f32 %v2190, %v2218
      %v2243 = vadd.f32 %v2191, %v2219
      %v2244 = vadd.f32 %v2192, %v2220
      %v2245 = vadd.f32 %v2193, %v2221
      %v2246 = vadd.f32 %v2194, %v2222
      %v2247 = vadd.f32 %v2195, %v2223
      %v2248 = vlaneseq
      %v2249 = vshrl.u32 %v2248, 7
      %v2250 = vsub.s32 4, %v2249
      %v2251 = vrot.slane %v412, %v2250
      %v2252 = vmul.f32 %v382, %v2251
      %v2253 = vmul.f32 %v383, %v2251
      %v2254 = vmul.f32 %v384, %v2251
      %v2255 = vmul.f32 %v385, %v2251
      %v2256 = vmul.f32 %v386, %v2251
      %v2257 = vmul.f32 %v387, %v2251
      %v2258 = vmul.f32 %v388, %v2251
      %v2259 = vmul.f32 %v389, %v2251
      %v2260 = vmul.f32 %v390, %v2251
      %v2261 = vmul.f32 %v391, %v2251
      %v2262 = vmul.f32 %v392, %v2251
      %v2263 = vmul.f32 %v393, %v2251
      %v2264 = vmul.f32 %v394, %v2251
      %v2265 = vmul.f32 %v395, %v2251
      %v2266 = vmul.f32 %v396, %v2251
      %v2267 = vmul.f32 %v397, %v2251
      %v2268 = vmul.f32 %v398, %v2251
      %v2269 = vmul.f32 %v399, %v2251
      %v2270 = vmul.f32 %v400, %v2251
      %v2271 = vmul.f32 %v401, %v2251
      %v2272 = vmul.f32 %v402, %v2251
      %v2273 = vmul.f32 %v403, %v2251
      %v2274 = vmul.f32 %v404, %v2251
      %v2275 = vmul.f32 %v405, %v2251
      %v2276 = vadd.f32 %v2224, %v2252
      %v2277 = vadd.f32 %v2225, %v2253
      %v2278 = vadd.f32 %v2226, %v2254
      %v2279 = vadd.f32 %v2227, %v2255
      %v2280 = vadd.f32 %v2228, %v2256
      %v2281 = vadd.f32 %v2229, %v2257
      %v2282 = vadd.f32 %v2230, %v2258
      %v2283 = vadd.f32 %v2231, %v2259
      %v2284 = vadd.f32 %v2232, %v2260
      %v2285 = vadd.f32 %v2233, %v2261
      %v2286 = vadd.f32 %v2234, %v2262
      %v2287 = vadd.f32 %v2235, %v2263
      %v2288 = vadd.f32 %v2236, %v2264
      %v2289 = vadd.f32 %v2237, %v2265
      %v2290 = vadd.f32 %v2238, %v2266
      %v2291 = vadd.f32 %v2239, %v2267
      %v2292 = vadd.f32 %v2240, %v2268
      %v2293 = vadd.f32 %v2241, %v2269
      %v2294 = vadd.f32 %v2242, %v2270
      %v2295 = vadd.f32 %v2243, %v2271
      %v2296 = vadd.f32 %v2244, %v2272
      %v2297 = vadd.f32 %v2245, %v2273
      %v2298 = vadd.f32 %v2246, %v2274
      %v2299 = vadd.f32 %v2247, %v2275
      %vm2324 = vcmask 1043456
      %v2325 = vrot.slane %v2276, 4
      %v2326 = vrot.slane %v2277, 4
      %v2327 = vsel %vm2324, %v2325, %v2326
      %v2328 = vrot.slane %v2278, 4
      %v2329 = vsel %vm2324, %v2326, %v2328
      %v2330 = vrot.slane %v2279, 4
      %v2331 = vrot.slane %v2280, 4
      %v2332 = vsel %vm2324, %v2330, %v2331
      %v2333 = vrot.slane %v2281, 4
      %v2334 = vsel %vm2324, %v2331, %v2333
      %v2335 = vrot.slane %v2282, 4
      %v2336 = vrot.slane %v2283, 4
      %v2337 = vsel %vm2324, %v2335, %v2336
      %v2338 = vrot.slane %v2284, 4
      %v2339 = vsel %vm2324, %v2336, %v2338
      %v2340 = vrot.slane %v2285, 4
      %v2341 = vrot.slane %v2286, 4
      %v2342 = vsel %vm2324, %v2340, %v2341
      %v2343 = vrot.slane %v2287, 4
      %v2344 = vsel %vm2324, %v2341, %v2343
      %v2345 = vrot.slane %v2288, 4
      %v2346 = vrot.slane %v2289, 4
      %v2347 = vsel %vm2324, %v2345, %v2346
      %v2348 = vrot.slane %v2290, 4
      %v2349 = vsel %vm2324, %v2346, %v2348
      %v2350 = vrot.slane %v2291, 4
      %v2351 = vrot.slane %v2292, 4
      %v2352 = vsel %vm2324, %v2350, %v2351
      %v2353 = vrot.slane %v2293, 4
      %v2354 = vsel %vm2324, %v2351, %v2353
      %v2355 = vrot.slane %v2294, 4
      %v2356 = vrot.slane %v2295, 4
      %v2357 = vsel %vm2324, %v2355, %v2356
      %v2358 = vrot.slane %v2296, 4
      %v2359 = vsel %vm2324, %v2356, %v2358
      %v2360 = vrot.slane %v2297, 4
      %v2361 = vrot.slane %v2298, 4
      %v2362 = vsel %vm2324, %v2360, %v2361
      %v2363 = vrot.slane %v2299, 4
      %v2364 = vsel %vm2324, %v2361, %v2363
      %v2381 = vadd.f32 %v1944, %v2327
      %v2382 = vadd.f32 %v1945, %v2329
      %v2383 = vadd.f32 %v1946, %v2332
      %v2384 = vadd.f32 %v1947, %v2334
      %v2385 = vadd.f32 %v1948, %v2337
      %v2386 = vadd.f32 %v1949, %v2339
      %v2387 = vadd.f32 %v1950, %v2342
      %v2388 = vadd.f32 %v1951, %v2344
      %v2389 = vadd.f32 %v1952, %v2347
      %v2390 = vadd.f32 %v1953, %v2349
      %v2391 = vadd.f32 %v1954, %v2352
      %v2392 = vadd.f32 %v1955, %v2354
      %v2393 = vadd.f32 %v1956, %v2357
      %v2394 = vadd.f32 %v1957, %v2359
      %v2395 = vadd.f32 %v1958, %v2362
      %v2396 = vadd.f32 %v1959, %v2364
      %v2397 = vlaneseq
      %v2398 = vshrl.u32 %v2397, 7
      %v2399 = vsub.s32 5, %v2398
      %v2400 = vrot.slane %v406, %v2399
      %v2401 = vmul.f32 %v364, %v2400
      %v2402 = vmul.f32 %v365, %v2400
      %v2403 = vmul.f32 %v366, %v2400
      %v2404 = vmul.f32 %v367, %v2400
      %v2405 = vmul.f32 %v368, %v2400
      %v2406 = vmul.f32 %v369, %v2400
      %v2407 = vmul.f32 %v370, %v2400
      %v2408 = vmul.f32 %v371, %v2400
      %v2409 = vmul.f32 %v372, %v2400
      %v2410 = vmul.f32 %v373, %v2400
      %v2411 = vmul.f32 %v374, %v2400
      %v2412 = vmul.f32 %v375, %v2400
      %v2413 = vmul.f32 %v376, %v2400
      %v2414 = vmul.f32 %v377, %v2400
      %v2415 = vmul.f32 %v378, %v2400
      %v2416 = vmul.f32 %v379, %v2400
      %v2417 = vmul.f32 %v380, %v2400
      %v2418 = vmul.f32 %v381, %v2400
      %v2419 = vmul.f32 %v382, %v2400
      %v2420 = vmul.f32 %v383, %v2400
      %v2421 = vmul.f32 %v384, %v2400
      %v2422 = vmul.f32 %v385, %v2400
      %v2423 = vmul.f32 %v386, %v2400
      %v2424 = vmul.f32 %v387, %v2400
      %v2425 = vlaneseq
      %v2426 = vshrl.u32 %v2425, 7
      %v2427 = vsub.s32 5, %v2426
      %v2428 = vrot.slane %v407, %v2427
      %v2429 = vmul.f32 %v367, %v2428
      %v2430 = vmul.f32 %v368, %v2428
      %v2431 = vmul.f32 %v369, %v2428
      %v2432 = vmul.f32 %v370, %v2428
      %v2433 = vmul.f32 %v371, %v2428
      %v2434 = vmul.f32 %v372, %v2428
      %v2435 = vmul.f32 %v373, %v2428
      %v2436 = vmul.f32 %v374, %v2428
      %v2437 = vmul.f32 %v375, %v2428
      %v2438 = vmul.f32 %v376, %v2428
      %v2439 = vmul.f32 %v377, %v2428
      %v2440 = vmul.f32 %v378, %v2428
      %v2441 = vmul.f32 %v379, %v2428
      %v2442 = vmul.f32 %v380, %v2428
      %v2443 = vmul.f32 %v381, %v2428
      %v2444 = vmul.f32 %v382, %v2428
      %v2445 = vmul.f32 %v383, %v2428
      %v2446 = vmul.f32 %v384, %v2428
      %v2447 = vmul.f32 %v385, %v2428
      %v2448 = vmul.f32 %v386, %v2428
      %v2449 = vmul.f32 %v387, %v2428
      %v2450 = vmul.f32 %v388, %v2428
      %v2451 = vmul.f32 %v389, %v2428
      %v2452 = vmul.f32 %v390, %v2428
      %v2453 = vadd.f32 %v2401, %v2429
      %v2454 = vadd.f32 %v2402, %v2430
      %v2455 = vadd.f32 %v2403, %v2431
      %v2456 = vadd.f32 %v2404, %v2432
      %v2457 = vadd.f32 %v2405, %v2433
      %v2458 = vadd.f32 %v2406, %v2434
      %v2459 = vadd.f32 %v2407, %v2435
      %v2460 = vadd.f32 %v2408, %v2436
      %v2461 = vadd.f32 %v2409, %v2437
      %v2462 = vadd.f32 %v2410, %v2438
      %v2463 = vadd.f32 %v2411, %v2439
      %v2464 = vadd.f32 %v2412, %v2440
      %v2465 = vadd.f32 %v2413, %v2441
      %v2466 = vadd.f32 %v2414, %v2442
      %v2467 = vadd.f32 %v2415, %v2443
      %v2468 = vadd.f32 %v2416, %v2444
      %v2469 = vadd.f32 %v2417, %v2445
      %v2470 = vadd.f32 %v2418, %v2446
      %v2471 = vadd.f32 %v2419, %v2447
      %v2472 = vadd.f32 %v2420, %v2448
      %v2473 = vadd.f32 %v2421, %v2449
      %v2474 = vadd.f32 %v2422, %v2450
      %v2475 = vadd.f32 %v2423, %v2451
      %v2476 = vadd.f32 %v2424, %v2452
      %v2477 = vlaneseq
      %v2478 = vshrl.u32 %v2477, 7
      %v2479 = vsub.s32 5, %v2478
      %v2480 = vrot.slane %v408, %v2479
      %v2481 = vmul.f32 %v370, %v2480
      %v2482 = vmul.f32 %v371, %v2480
      %v2483 = vmul.f32 %v372, %v2480
      %v2484 = vmul.f32 %v373, %v2480
      %v2485 = vmul.f32 %v374, %v2480
      %v2486 = vmul.f32 %v375, %v2480
      %v2487 = vmul.f32 %v376, %v2480
      %v2488 = vmul.f32 %v377, %v2480
      %v2489 = vmul.f32 %v378, %v2480
      %v2490 = vmul.f32 %v379, %v2480
      %v2491 = vmul.f32 %v380, %v2480
      %v2492 = vmul.f32 %v381, %v2480
      %v2493 = vmul.f32 %v382, %v2480
      %v2494 = vmul.f32 %v383, %v2480
      %v2495 = vmul.f32 %v384, %v2480
      %v2496 = vmul.f32 %v385, %v2480
      %v2497 = vmul.f32 %v386, %v2480
      %v2498 = vmul.f32 %v387, %v2480
      %v2499 = vmul.f32 %v388, %v2480
      %v2500 = vmul.f32 %v389, %v2480
      %v2501 = vmul.f32 %v390, %v2480
      %v2502 = vmul.f32 %v391, %v2480
      %v2503 = vmul.f32 %v392, %v2480
      %v2504 = vmul.f32 %v393, %v2480
      %v2505 = vadd.f32 %v2453, %v2481
      %v2506 = vadd.f32 %v2454, %v2482
      %v2507 = vadd.f32 %v2455, %v2483
      %v2508 = vadd.f32 %v2456, %v2484
      %v2509 = vadd.f32 %v2457, %v2485
      %v2510 = vadd.f32 %v2458, %v2486
      %v2511 = vadd.f32 %v2459, %v2487
      %v2512 = vadd.f32 %v2460, %v2488
      %v2513 = vadd.f32 %v2461, %v2489
      %v2514 = vadd.f32 %v2462, %v2490
      %v2515 = vadd.f32 %v2463, %v2491
      %v2516 = vadd.f32 %v2464, %v2492
      %v2517 = vadd.f32 %v2465, %v2493
      %v2518 = vadd.f32 %v2466, %v2494
      %v2519 = vadd.f32 %v2467, %v2495
      %v2520 = vadd.f32 %v2468, %v2496
      %v2521 = vadd.f32 %v2469, %v2497
      %v2522 = vadd.f32 %v2470, %v2498
      %v2523 = vadd.f32 %v2471, %v2499
      %v2524 = vadd.f32 %v2472, %v2500
      %v2525 = vadd.f32 %v2473, %v2501
      %v2526 = vadd.f32 %v2474, %v2502
      %v2527 = vadd.f32 %v2475, %v2503
      %v2528 = vadd.f32 %v2476, %v2504
      %v2529 = vlaneseq
      %v2530 = vshrl.u32 %v2529, 7
      %v2531 = vsub.s32 5, %v2530
      %v2532 = vrot.slane %v409, %v2531
      %v2533 = vmul.f32 %v373, %v2532
      %v2534 = vmul.f32 %v374, %v2532
      %v2535 = vmul.f32 %v375, %v2532
      %v2536 = vmul.f32 %v376, %v2532
      %v2537 = vmul.f32 %v377, %v2532
      %v2538 = vmul.f32 %v378, %v2532
      %v2539 = vmul.f32 %v379, %v2532
      %v2540 = vmul.f32 %v380, %v2532
      %v2541 = vmul.f32 %v381, %v2532
      %v2542 = vmul.f32 %v382, %v2532
      %v2543 = vmul.f32 %v383, %v2532
      %v2544 = vmul.f32 %v384, %v2532
      %v2545 = vmul.f32 %v385, %v2532
      %v2546 = vmul.f32 %v386, %v2532
      %v2547 = vmul.f32 %v387, %v2532
      %v2548 = vmul.f32 %v388, %v2532
      %v2549 = vmul.f32 %v389, %v2532
      %v2550 = vmul.f32 %v390, %v2532
      %v2551 = vmul.f32 %v391, %v2532
      %v2552 = vmul.f32 %v392, %v2532
      %v2553 = vmul.f32 %v393, %v2532
      %v2554 = vmul.f32 %v394, %v2532
      %v2555 = vmul.f32 %v395, %v2532
      %v2556 = vmul.f32 %v396, %v2532
      %v2557 = vadd.f32 %v2505, %v2533
      %v2558 = vadd.f32 %v2506, %v2534
      %v2559 = vadd.f32 %v2507, %v2535
      %v2560 = vadd.f32 %v2508, %v2536
      %v2561 = vadd.f32 %v2509, %v2537
      %v2562 = vadd.f32 %v2510, %v2538
      %v2563 = vadd.f32 %v2511, %v2539
      %v2564 = vadd.f32 %v2512, %v2540
      %v2565 = vadd.f32 %v2513, %v2541
      %v2566 = vadd.f32 %v2514, %v2542
      %v2567 = vadd.f32 %v2515, %v2543
      %v2568 = vadd.f32 %v2516, %v2544
      %v2569 = vadd.f32 %v2517, %v2545
      %v2570 = vadd.f32 %v2518, %v2546
      %v2571 = vadd.f32 %v2519, %v2547
      %v2572 = vadd.f32 %v2520, %v2548
      %v2573 = vadd.f32 %v2521, %v2549
      %v2574 = vadd.f32 %v2522, %v2550
      %v2575 = vadd.f32 %v2523, %v2551
      %v2576 = vadd.f32 %v2524, %v2552
      %v2577 = vadd.f32 %v2525, %v2553
      %v2578 = vadd.f32 %v2526, %v2554
      %v2579 = vadd.f32 %v2527, %v2555
      %v2580 = vadd.f32 %v2528, %v2556
      %v2581 = vlaneseq
      %v2582 = vshrl.u32 %v2581, 7
      %v2583 = vsub.s32 5, %v2582
      %v2584 = vrot.slane %v410, %v2583
      %v2585 = vmul.f32 %v376, %v2584
      %v2586 = vmul.f32 %v377, %v2584
      %v2587 = vmul.f32 %v378, %v2584
      %v2588 = vmul.f32 %v379, %v2584
      %v2589 = vmul.f32 %v380, %v2584
      %v2590 = vmul.f32 %v381, %v2584
      %v2591 = vmul.f32 %v382, %v2584
      %v2592 = vmul.f32 %v383, %v2584
      %v2593 = vmul.f32 %v384, %v2584
      %v2594 = vmul.f32 %v385, %v2584
      %v2595 = vmul.f32 %v386, %v2584
      %v2596 = vmul.f32 %v387, %v2584
      %v2597 = vmul.f32 %v388, %v2584
      %v2598 = vmul.f32 %v389, %v2584
      %v2599 = vmul.f32 %v390, %v2584
      %v2600 = vmul.f32 %v391, %v2584
      %v2601 = vmul.f32 %v392, %v2584
      %v2602 = vmul.f32 %v393, %v2584
      %v2603 = vmul.f32 %v394, %v2584
      %v2604 = vmul.f32 %v395, %v2584
      %v2605 = vmul.f32 %v396, %v2584
      %v2606 = vmul.f32 %v397, %v2584
      %v2607 = vmul.f32 %v398, %v2584
      %v2608 = vmul.f32 %v399, %v2584
      %v2609 = vadd.f32 %v2557, %v2585
      %v2610 = vadd.f32 %v2558, %v2586
      %v2611 = vadd.f32 %v2559, %v2587
      %v2612 = vadd.f32 %v2560, %v2588
      %v2613 = vadd.f32 %v2561, %v2589
      %v2614 = vadd.f32 %v2562, %v2590
      %v2615 = vadd.f32 %v2563, %v2591
      %v2616 = vadd.f32 %v2564, %v2592
      %v2617 = vadd.f32 %v2565, %v2593
      %v2618 = vadd.f32 %v2566, %v2594
      %v2619 = vadd.f32 %v2567, %v2595
      %v2620 = vadd.f32 %v2568, %v2596
      %v2621 = vadd.f32 %v2569, %v2597
      %v2622 = vadd.f32 %v2570, %v2598
      %v2623 = vadd.f32 %v2571, %v2599
      %v2624 = vadd.f32 %v2572, %v2600
      %v2625 = vadd.f32 %v2573, %v2601
      %v2626 = vadd.f32 %v2574, %v2602
      %v2627 = vadd.f32 %v2575, %v2603
      %v2628 = vadd.f32 %v2576, %v2604
      %v2629 = vadd.f32 %v2577, %v2605
      %v2630 = vadd.f32 %v2578, %v2606
      %v2631 = vadd.f32 %v2579, %v2607
      %v2632 = vadd.f32 %v2580, %v2608
      %v2633 = vlaneseq
      %v2634 = vshrl.u32 %v2633, 7
      %v2635 = vsub.s32 5, %v2634
      %v2636 = vrot.slane %v411, %v2635
      %v2637 = vmul.f32 %v379, %v2636
      %v2638 = vmul.f32 %v380, %v2636
      %v2639 = vmul.f32 %v381, %v2636
      %v2640 = vmul.f32 %v382, %v2636
      %v2641 = vmul.f32 %v383, %v2636
      %v2642 = vmul.f32 %v384, %v2636
      %v2643 = vmul.f32 %v385, %v2636
      %v2644 = vmul.f32 %v386, %v2636
      %v2645 = vmul.f32 %v387, %v2636
      %v2646 = vmul.f32 %v388, %v2636
      %v2647 = vmul.f32 %v389, %v2636
      %v2648 = vmul.f32 %v390, %v2636
      %v2649 = vmul.f32 %v391, %v2636
      %v2650 = vmul.f32 %v392, %v2636
      %v2651 = vmul.f32 %v393, %v2636
      %v2652 = vmul.f32 %v394, %v2636
      %v2653 = vmul.f32 %v395, %v2636
      %v2654 = vmul.f32 %v396, %v2636
      %v2655 = vmul.f32 %v397, %v2636
      %v2656 = vmul.f32 %v398, %v2636
      %v2657 = vmul.f32 %v399, %v2636
      %v2658 = vmul.f32 %v400, %v2636
      %v2659 = vmul.f32 %v401, %v2636
      %v2660 = vmul.f32 %v402, %v2636
      %v2661 = vadd.f32 %v2609, %v2637
      %v2662 = vadd.f32 %v2610, %v2638
      %v2663 = vadd.f32 %v2611, %v2639
      %v2664 = vadd.f32 %v2612, %v2640
      %v2665 = vadd.f32 %v2613, %v2641
      %v2666 = vadd.f32 %v2614, %v2642
      %v2667 = vadd.f32 %v2615, %v2643
      %v2668 = vadd.f32 %v2616, %v2644
      %v2669 = vadd.f32 %v2617, %v2645
      %v2670 = vadd.f32 %v2618, %v2646
      %v2671 = vadd.f32 %v2619, %v2647
      %v2672 = vadd.f32 %v2620, %v2648
      %v2673 = vadd.f32 %v2621, %v2649
      %v2674 = vadd.f32 %v2622, %v2650
      %v2675 = vadd.f32 %v2623, %v2651
      %v2676 = vadd.f32 %v2624, %v2652
      %v2677 = vadd.f32 %v2625, %v2653
      %v2678 = vadd.f32 %v2626, %v2654
      %v2679 = vadd.f32 %v2627, %v2655
      %v2680 = vadd.f32 %v2628, %v2656
      %v2681 = vadd.f32 %v2629, %v2657
      %v2682 = vadd.f32 %v2630, %v2658
      %v2683 = vadd.f32 %v2631, %v2659
      %v2684 = vadd.f32 %v2632, %v2660
      %v2685 = vlaneseq
      %v2686 = vshrl.u32 %v2685, 7
      %v2687 = vsub.s32 5, %v2686
      %v2688 = vrot.slane %v412, %v2687
      %v2689 = vmul.f32 %v382, %v2688
      %v2690 = vmul.f32 %v383, %v2688
      %v2691 = vmul.f32 %v384, %v2688
      %v2692 = vmul.f32 %v385, %v2688
      %v2693 = vmul.f32 %v386, %v2688
      %v2694 = vmul.f32 %v387, %v2688
      %v2695 = vmul.f32 %v388, %v2688
      %v2696 = vmul.f32 %v389, %v2688
      %v2697 = vmul.f32 %v390, %v2688
      %v2698 = vmul.f32 %v391, %v2688
      %v2699 = vmul.f32 %v392, %v2688
      %v2700 = vmul.f32 %v393, %v2688
      %v2701 = vmul.f32 %v394, %v2688
      %v2702 = vmul.f32 %v395, %v2688
      %v2703 = vmul.f32 %v396, %v2688
      %v2704 = vmul.f32 %v397, %v2688
      %v2705 = vmul.f32 %v398, %v2688
      %v2706 = vmul.f32 %v399, %v2688
      %v2707 = vmul.f32 %v400, %v2688
      %v2708 = vmul.f32 %v401, %v2688
      %v2709 = vmul.f32 %v402, %v2688
      %v2710 = vmul.f32 %v403, %v2688
      %v2711 = vmul.f32 %v404, %v2688
      %v2712 = vmul.f32 %v405, %v2688
      %v2713 = vadd.f32 %v2661, %v2689
      %v2714 = vadd.f32 %v2662, %v2690
      %v2715 = vadd.f32 %v2663, %v2691
      %v2716 = vadd.f32 %v2664, %v2692
      %v2717 = vadd.f32 %v2665, %v2693
      %v2718 = vadd.f32 %v2666, %v2694
      %v2719 = vadd.f32 %v2667, %v2695
      %v2720 = vadd.f32 %v2668, %v2696
      %v2721 = vadd.f32 %v2669, %v2697
      %v2722 = vadd.f32 %v2670, %v2698
      %v2723 = vadd.f32 %v2671, %v2699
      %v2724 = vadd.f32 %v2672, %v2700
      %v2725 = vadd.f32 %v2673, %v2701
      %v2726 = vadd.f32 %v2674, %v2702
      %v2727 = vadd.f32 %v2675, %v2703
      %v2728 = vadd.f32 %v2676, %v2704
      %v2729 = vadd.f32 %v2677, %v2705
      %v2730 = vadd.f32 %v2678, %v2706
      %v2731 = vadd.f32 %v2679, %v2707
      %v2732 = vadd.f32 %v2680, %v2708
      %v2733 = vadd.f32 %v2681, %v2709
      %v2734 = vadd.f32 %v2682, %v2710
      %v2735 = vadd.f32 %v2683, %v2711
      %v2736 = vadd.f32 %v2684, %v2712
      %vm2761 = vcmask 1042432
      %v2762 = vrot.slane %v2713, 5
      %v2763 = vrot.slane %v2714, 5
      %v2764 = vsel %vm2761, %v2762, %v2763
      %v2765 = vrot.slane %v2715, 5
      %v2766 = vsel %vm2761, %v2763, %v2765
      %v2767 = vrot.slane %v2716, 5
      %v2768 = vrot.slane %v2717, 5
      %v2769 = vsel %vm2761, %v2767, %v2768
      %v2770 = vrot.slane %v2718, 5
      %v2771 = vsel %vm2761, %v2768, %v2770
      %v2772 = vrot.slane %v2719, 5
      %v2773 = vrot.slane %v2720, 5
      %v2774 = vsel %vm2761, %v2772, %v2773
      %v2775 = vrot.slane %v2721, 5
      %v2776 = vsel %vm2761, %v2773, %v2775
      %v2777 = vrot.slane %v2722, 5
      %v2778 = vrot.slane %v2723, 5
      %v2779 = vsel %vm2761, %v2777, %v2778
      %v2780 = vrot.slane %v2724, 5
      %v2781 = vsel %vm2761, %v2778, %v2780
      %v2782 = vrot.slane %v2725, 5
      %v2783 = vrot.slane %v2726, 5
      %v2784 = vsel %vm2761, %v2782, %v2783
      %v2785 = vrot.slane %v2727, 5
      %v2786 = vsel %vm2761, %v2783, %v2785
      %v2787 = vrot.slane %v2728, 5
      %v2788 = vrot.slane %v2729, 5
      %v2789 = vsel %vm2761, %v2787, %v2788
      %v2790 = vrot.slane %v2730, 5
      %v2791 = vsel %vm2761, %v2788, %v2790
      %v2792 = vrot.slane %v2731, 5
      %v2793 = vrot.slane %v2732, 5
      %v2794 = vsel %vm2761, %v2792, %v2793
      %v2795 = vrot.slane %v2733, 5
      %v2796 = vsel %vm2761, %v2793, %v2795
      %v2797 = vrot.slane %v2734, 5
      %v2798 = vrot.slane %v2735, 5
      %v2799 = vsel %vm2761, %v2797, %v2798
      %v2800 = vrot.slane %v2736, 5
      %v2801 = vsel %vm2761, %v2798, %v2800
      %v2818 = vadd.f32 %v2381, %v2764
      %v2819 = vadd.f32 %v2382, %v2766
      %v2820 = vadd.f32 %v2383, %v2769
      %v2821 = vadd.f32 %v2384, %v2771
      %v2822 = vadd.f32 %v2385, %v2774
      %v2823 = vadd.f32 %v2386, %v2776
      %v2824 = vadd.f32 %v2387, %v2779
      %v2825 = vadd.f32 %v2388, %v2781
      %v2826 = vadd.f32 %v2389, %v2784
      %v2827 = vadd.f32 %v2390, %v2786
      %v2828 = vadd.f32 %v2391, %v2789
      %v2829 = vadd.f32 %v2392, %v2791
      %v2830 = vadd.f32 %v2393, %v2794
      %v2831 = vadd.f32 %v2394, %v2796
      %v2832 = vadd.f32 %v2395, %v2799
      %v2833 = vadd.f32 %v2396, %v2801
      %v2834 = vlaneseq
      %v2835 = vshrl.u32 %v2834, 7
      %v2836 = vsub.s32 6, %v2835
      %v2837 = vrot.slane %v406, %v2836
      %v2838 = vmul.f32 %v364, %v2837
      %v2839 = vmul.f32 %v365, %v2837
      %v2840 = vmul.f32 %v366, %v2837
      %v2841 = vmul.f32 %v367, %v2837
      %v2842 = vmul.f32 %v368, %v2837
      %v2843 = vmul.f32 %v369, %v2837
      %v2844 = vmul.f32 %v370, %v2837
      %v2845 = vmul.f32 %v371, %v2837
      %v2846 = vmul.f32 %v372, %v2837
      %v2847 = vmul.f32 %v373, %v2837
      %v2848 = vmul.f32 %v374, %v2837
      %v2849 = vmul.f32 %v375, %v2837
      %v2850 = vmul.f32 %v376, %v2837
      %v2851 = vmul.f32 %v377, %v2837
      %v2852 = vmul.f32 %v378, %v2837
      %v2853 = vmul.f32 %v379, %v2837
      %v2854 = vmul.f32 %v380, %v2837
      %v2855 = vmul.f32 %v381, %v2837
      %v2856 = vmul.f32 %v382, %v2837
      %v2857 = vmul.f32 %v383, %v2837
      %v2858 = vmul.f32 %v384, %v2837
      %v2859 = vmul.f32 %v385, %v2837
      %v2860 = vmul.f32 %v386, %v2837
      %v2861 = vmul.f32 %v387, %v2837
      %v2862 = vlaneseq
      %v2863 = vshrl.u32 %v2862, 7
      %v2864 = vsub.s32 6, %v2863
      %v2865 = vrot.slane %v407, %v2864
      %v2866 = vmul.f32 %v367, %v2865
      %v2867 = vmul.f32 %v368, %v2865
      %v2868 = vmul.f32 %v369, %v2865
      %v2869 = vmul.f32 %v370, %v2865
      %v2870 = vmul.f32 %v371, %v2865
      %v2871 = vmul.f32 %v372, %v2865
      %v2872 = vmul.f32 %v373, %v2865
      %v2873 = vmul.f32 %v374, %v2865
      %v2874 = vmul.f32 %v375, %v2865
      %v2875 = vmul.f32 %v376, %v2865
      %v2876 = vmul.f32 %v377, %v2865
      %v2877 = vmul.f32 %v378, %v2865
      %v2878 = vmul.f32 %v379, %v2865
      %v2879 = vmul.f32 %v380, %v2865
      %v2880 = vmul.f32 %v381, %v2865
      %v2881 = vmul.f32 %v382, %v2865
      %v2882 = vmul.f32 %v383, %v2865
      %v2883 = vmul.f32 %v384, %v2865
      %v2884 = vmul.f32 %v385, %v2865
      %v2885 = vmul.f32 %v386, %v2865
      %v2886 = vmul.f32 %v387, %v2865
      %v2887 = vmul.f32 %v388, %v2865
      %v2888 = vmul.f32 %v389, %v2865
      %v2889 = vmul.f32 %v390, %v2865
      %v2890 = vadd.f32 %v2838, %v2866
      %v2891 = vadd.f32 %v2839, %v2867
      %v2892 = vadd.f32 %v2840, %v2868
      %v2893 = vadd.f32 %v2841, %v2869
      %v2894 = vadd.f32 %v2842, %v2870
      %v2895 = vadd.f32 %v2843, %v2871
      %v2896 = vadd.f32 %v2844, %v2872
      %v2897 = vadd.f32 %v2845, %v2873
      %v2898 = vadd.f32 %v2846, %v2874
      %v2899 = vadd.f32 %v2847, %v2875
      %v2900 = vadd.f32 %v2848, %v2876
      %v2901 = vadd.f32 %v2849, %v2877
      %v2902 = vadd.f32 %v2850, %v2878
      %v2903 = vadd.f32 %v2851, %v2879
      %v2904 = vadd.f32 %v2852, %v2880
      %v2905 = vadd.f32 %v2853, %v2881
      %v2906 = vadd.f32 %v2854, %v2882
      %v2907 = vadd.f32 %v2855, %v2883
      %v2908 = vadd.f32 %v2856, %v2884
      %v2909 = vadd.f32 %v2857, %v2885
      %v2910 = vadd.f32 %v2858, %v2886
      %v2911 = vadd.f32 %v2859, %v2887
      %v2912 = vadd.f32 %v2860, %v2888
      %v2913 = vadd.f32 %v2861, %v2889
      %v2914 = vlaneseq
      %v2915 = vshrl.u32 %v2914, 7
      %v2916 = vsub.s32 6, %v2915
      %v2917 = vrot.slane %v408, %v2916
      %v2918 = vmul.f32 %v370, %v2917
      %v2919 = vmul.f32 %v371, %v2917
      %v2920 = vmul.f32 %v372, %v2917
      %v2921 = vmul.f32 %v373, %v2917
      %v2922 = vmul.f32 %v374, %v2917
      %v2923 = vmul.f32 %v375, %v2917
      %v2924 = vmul.f32 %v376, %v2917
      %v2925 = vmul.f32 %v377, %v2917
      %v2926 = vmul.f32 %v378, %v2917
      %v2927 = vmul.f32 %v379, %v2917
      %v2928 = vmul.f32 %v380, %v2917
      %v2929 = vmul.f32 %v381, %v2917
      %v2930 = vmul.f32 %v382, %v2917
      %v2931 = vmul.f32 %v383, %v2917
      %v2932 = vmul.f32 %v384, %v2917
      %v2933 = vmul.f32 %v385, %v2917
      %v2934 = vmul.f32 %v386, %v2917
      %v2935 = vmul.f32 %v387, %v2917
      %v2936 = vmul.f32 %v388, %v2917
      %v2937 = vmul.f32 %v389, %v2917
      %v2938 = vmul.f32 %v390, %v2917
      %v2939 = vmul.f32 %v391, %v2917
      %v2940 = vmul.f32 %v392, %v2917
      %v2941 = vmul.f32 %v393, %v2917
      %v2942 = vadd.f32 %v2890, %v2918
      %v2943 = vadd.f32 %v2891, %v2919
      %v2944 = vadd.f32 %v2892, %v2920
      %v2945 = vadd.f32 %v2893, %v2921
      %v2946 = vadd.f32 %v2894, %v2922
      %v2947 = vadd.f32 %v2895, %v2923
      %v2948 = vadd.f32 %v2896, %v2924
      %v2949 = vadd.f32 %v2897, %v2925
      %v2950 = vadd.f32 %v2898, %v2926
      %v2951 = vadd.f32 %v2899, %v2927
      %v2952 = vadd.f32 %v2900, %v2928
      %v2953 = vadd.f32 %v2901, %v2929
      %v2954 = vadd.f32 %v2902, %v2930
      %v2955 = vadd.f32 %v2903, %v2931
      %v2956 = vadd.f32 %v2904, %v2932
      %v2957 = vadd.f32 %v2905, %v2933
      %v2958 = vadd.f32 %v2906, %v2934
      %v2959 = vadd.f32 %v2907, %v2935
      %v2960 = vadd.f32 %v2908, %v2936
      %v2961 = vadd.f32 %v2909, %v2937
      %v2962 = vadd.f32 %v2910, %v2938
      %v2963 = vadd.f32 %v2911, %v2939
      %v2964 = vadd.f32 %v2912, %v2940
      %v2965 = vadd.f32 %v2913, %v2941
      %v2966 = vlaneseq
      %v2967 = vshrl.u32 %v2966, 7
      %v2968 = vsub.s32 6, %v2967
      %v2969 = vrot.slane %v409, %v2968
      %v2970 = vmul.f32 %v373, %v2969
      %v2971 = vmul.f32 %v374, %v2969
      %v2972 = vmul.f32 %v375, %v2969
      %v2973 = vmul.f32 %v376, %v2969
      %v2974 = vmul.f32 %v377, %v2969
      %v2975 = vmul.f32 %v378, %v2969
      %v2976 = vmul.f32 %v379, %v2969
      %v2977 = vmul.f32 %v380, %v2969
      %v2978 = vmul.f32 %v381, %v2969
      %v2979 = vmul.f32 %v382, %v2969
      %v2980 = vmul.f32 %v383, %v2969
      %v2981 = vmul.f32 %v384, %v2969
      %v2982 = vmul.f32 %v385, %v2969
      %v2983 = vmul.f32 %v386, %v2969
      %v2984 = vmul.f32 %v387, %v2969
      %v2985 = vmul.f32 %v388, %v2969
      %v2986 = vmul.f32 %v389, %v2969
      %v2987 = vmul.f32 %v390, %v2969
      %v2988 = vmul.f32 %v391, %v2969
      %v2989 = vmul.f32 %v392, %v2969
      %v2990 = vmul.f32 %v393, %v2969
      %v2991 = vmul.f32 %v394, %v2969
      %v2992 = vmul.f32 %v395, %v2969
      %v2993 = vmul.f32 %v396, %v2969
      %v2994 = vadd.f32 %v2942, %v2970
      %v2995 = vadd.f32 %v2943, %v2971
      %v2996 = vadd.f32 %v2944, %v2972
      %v2997 = vadd.f32 %v2945, %v2973
      %v2998 = vadd.f32 %v2946, %v2974
      %v2999 = vadd.f32 %v2947, %v2975
      %v3000 = vadd.f32 %v2948, %v2976
      %v3001 = vadd.f32 %v2949, %v2977
      %v3002 = vadd.f32 %v2950, %v2978
      %v3003 = vadd.f32 %v2951, %v2979
      %v3004 = vadd.f32 %v2952, %v2980
      %v3005 = vadd.f32 %v2953, %v2981
      %v3006 = vadd.f32 %v2954, %v2982
      %v3007 = vadd.f32 %v2955, %v2983
      %v3008 = vadd.f32 %v2956, %v2984
      %v3009 = vadd.f32 %v2957, %v2985
      %v3010 = vadd.f32 %v2958, %v2986
      %v3011 = vadd.f32 %v2959, %v2987
      %v3012 = vadd.f32 %v2960, %v2988
      %v3013 = vadd.f32 %v2961, %v2989
      %v3014 = vadd.f32 %v2962, %v2990
      %v3015 = vadd.f32 %v2963, %v2991
      %v3016 = vadd.f32 %v2964, %v2992
      %v3017 = vadd.f32 %v2965, %v2993
      %v3018 = vlaneseq
      %v3019 = vshrl.u32 %v3018, 7
      %v3020 = vsub.s32 6, %v3019
      %v3021 = vrot.slane %v410, %v3020
      %v3022 = vmul.f32 %v376, %v3021
      %v3023 = vmul.f32 %v377, %v3021
      %v3024 = vmul.f32 %v378, %v3021
      %v3025 = vmul.f32 %v379, %v3021
      %v3026 = vmul.f32 %v380, %v3021
      %v3027 = vmul.f32 %v381, %v3021
      %v3028 = vmul.f32 %v382, %v3021
      %v3029 = vmul.f32 %v383, %v3021
      %v3030 = vmul.f32 %v384, %v3021
      %v3031 = vmul.f32 %v385, %v3021
      %v3032 = vmul.f32 %v386, %v3021
      %v3033 = vmul.f32 %v387, %v3021
      %v3034 = vmul.f32 %v388, %v3021
      %v3035 = vmul.f32 %v389, %v3021
      %v3036 = vmul.f32 %v390, %v3021
      %v3037 = vmul.f32 %v391, %v3021
      %v3038 = vmul.f32 %v392, %v3021
      %v3039 = vmul.f32 %v393, %v3021
      %v3040 = vmul.f32 %v394, %v3021
      %v3041 = vmul.f32 %v395, %v3021
      %v3042 = vmul.f32 %v396, %v3021
      %v3043 = vmul.f32 %v397, %v3021
      %v3044 = vmul.f32 %v398, %v3021
      %v3045 = vmul.f32 %v399, %v3021
      %v3046 = vadd.f32 %v2994, %v3022
      %v3047 = vadd.f32 %v2995, %v3023
      %v3048 = vadd.f32 %v2996, %v3024
      %v3049 = vadd.f32 %v2997, %v3025
      %v3050 = vadd.f32 %v2998, %v3026
      %v3051 = vadd.f32 %v2999, %v3027
      %v3052 = vadd.f32 %v3000, %v3028
      %v3053 = vadd.f32 %v3001, %v3029
      %v3054 = vadd.f32 %v3002, %v3030
      %v3055 = vadd.f32 %v3003, %v3031
      %v3056 = vadd.f32 %v3004, %v3032
      %v3057 = vadd.f32 %v3005, %v3033
      %v3058 = vadd.f32 %v3006, %v3034
      %v3059 = vadd.f32 %v3007, %v3035
      %v3060 = vadd.f32 %v3008, %v3036
      %v3061 = vadd.f32 %v3009, %v3037
      %v3062 = vadd.f32 %v3010, %v3038
      %v3063 = vadd.f32 %v3011, %v3039
      %v3064 = vadd.f32 %v3012, %v3040
      %v3065 = vadd.f32 %v3013, %v3041
      %v3066 = vadd.f32 %v3014, %v3042
      %v3067 = vadd.f32 %v3015, %v3043
      %v3068 = vadd.f32 %v3016, %v3044
      %v3069 = vadd.f32 %v3017, %v3045
      %v3070 = vlaneseq
      %v3071 = vshrl.u32 %v3070, 7
      %v3072 = vsub.s32 6, %v3071
      %v3073 = vrot.slane %v411, %v3072
      %v3074 = vmul.f32 %v379, %v3073
      %v3075 = vmul.f32 %v380, %v3073
      %v3076 = vmul.f32 %v381, %v3073
      %v3077 = vmul.f32 %v382, %v3073
      %v3078 = vmul.f32 %v383, %v3073
      %v3079 = vmul.f32 %v384, %v3073
      %v3080 = vmul.f32 %v385, %v3073
      %v3081 = vmul.f32 %v386, %v3073
      %v3082 = vmul.f32 %v387, %v3073
      %v3083 = vmul.f32 %v388, %v3073
      %v3084 = vmul.f32 %v389, %v3073
      %v3085 = vmul.f32 %v390, %v3073
      %v3086 = vmul.f32 %v391, %v3073
      %v3087 = vmul.f32 %v392, %v3073
      %v3088 = vmul.f32 %v393, %v3073
      %v3089 = vmul.f32 %v394, %v3073
      %v3090 = vmul.f32 %v395, %v3073
      %v3091 = vmul.f32 %v396, %v3073
      %v3092 = vmul.f32 %v397, %v3073
      %v3093 = vmul.f32 %v398, %v3073
      %v3094 = vmul.f32 %v399, %v3073
      %v3095 = vmul.f32 %v400, %v3073
      %v3096 = vmul.f32 %v401, %v3073
      %v3097 = vmul.f32 %v402, %v3073
      %v3098 = vadd.f32 %v3046, %v3074
      %v3099 = vadd.f32 %v3047, %v3075
      %v3100 = vadd.f32 %v3048, %v3076
      %v3101 = vadd.f32 %v3049, %v3077
      %v3102 = vadd.f32 %v3050, %v3078
      %v3103 = vadd.f32 %v3051, %v3079
      %v3104 = vadd.f32 %v3052, %v3080
      %v3105 = vadd.f32 %v3053, %v3081
      %v3106 = vadd.f32 %v3054, %v3082
      %v3107 = vadd.f32 %v3055, %v3083
      %v3108 = vadd.f32 %v3056, %v3084
      %v3109 = vadd.f32 %v3057, %v3085
      %v3110 = vadd.f32 %v3058, %v3086
      %v3111 = vadd.f32 %v3059, %v3087
      %v3112 = vadd.f32 %v3060, %v3088
      %v3113 = vadd.f32 %v3061, %v3089
      %v3114 = vadd.f32 %v3062, %v3090
      %v3115 = vadd.f32 %v3063, %v3091
      %v3116 = vadd.f32 %v3064, %v3092
      %v3117 = vadd.f32 %v3065, %v3093
      %v3118 = vadd.f32 %v3066, %v3094
      %v3119 = vadd.f32 %v3067, %v3095
      %v3120 = vadd.f32 %v3068, %v3096
      %v3121 = vadd.f32 %v3069, %v3097
      %v3122 = vlaneseq
      %v3123 = vshrl.u32 %v3122, 7
      %v3124 = vsub.s32 6, %v3123
      %v3125 = vrot.slane %v412, %v3124
      %v3126 = vmul.f32 %v382, %v3125
      %v3127 = vmul.f32 %v383, %v3125
      %v3128 = vmul.f32 %v384, %v3125
      %v3129 = vmul.f32 %v385, %v3125
      %v3130 = vmul.f32 %v386, %v3125
      %v3131 = vmul.f32 %v387, %v3125
      %v3132 = vmul.f32 %v388, %v3125
      %v3133 = vmul.f32 %v389, %v3125
      %v3134 = vmul.f32 %v390, %v3125
      %v3135 = vmul.f32 %v391, %v3125
      %v3136 = vmul.f32 %v392, %v3125
      %v3137 = vmul.f32 %v393, %v3125
      %v3138 = vmul.f32 %v394, %v3125
      %v3139 = vmul.f32 %v395, %v3125
      %v3140 = vmul.f32 %v396, %v3125
      %v3141 = vmul.f32 %v397, %v3125
      %v3142 = vmul.f32 %v398, %v3125
      %v3143 = vmul.f32 %v399, %v3125
      %v3144 = vmul.f32 %v400, %v3125
      %v3145 = vmul.f32 %v401, %v3125
      %v3146 = vmul.f32 %v402, %v3125
      %v3147 = vmul.f32 %v403, %v3125
      %v3148 = vmul.f32 %v404, %v3125
      %v3149 = vmul.f32 %v405, %v3125
      %v3150 = vadd.f32 %v3098, %v3126
      %v3151 = vadd.f32 %v3099, %v3127
      %v3152 = vadd.f32 %v3100, %v3128
      %v3153 = vadd.f32 %v3101, %v3129
      %v3154 = vadd.f32 %v3102, %v3130
      %v3155 = vadd.f32 %v3103, %v3131
      %v3156 = vadd.f32 %v3104, %v3132
      %v3157 = vadd.f32 %v3105, %v3133
      %v3158 = vadd.f32 %v3106, %v3134
      %v3159 = vadd.f32 %v3107, %v3135
      %v3160 = vadd.f32 %v3108, %v3136
      %v3161 = vadd.f32 %v3109, %v3137
      %v3162 = vadd.f32 %v3110, %v3138
      %v3163 = vadd.f32 %v3111, %v3139
      %v3164 = vadd.f32 %v3112, %v3140
      %v3165 = vadd.f32 %v3113, %v3141
      %v3166 = vadd.f32 %v3114, %v3142
      %v3167 = vadd.f32 %v3115, %v3143
      %v3168 = vadd.f32 %v3116, %v3144
      %v3169 = vadd.f32 %v3117, %v3145
      %v3170 = vadd.f32 %v3118, %v3146
      %v3171 = vadd.f32 %v3119, %v3147
      %v3172 = vadd.f32 %v3120, %v3148
      %v3173 = vadd.f32 %v3121, %v3149
      %vm3198 = vcmask 1041408
      %v3199 = vrot.slane %v3150, 6
      %v3200 = vrot.slane %v3151, 6
      %v3201 = vsel %vm3198, %v3199, %v3200
      %v3202 = vrot.slane %v3152, 6
      %v3203 = vsel %vm3198, %v3200, %v3202
      %v3204 = vrot.slane %v3153, 6
      %v3205 = vrot.slane %v3154, 6
      %v3206 = vsel %vm3198, %v3204, %v3205
      %v3207 = vrot.slane %v3155, 6
      %v3208 = vsel %vm3198, %v3205, %v3207
      %v3209 = vrot.slane %v3156, 6
      %v3210 = vrot.slane %v3157, 6
      %v3211 = vsel %vm3198, %v3209, %v3210
      %v3212 = vrot.slane %v3158, 6
      %v3213 = vsel %vm3198, %v3210, %v3212
      %v3214 = vrot.slane %v3159, 6
      %v3215 = vrot.slane %v3160, 6
      %v3216 = vsel %vm3198, %v3214, %v3215
      %v3217 = vrot.slane %v3161, 6
      %v3218 = vsel %vm3198, %v3215, %v3217
      %v3219 = vrot.slane %v3162, 6
      %v3220 = vrot.slane %v3163, 6
      %v3221 = vsel %vm3198, %v3219, %v3220
      %v3222 = vrot.slane %v3164, 6
      %v3223 = vsel %vm3198, %v3220, %v3222
      %v3224 = vrot.slane %v3165, 6
      %v3225 = vrot.slane %v3166, 6
      %v3226 = vsel %vm3198, %v3224, %v3225
      %v3227 = vrot.slane %v3167, 6
      %v3228 = vsel %vm3198, %v3225, %v3227
      %v3229 = vrot.slane %v3168, 6
      %v3230 = vrot.slane %v3169, 6
      %v3231 = vsel %vm3198, %v3229, %v3230
      %v3232 = vrot.slane %v3170, 6
      %v3233 = vsel %vm3198, %v3230, %v3232
      %v3234 = vrot.slane %v3171, 6
      %v3235 = vrot.slane %v3172, 6
      %v3236 = vsel %vm3198, %v3234, %v3235
      %v3237 = vrot.slane %v3173, 6
      %v3238 = vsel %vm3198, %v3235, %v3237
      %v3255 = vadd.f32 %v2818, %v3201
      %v3256 = vadd.f32 %v2819, %v3203
      %v3257 = vadd.f32 %v2820, %v3206
      %v3258 = vadd.f32 %v2821, %v3208
      %v3259 = vadd.f32 %v2822, %v3211
      %v3260 = vadd.f32 %v2823, %v3213
      %v3261 = vadd.f32 %v2824, %v3216
      %v3262 = vadd.f32 %v2825, %v3218
      %v3263 = vadd.f32 %v2826, %v3221
      %v3264 = vadd.f32 %v2827, %v3223
      %v3265 = vadd.f32 %v2828, %v3226
      %v3266 = vadd.f32 %v2829, %v3228
      %v3267 = vadd.f32 %v2830, %v3231
      %v3268 = vadd.f32 %v2831, %v3233
      %v3269 = vadd.f32 %v2832, %v3236
      %v3270 = vadd.f32 %v2833, %v3238
      %v3271 = vld [vmem:[%s2] sm:$0x1]
      %v3273 = vlaneseq
      %v3274 = vshrl.u32 %v3273, 7
      %v3275 = vsub.s32 0, %v3274
      %v3276 = vrot.slane %v3271, %v3275
      %v3278 = vadd.f32 %v3255, %v3276
      %v3279 = vadd.f32 %v3256, %v3276
      %v3280 = vadd.f32 %v3257, %v3276
      %v3281 = vadd.f32 %v3258, %v3276
      %v3282 = vadd.f32 %v3259, %v3276
      %v3283 = vadd.f32 %v3260, %v3276
      %v3284 = vadd.f32 %v3261, %v3276
      %v3285 = vadd.f32 %v3262, %v3276
      %v3286 = vadd.f32 %v3263, %v3276
      %v3287 = vadd.f32 %v3264, %v3276
      %v3288 = vadd.f32 %v3265, %v3276
      %v3289 = vadd.f32 %v3266, %v3276
      %v3290 = vadd.f32 %v3267, %v3276
      %v3291 = vadd.f32 %v3268, %v3276
      %v3292 = vadd.f32 %v3269, %v3276
      %v3293 = vadd.f32 %v3270, %v3276
      %3294 = vadd.xlane.f32.xlu0 %v3278
      %v3295 = vpop.xlane.xlu0 %3294
      %3296 = vadd.xlane.f32.xlu0 %v3279
      %v3297 = vpop.xlane.xlu0 %3296
      %3298 = vadd.xlane.f32.xlu0 %v3280
      %v3299 = vpop.xlane.xlu0 %3298
      %3300 = vadd.xlane.f32.xlu0 %v3281
      %v3301 = vpop.xlane.xlu0 %3300
      %3302 = vadd.xlane.f32.xlu0 %v3282
      %v3303 = vpop.xlane.xlu0 %3302
      %3304 = vadd.xlane.f32.xlu0 %v3283
      %v3305 = vpop.xlane.xlu0 %3304
      %3306 = vadd.xlane.f32.xlu0 %v3284
      %v3307 = vpop.xlane.xlu0 %3306
      %3308 = vadd.xlane.f32.xlu0 %v3285
      %v3309 = vpop.xlane.xlu0 %3308
      %3310 = vadd.xlane.f32.xlu0 %v3286
      %v3311 = vpop.xlane.xlu0 %3310
      %3312 = vadd.xlane.f32.xlu0 %v3287
      %v3313 = vpop.xlane.xlu0 %3312
      %3314 = vadd.xlane.f32.xlu0 %v3288
      %v3315 = vpop.xlane.xlu0 %3314
      %3316 = vadd.xlane.f32.xlu0 %v3289
      %v3317 = vpop.xlane.xlu0 %3316
      %3318 = vadd.xlane.f32.xlu0 %v3290
      %v3319 = vpop.xlane.xlu0 %3318
      %3320 = vadd.xlane.f32.xlu0 %v3291
      %v3321 = vpop.xlane.xlu0 %3320
      %3322 = vadd.xlane.f32.xlu0 %v3292
      %v3323 = vpop.xlane.xlu0 %3322
      %3324 = vadd.xlane.f32.xlu0 %v3293
      %v3325 = vpop.xlane.xlu0 %3324
      %v3326 = vmul.f32 %v3295, 0.25
      %v3327 = vmul.f32 %v3297, 0.25
      %v3328 = vmul.f32 %v3299, 0.25
      %v3329 = vmul.f32 %v3301, 0.25
      %v3330 = vmul.f32 %v3303, 0.25
      %v3331 = vmul.f32 %v3305, 0.25
      %v3332 = vmul.f32 %v3307, 0.25
      %v3333 = vmul.f32 %v3309, 0.25
      %v3334 = vmul.f32 %v3311, 0.25
      %v3335 = vmul.f32 %v3313, 0.25
      %v3336 = vmul.f32 %v3315, 0.25
      %v3337 = vmul.f32 %v3317, 0.25
      %v3338 = vmul.f32 %v3319, 0.25
      %v3339 = vmul.f32 %v3321, 0.25
      %v3340 = vmul.f32 %v3323, 0.25
      %v3341 = vmul.f32 %v3325, 0.25
      %v3342 = vmul.f32 %v3278, %v3278
      %v3343 = vmul.f32 %v3279, %v3279
      %v3344 = vmul.f32 %v3280, %v3280
      %v3345 = vmul.f32 %v3281, %v3281
      %v3346 = vmul.f32 %v3282, %v3282
      %v3347 = vmul.f32 %v3283, %v3283
      %v3348 = vmul.f32 %v3284, %v3284
      %v3349 = vmul.f32 %v3285, %v3285
      %v3350 = vmul.f32 %v3286, %v3286
      %v3351 = vmul.f32 %v3287, %v3287
      %v3352 = vmul.f32 %v3288, %v3288
      %v3353 = vmul.f32 %v3289, %v3289
      %v3354 = vmul.f32 %v3290, %v3290
      %v3355 = vmul.f32 %v3291, %v3291
      %v3356 = vmul.f32 %v3292, %v3292
      %v3357 = vmul.f32 %v3293, %v3293
      %3358 = vadd.xlane.f32.xlu0 %v3342
      %v3359 = vpop.xlane.xlu0 %3358
      %3360 = vadd.xlane.f32.xlu0 %v3343
      %v3361 = vpop.xlane.xlu0 %3360
      %3362 = vadd.xlane.f32.xlu0 %v3344
      %v3363 = vpop.xlane.xlu0 %3362
      %3364 = vadd.xlane.f32.xlu0 %v3345
      %v3365 = vpop.xlane.xlu0 %3364
      %3366 = vadd.xlane.f32.xlu0 %v3346
      %v3367 = vpop.xlane.xlu0 %3366
      %3368 = vadd.xlane.f32.xlu0 %v3347
      %v3369 = vpop.xlane.xlu0 %3368
      %3370 = vadd.xlane.f32.xlu0 %v3348
      %v3371 = vpop.xlane.xlu0 %3370
      %3372 = vadd.xlane.f32.xlu0 %v3349
      %v3373 = vpop.xlane.xlu0 %3372
      %3374 = vadd.xlane.f32.xlu0 %v3350
      %v3375 = vpop.xlane.xlu0 %3374
      %3376 = vadd.xlane.f32.xlu0 %v3351
      %v3377 = vpop.xlane.xlu0 %3376
      %3378 = vadd.xlane.f32.xlu0 %v3352
      %v3379 = vpop.xlane.xlu0 %3378
      %3380 = vadd.xlane.f32.xlu0 %v3353
      %v3381 = vpop.xlane.xlu0 %3380
      %3382 = vadd.xlane.f32.xlu0 %v3354
      %v3383 = vpop.xlane.xlu0 %3382
      %3384 = vadd.xlane.f32.xlu0 %v3355
      %v3385 = vpop.xlane.xlu0 %3384
      %3386 = vadd.xlane.f32.xlu0 %v3356
      %v3387 = vpop.xlane.xlu0 %3386
      %3388 = vadd.xlane.f32.xlu0 %v3357
      %v3389 = vpop.xlane.xlu0 %3388
      %v3390 = vmul.f32 %v3359, 0.25
      %v3391 = vmul.f32 %v3361, 0.25
      %v3392 = vmul.f32 %v3363, 0.25
      %v3393 = vmul.f32 %v3365, 0.25
      %v3394 = vmul.f32 %v3367, 0.25
      %v3395 = vmul.f32 %v3369, 0.25
      %v3396 = vmul.f32 %v3371, 0.25
      %v3397 = vmul.f32 %v3373, 0.25
      %v3398 = vmul.f32 %v3375, 0.25
      %v3399 = vmul.f32 %v3377, 0.25
      %v3400 = vmul.f32 %v3379, 0.25
      %v3401 = vmul.f32 %v3381, 0.25
      %v3402 = vmul.f32 %v3383, 0.25
      %v3403 = vmul.f32 %v3385, 0.25
      %v3404 = vmul.f32 %v3387, 0.25
      %v3405 = vmul.f32 %v3389, 0.25
      %v3406 = vmul.f32 %v3326, %v3326
      %v3407 = vmul.f32 %v3327, %v3327
      %v3408 = vmul.f32 %v3328, %v3328
      %v3409 = vmul.f32 %v3329, %v3329
      %v3410 = vmul.f32 %v3330, %v3330
      %v3411 = vmul.f32 %v3331, %v3331
      %v3412 = vmul.f32 %v3332, %v3332
      %v3413 = vmul.f32 %v3333, %v3333
      %v3414 = vmul.f32 %v3334, %v3334
      %v3415 = vmul.f32 %v3335, %v3335
      %v3416 = vmul.f32 %v3336, %v3336
      %v3417 = vmul.f32 %v3337, %v3337
      %v3418 = vmul.f32 %v3338, %v3338
      %v3419 = vmul.f32 %v3339, %v3339
      %v3420 = vmul.f32 %v3340, %v3340
      %v3421 = vmul.f32 %v3341, %v3341
      %v3422 = vsub.f32 %v3390, %v3406
      %v3423 = vsub.f32 %v3391, %v3407
      %v3424 = vsub.f32 %v3392, %v3408
      %v3425 = vsub.f32 %v3393, %v3409
      %v3426 = vsub.f32 %v3394, %v3410
      %v3427 = vsub.f32 %v3395, %v3411
      %v3428 = vsub.f32 %v3396, %v3412
      %v3429 = vsub.f32 %v3397, %v3413
      %v3430 = vsub.f32 %v3398, %v3414
      %v3431 = vsub.f32 %v3399, %v3415
      %v3432 = vsub.f32 %v3400, %v3416
      %v3433 = vsub.f32 %v3401, %v3417
      %v3434 = vsub.f32 %v3402, %v3418
      %v3435 = vsub.f32 %v3403, %v3419
      %v3436 = vsub.f32 %v3404, %v3420
      %v3437 = vsub.f32 %v3405, %v3421
      %v3438 = vsub.f32 %v3278, %v3326
      %v3439 = vsub.f32 %v3279, %v3327
      %v3440 = vsub.f32 %v3280, %v3328
      %v3441 = vsub.f32 %v3281, %v3329
      %v3442 = vsub.f32 %v3282, %v3330
      %v3443 = vsub.f32 %v3283, %v3331
      %v3444 = vsub.f32 %v3284, %v3332
      %v3445 = vsub.f32 %v3285, %v3333
      %v3446 = vsub.f32 %v3286, %v3334
      %v3447 = vsub.f32 %v3287, %v3335
      %v3448 = vsub.f32 %v3288, %v3336
      %v3449 = vsub.f32 %v3289, %v3337
      %v3450 = vsub.f32 %v3290, %v3338
      %v3451 = vsub.f32 %v3291, %v3339
      %v3452 = vsub.f32 %v3292, %v3340
      %v3453 = vsub.f32 %v3293, %v3341
      %v3454 = vadd.f32 %v3422, 1e-06
      %v3455 = vadd.f32 %v3423, 1e-06
      %v3456 = vadd.f32 %v3424, 1e-06
      %v3457 = vadd.f32 %v3425, 1e-06
      %v3458 = vadd.f32 %v3426, 1e-06
      %v3459 = vadd.f32 %v3427, 1e-06
      %v3460 = vadd.f32 %v3428, 1e-06
      %v3461 = vadd.f32 %v3429, 1e-06
      %v3462 = vadd.f32 %v3430, 1e-06
      %v3463 = vadd.f32 %v3431, 1e-06
      %v3464 = vadd.f32 %v3432, 1e-06
      %v3465 = vadd.f32 %v3433, 1e-06
      %v3466 = vadd.f32 %v3434, 1e-06
      %v3467 = vadd.f32 %v3435, 1e-06
      %v3468 = vadd.f32 %v3436, 1e-06
      %v3469 = vadd.f32 %v3437, 1e-06
      %v3470 = vrsqrt.pop %v3454
      %v3471 = vrsqrt.pop %v3455
      %v3472 = vrsqrt.pop %v3456
      %v3473 = vrsqrt.pop %v3457
      %v3474 = vrsqrt.pop %v3458
      %v3475 = vrsqrt.pop %v3459
      %v3476 = vrsqrt.pop %v3460
      %v3477 = vrsqrt.pop %v3461
      %v3478 = vrsqrt.pop %v3462
      %v3479 = vrsqrt.pop %v3463
      %v3480 = vrsqrt.pop %v3464
      %v3481 = vrsqrt.pop %v3465
      %v3482 = vrsqrt.pop %v3466
      %v3483 = vrsqrt.pop %v3467
      %v3484 = vrsqrt.pop %v3468
      %v3485 = vrsqrt.pop %v3469
      %v3486 = vmul.f32 %v3438, %v3470
      %v3487 = vmul.f32 %v3439, %v3471
      %v3488 = vmul.f32 %v3440, %v3472
      %v3489 = vmul.f32 %v3441, %v3473
      %v3490 = vmul.f32 %v3442, %v3474
      %v3491 = vmul.f32 %v3443, %v3475
      %v3492 = vmul.f32 %v3444, %v3476
      %v3493 = vmul.f32 %v3445, %v3477
      %v3494 = vmul.f32 %v3446, %v3478
      %v3495 = vmul.f32 %v3447, %v3479
      %v3496 = vmul.f32 %v3448, %v3480
      %v3497 = vmul.f32 %v3449, %v3481
      %v3498 = vmul.f32 %v3450, %v3482
      %v3499 = vmul.f32 %v3451, %v3483
      %v3500 = vmul.f32 %v3452, %v3484
      %v3501 = vmul.f32 %v3453, %v3485
      %v3502 = vld [vmem:[%s3] sm:$0x1]
      %v3504 = vlaneseq
      %v3505 = vshrl.u32 %v3504, 7
      %v3506 = vsub.s32 0, %v3505
      %v3507 = vrot.slane %v3502, %v3506
      %v3509 = vmul.f32 %v3486, %v3507
      %v3510 = vmul.f32 %v3487, %v3507
      %v3511 = vmul.f32 %v3488, %v3507
      %v3512 = vmul.f32 %v3489, %v3507
      %v3513 = vmul.f32 %v3490, %v3507
      %v3514 = vmul.f32 %v3491, %v3507
      %v3515 = vmul.f32 %v3492, %v3507
      %v3516 = vmul.f32 %v3493, %v3507
      %v3517 = vmul.f32 %v3494, %v3507
      %v3518 = vmul.f32 %v3495, %v3507
      %v3519 = vmul.f32 %v3496, %v3507
      %v3520 = vmul.f32 %v3497, %v3507
      %v3521 = vmul.f32 %v3498, %v3507
      %v3522 = vmul.f32 %v3499, %v3507
      %v3523 = vmul.f32 %v3500, %v3507
      %v3524 = vmul.f32 %v3501, %v3507
      %v3525 = vld [vmem:[%s4] sm:$0x1]
      %v3527 = vlaneseq
      %v3528 = vshrl.u32 %v3527, 7
      %v3529 = vsub.s32 0, %v3528
      %v3530 = vrot.slane %v3525, %v3529
      %v3532 = vadd.f32 %v3509, %v3530
      %v3533 = vadd.f32 %v3510, %v3530
      %v3534 = vadd.f32 %v3511, %v3530
      %v3535 = vadd.f32 %v3512, %v3530
      %v3536 = vadd.f32 %v3513, %v3530
      %v3537 = vadd.f32 %v3514, %v3530
      %v3538 = vadd.f32 %v3515, %v3530
      %v3539 = vadd.f32 %v3516, %v3530
      %v3540 = vadd.f32 %v3517, %v3530
      %v3541 = vadd.f32 %v3518, %v3530
      %v3542 = vadd.f32 %v3519, %v3530
      %v3543 = vadd.f32 %v3520, %v3530
      %v3544 = vadd.f32 %v3521, %v3530
      %v3545 = vadd.f32 %v3522, %v3530
      %v3546 = vadd.f32 %v3523, %v3530
      %v3547 = vadd.f32 %v3524, %v3530
      %v3548 = vpack.c.bf16 %v3533, %v3532
      %v3549 = vpack.c.bf16 %v3535, %v3534
      %v3550 = vpack.c.bf16 %v3537, %v3536
      %v3551 = vpack.c.bf16 %v3539, %v3538
      %v3552 = vpack.c.bf16 %v3541, %v3540
      %v3553 = vpack.c.bf16 %v3543, %v3542
      %v3554 = vpack.c.bf16 %v3545, %v3544
      %v3555 = vpack.c.bf16 %v3547, %v3546
      %v3556 = vld [vmem:[%s5] sm:$0xf]
      %v3557 = vld [vmem:[%s5 + $0x4] sm:$0xf]
      %v3558 = vld [vmem:[%s5 + $0x8] sm:$0xf]
      %v3559 = vld [vmem:[%s5 + $0xc] sm:$0xf]
      %v3560 = vld [vmem:[%s5 + $0x10] sm:$0xf]
      %v3561 = vld [vmem:[%s5 + $0x14] sm:$0xf]
      %v3562 = vld [vmem:[%s5 + $0x18] sm:$0xf]
      %v3563 = vld [vmem:[%s5 + $0x1c] sm:$0xf]
      %v3564 = vld [vmem:[%s5 + $0x20] sm:$0xf]
      %v3565 = vld [vmem:[%s5 + $0x24] sm:$0xf]
      %v3566 = vld [vmem:[%s5 + $0x28] sm:$0xf]
      %v3567 = vld [vmem:[%s5 + $0x2c] sm:$0xf]
      %v3568 = vld [vmem:[%s5 + $0x30] sm:$0xf]
      %v3569 = vld [vmem:[%s5 + $0x34] sm:$0xf]
      %v3570 = vld [vmem:[%s5 + $0x38] sm:$0xf]
      %v3571 = vld [vmem:[%s5 + $0x3c] sm:$0xf]
      %v3572 = vld [vmem:[%s6] sm:$0x1]
      %v3574 = vlaneseq
      %v3575 = vshrl.u32 %v3574, 7
      %v3576 = vsub.s32 0, %v3575
      %v3577 = vrot.slane %v3572, %v3576
      %v3595 = vunpack.c.l.b16 %v3556
      %v3596 = vunpack.c.l.b16 %v3557
      %v3597 = vunpack.c.l.b16 %v3558
      %v3598 = vunpack.c.l.b16 %v3559
      %v3599 = vunpack.c.l.b16 %v3560
      %v3600 = vunpack.c.l.b16 %v3561
      %v3601 = vunpack.c.l.b16 %v3562
      %v3602 = vunpack.c.l.b16 %v3563
      %v3603 = vunpack.c.l.b16 %v3564
      %v3604 = vunpack.c.l.b16 %v3565
      %v3605 = vunpack.c.l.b16 %v3566
      %v3606 = vunpack.c.l.b16 %v3567
      %v3607 = vunpack.c.l.b16 %v3568
      %v3608 = vunpack.c.l.b16 %v3569
      %v3609 = vunpack.c.l.b16 %v3570
      %v3610 = vunpack.c.l.b16 %v3571
      %v3611 = vpack.c.b16 %v3596, %v3595
      %v3612 = vpack.c.b16 %v3598, %v3597
      %v3613 = vpack.c.b16 %v3600, %v3599
      %v3614 = vpack.c.b16 %v3602, %v3601
      %v3615 = vpack.c.b16 %v3604, %v3603
      %v3616 = vpack.c.b16 %v3606, %v3605
      %v3617 = vpack.c.b16 %v3608, %v3607
      %v3618 = vpack.c.b16 %v3610, %v3609
      %3627 = vmatprep.subr.bf16.mxu0 0
      %3628 = vmatpush1.bf16.msra.mxu0 %v3611
      %3629 = vmatprep.subr.bf16.mxu0 0
      %3630 = vmatpush1.bf16.msra.mxu0 %v3612
      %3631 = vmatprep.subr.bf16.mxu0 0
      %3632 = vmatpush1.bf16.msra.mxu0 %v3613
      %3633 = vmatprep.subr.bf16.mxu0 0
      %3634 = vmatpush1.bf16.msra.mxu0 %v3614
      %3635 = vmatprep.subr.bf16.mxu0 0
      %3636 = vmatpush1.bf16.msra.mxu0 %v3615
      %3637 = vmatprep.subr.bf16.mxu0 0
      %3638 = vmatpush1.bf16.msra.mxu0 %v3616
      %3639 = vmatprep.subr.bf16.mxu0 0
      %3640 = vmatpush1.bf16.msra.mxu0 %v3617
      %3641 = vmatprep.subr.bf16.mxu0 0
      %3642 = vmatpush1.bf16.msra.mxu0 %v3618
      %3643 = vmatprep.subr.bf16.mxu0 0
      %3644 = vmatpush1.bf16.msra.mxu0 0
      %3645 = vmatprep.subr.bf16.mxu0 0
      %3646 = vmatpush1.bf16.msra.mxu0 0
      %3647 = vmatprep.subr.bf16.mxu0 0
      %3648 = vmatpush1.bf16.msra.mxu0 0
      %3649 = vmatprep.subr.bf16.mxu0 0
      %3650 = vmatpush1.bf16.msra.mxu0 0
      %3651 = vmatprep.subr.bf16.mxu0 0
      %3652 = vmatpush1.bf16.msra.mxu0 0
      %3653 = vmatprep.subr.bf16.mxu0 0
      %3654 = vmatpush1.bf16.msra.mxu0 0
      %3655 = vmatprep.subr.bf16.mxu0 0
      %3656 = vmatpush1.bf16.msra.mxu0 0
      %3657 = vmatprep.subr.bf16.mxu0 0
      %3658 = vmatpush1.bf16.msra.mxu0 0
      %3659 = vmatprep.mubr.bf16.mxu0 0
      %3660 = vmatmul.mubr.bf16.gmra.mrb[0].mxu0 %v3548
      %v3661 = vpop.f32.mrb[0].mxu0
      %v3662 = vadd.f32 %v3577, %v3661
      %v3663 = vpop.f32.mrb[0].mxu0
      %v3664 = vpop.f32.mrb[0].mxu0
      %v3665 = vadd.f32 %v3577, %v3664
      %v3666 = vpop.f32.mrb[0].mxu0
      %3667 = vmatprep.mubr.bf16.mxu0 0
      %3668 = vmatmul.mubr.bf16.gmra.mrb[0].mxu0 %v3549
      %v3669 = vpop.f32.mrb[0].mxu0
      %v3670 = vadd.f32 %v3577, %v3669
      %v3671 = vpop.f32.mrb[0].mxu0
      %v3672 = vpop.f32.mrb[0].mxu0
      %v3673 = vadd.f32 %v3577, %v3672
      %v3674 = vpop.f32.mrb[0].mxu0
      %3675 = vmatprep.mubr.bf16.mxu0 0
      %3676 = vmatmul.mubr.bf16.gmra.mrb[0].mxu0 %v3550
      %v3677 = vpop.f32.mrb[0].mxu0
      %v3678 = vadd.f32 %v3577, %v3677
      %v3679 = vpop.f32.mrb[0].mxu0
      %v3680 = vpop.f32.mrb[0].mxu0
      %v3681 = vadd.f32 %v3577, %v3680
      %v3682 = vpop.f32.mrb[0].mxu0
      %3683 = vmatprep.mubr.bf16.mxu0 0
      %3684 = vmatmul.mubr.bf16.gmra.mrb[0].mxu0 %v3551
      %v3685 = vpop.f32.mrb[0].mxu0
      %v3686 = vadd.f32 %v3577, %v3685
      %v3687 = vpop.f32.mrb[0].mxu0
      %v3688 = vpop.f32.mrb[0].mxu0
      %v3689 = vadd.f32 %v3577, %v3688
      %v3690 = vpop.f32.mrb[0].mxu0
      %3691 = vmatprep.mubr.bf16.mxu0 0
      %3692 = vmatmul.mubr.bf16.gmra.mrb[0].mxu0 %v3552
      %v3693 = vpop.f32.mrb[0].mxu0
      %v3694 = vadd.f32 %v3577, %v3693
      %v3695 = vpop.f32.mrb[0].mxu0
      %v3696 = vpop.f32.mrb[0].mxu0
      %v3697 = vadd.f32 %v3577, %v3696
      %v3698 = vpop.f32.mrb[0].mxu0
      %3699 = vmatprep.mubr.bf16.mxu0 0
      %3700 = vmatmul.mubr.bf16.gmra.mrb[0].mxu0 %v3553
      %v3701 = vpop.f32.mrb[0].mxu0
      %v3702 = vadd.f32 %v3577, %v3701
      %v3703 = vpop.f32.mrb[0].mxu0
      %v3704 = vpop.f32.mrb[0].mxu0
      %v3705 = vadd.f32 %v3577, %v3704
      %v3706 = vpop.f32.mrb[0].mxu0
      %3707 = vmatprep.mubr.bf16.mxu0 0
      %3708 = vmatmul.mubr.bf16.gmra.mrb[0].mxu0 %v3554
      %v3709 = vpop.f32.mrb[0].mxu0
      %v3710 = vadd.f32 %v3577, %v3709
      %v3711 = vpop.f32.mrb[0].mxu0
      %v3712 = vpop.f32.mrb[0].mxu0
      %v3713 = vadd.f32 %v3577, %v3712
      %v3714 = vpop.f32.mrb[0].mxu0
      %3715 = vmatprep.mubr.bf16.mxu0 0
      %3716 = vmatmul.mubr.bf16.gmra.mrb[0].mxu0 %v3555
      %v3717 = vpop.f32.mrb[0].mxu0
      %v3718 = vadd.f32 %v3577, %v3717
      %v3719 = vpop.f32.mrb[0].mxu0
      %v3720 = vpop.f32.mrb[0].mxu0
      %v3721 = vadd.f32 %v3577, %v3720
      %v3722 = vpop.f32.mrb[0].mxu0
      %3723 = vdwg.mxu0
      %v3724 = vmul.f32 %v3662, 0.5
      %v3725 = vmul.f32 %v3665, 0.5
      %v3726 = vmul.f32 %v3670, 0.5
      %v3727 = vmul.f32 %v3673, 0.5
      %v3728 = vmul.f32 %v3678, 0.5
      %v3729 = vmul.f32 %v3681, 0.5
      %v3730 = vmul.f32 %v3686, 0.5
      %v3731 = vmul.f32 %v3689, 0.5
      %v3732 = vmul.f32 %v3694, 0.5
      %v3733 = vmul.f32 %v3697, 0.5
      %v3734 = vmul.f32 %v3702, 0.5
      %v3735 = vmul.f32 %v3705, 0.5
      %v3736 = vmul.f32 %v3710, 0.5
      %v3737 = vmul.f32 %v3713, 0.5
      %v3738 = vmul.f32 %v3718, 0.5
      %v3739 = vmul.f32 %v3721, 0.5
      %v3740 = vmul.f32 %v3662, 0.70710677
      %v3741 = vmul.f32 %v3665, 0.70710677
      %v3742 = vmul.f32 %v3670, 0.70710677
      %v3743 = vmul.f32 %v3673, 0.70710677
      %v3744 = vmul.f32 %v3678, 0.70710677
      %v3745 = vmul.f32 %v3681, 0.70710677
      %v3746 = vmul.f32 %v3686, 0.70710677
      %v3747 = vmul.f32 %v3689, 0.70710677
      %v3748 = vmul.f32 %v3694, 0.70710677
      %v3749 = vmul.f32 %v3697, 0.70710677
      %v3750 = vmul.f32 %v3702, 0.70710677
      %v3751 = vmul.f32 %v3705, 0.70710677
      %v3752 = vmul.f32 %v3710, 0.70710677
      %v3753 = vmul.f32 %v3713, 0.70710677
      %v3754 = vmul.f32 %v3718, 0.70710677
      %v3755 = vmul.f32 %v3721, 0.70710677
      %v3756 = verf.f32.pop %v3740
      %v3757 = verf.f32.pop %v3741
      %v3758 = verf.f32.pop %v3742
      %v3759 = verf.f32.pop %v3743
      %v3760 = verf.f32.pop %v3744
      %v3761 = verf.f32.pop %v3745
      %v3762 = verf.f32.pop %v3746
      %v3763 = verf.f32.pop %v3747
      %v3764 = verf.f32.pop %v3748
      %v3765 = verf.f32.pop %v3749
      %v3766 = verf.f32.pop %v3750
      %v3767 = verf.f32.pop %v3751
      %v3768 = verf.f32.pop %v3752
      %v3769 = verf.f32.pop %v3753
      %v3770 = verf.f32.pop %v3754
      %v3771 = verf.f32.pop %v3755
      %v3772 = vadd.f32 %v3756, 1.0
      %v3773 = vadd.f32 %v3757, 1.0
      %v3774 = vadd.f32 %v3758, 1.0
      %v3775 = vadd.f32 %v3759, 1.0
      %v3776 = vadd.f32 %v3760, 1.0
      %v3777 = vadd.f32 %v3761, 1.0
      %v3778 = vadd.f32 %v3762, 1.0
      %v3779 = vadd.f32 %v3763, 1.0
      %v3780 = vadd.f32 %v3764, 1.0
      %v3781 = vadd.f32 %v3765, 1.0
      %v3782 = vadd.f32 %v3766, 1.0
      %v3783 = vadd.f32 %v3767, 1.0
      %v3784 = vadd.f32 %v3768, 1.0
      %v3785 = vadd.f32 %v3769, 1.0
      %v3786 = vadd.f32 %v3770, 1.0
      %v3787 = vadd.f32 %v3771, 1.0
      %v3788 = vmul.f32 %v3724, %v3772
      %v3789 = vmul.f32 %v3725, %v3773
      %v3790 = vmul.f32 %v3726, %v3774
      %v3791 = vmul.f32 %v3727, %v3775
      %v3792 = vmul.f32 %v3728, %v3776
      %v3793 = vmul.f32 %v3729, %v3777
      %v3794 = vmul.f32 %v3730, %v3778
      %v3795 = vmul.f32 %v3731, %v3779
      %v3796 = vmul.f32 %v3732, %v3780
      %v3797 = vmul.f32 %v3733, %v3781
      %v3798 = vmul.f32 %v3734, %v3782
      %v3799 = vmul.f32 %v3735, %v3783
      %v3800 = vmul.f32 %v3736, %v3784
      %v3801 = vmul.f32 %v3737, %v3785
      %v3802 = vmul.f32 %v3738, %v3786
      %v3803 = vmul.f32 %v3739, %v3787
      %3804 = vst [vmem:[%s354] sm:$0xff] %v3788
      %3805 = vst [vmem:[%s354 + $0x8] sm:$0xff] %v3789
      %3806 = vst [vmem:[%s354 + $0x10] sm:$0xff] %v3790
      %3807 = vst [vmem:[%s354 + $0x18] sm:$0xff] %v3791
      %3808 = vst [vmem:[%s354 + $0x20] sm:$0xff] %v3792
      %3809 = vst [vmem:[%s354 + $0x28] sm:$0xff] %v3793
      %3810 = vst [vmem:[%s354 + $0x30] sm:$0xff] %v3794
      %3811 = vst [vmem:[%s354 + $0x38] sm:$0xff] %v3795
      %3812 = vst [vmem:[%s354 + $0x40] sm:$0xff] %v3796
      %3813 = vst [vmem:[%s354 + $0x48] sm:$0xff] %v3797
      %3814 = vst [vmem:[%s354 + $0x50] sm:$0xff] %v3798
      %3815 = vst [vmem:[%s354 + $0x58] sm:$0xff] %v3799
      %3816 = vst [vmem:[%s354 + $0x60] sm:$0xff] %v3800
      %3817 = vst [vmem:[%s354 + $0x68] sm:$0xff] %v3801
      %3818 = vst [vmem:[%s354 + $0x70] sm:$0xff] %v3802
      %3819 = vst [vmem:[%s354 + $0x78] sm:$0xff] %v3803
      %v3820 = vmul.f32 %v3788, %v3788
      %v3821 = vmul.f32 %v3789, %v3789
      %v3822 = vmul.f32 %v3790, %v3790
      %v3823 = vmul.f32 %v3791, %v3791
      %v3824 = vmul.f32 %v3792, %v3792
      %v3825 = vmul.f32 %v3793, %v3793
      %v3826 = vmul.f32 %v3794, %v3794
      %v3827 = vmul.f32 %v3795, %v3795
      %v3828 = vmul.f32 %v3796, %v3796
      %v3829 = vmul.f32 %v3797, %v3797
      %v3830 = vmul.f32 %v3798, %v3798
      %v3831 = vmul.f32 %v3799, %v3799
      %v3832 = vmul.f32 %v3800, %v3800
      %v3833 = vmul.f32 %v3801, %v3801
      %v3834 = vmul.f32 %v3802, %v3802
      %v3835 = vmul.f32 %v3803, %v3803
      %v3836 = vadd.f32 %v3820, %v3821
      %v3837 = vadd.f32 %v3836, %v3822
      %v3838 = vadd.f32 %v3837, %v3823
      %v3839 = vadd.f32 %v3838, %v3824
      %v3840 = vadd.f32 %v3839, %v3825
      %v3841 = vadd.f32 %v3840, %v3826
      %v3842 = vadd.f32 %v3841, %v3827
      %v3843 = vadd.f32 %v3842, %v3828
      %v3844 = vadd.f32 %v3843, %v3829
      %v3845 = vadd.f32 %v3844, %v3830
      %v3846 = vadd.f32 %v3845, %v3831
      %v3847 = vadd.f32 %v3846, %v3832
      %v3848 = vadd.f32 %v3847, %v3833
      %v3849 = vadd.f32 %v3848, %v3834
      %v3850 = vadd.f32 %v3849, %v3835
      %v3851 = vrot.slane %v3850, 4
      %v3852 = vadd.f32 %v3850, %v3851
      %v3853 = vrot.slane %v3852, 2
      %v3854 = vadd.f32 %v3852, %v3853
      %v3855 = vrot.slane %v3854, 1
      %v3856 = vadd.f32 %v3854, %v3855
      %3857 = vst [vmem:[%s362] sm:$0xff] %v3856
      %p3858 = scmp.lt.s32.totalorder %s24, 1
      %s3859 = scalar_select %p3858, %s24, 1
      %p3860 = scmp.lt.s32.totalorder %s25, 1
      %s3861 = scalar_select %p3860, %s25, 1
      %s3862 = smul.addr %s3861, 16
      %s3863 = smul.addr %s3859, 32
      %s3864 = sadd.s32 %s3862, %s3863
      %s3865 = smul.addr %s3864, 8
      %s3866 = scalar_lea.vmem %s7, %s3865
      %p3867 = scmp.lt.s32.totalorder %s24, 1
      %s3868 = scalar_select %p3867, %s24, 1
      %p3869 = scmp.lt.s32.totalorder %s25, 1
      %s3870 = scalar_select %p3869, %s25, 1
      %s3871 = smul.addr %s3868, 2
      %s3872 = sadd.s32 %s3870, %s3871
      %s3873 = smul.addr %s3872, 8
      %s3874 = scalar_lea.vmem %s8, %s3873
      // Predicated region
      $region49: #{convnext_block.2} parent=47 // pred_check
        %p3875 = pneg %p206
      $region50: #{convnext_block.2} parent=47 // pred_check_branch
        %3877 = sbr.rel (%p3875) target = $region52
      $region51: #{convnext_block.2} parent=47 // pred_region
        _
      $region52: #{convnext_block.2} parent=47 // pred_fallthru
        _
      // Predicated region
      $region53: #{convnext_block.2} parent=47 // pred_check
        %p3878 = pneg %p234
      $region54: #{convnext_block.2} parent=47 // pred_check_branch
        %3880 = sbr.rel (%p3878) target = $region56
      $region55: #{convnext_block.2} parent=47 // pred_region
        _
      $region56: #{convnext_block.2} parent=47 // pred_fallthru
        _
    $region48: #{convnext_block.2} parent=5 // pred_fallthru
      _
    %p3881 = scmp.le.s32.totalorder 2, %s15
    // Predicated region
    $region57: #{convnext_block.2} parent=5 // pred_check
      %p3882 = pneg %p3881
    $region58: #{convnext_block.2} parent=5 // pred_check_branch
      %3884 = sbr.rel (%p3882) target = $region60
    $region59: #{convnext_block.2} parent=5 // pred_region
      %s3885 = ssub.s32 %s15, 2
      // Predicated region
      $region61: #{convnext_block.2} parent=59 // pred_check
        %p3886 = pneg %p212
      $region62: #{convnext_block.2} parent=59 // pred_check_branch
        %3888 = sbr.rel (%p3886) target = $region64
      $region63: #{convnext_block.2} parent=59 // pred_region
        %p3889 = scmp.lt.s32.totalorder %s26, 1
        %s3890 = scalar_select %p3889, %s26, 1
        %p3891 = scmp.lt.s32.totalorder %s27, 1
        %s3892 = scalar_select %p3891, %s27, 1
        %s3893 = smul.addr %s3892, 16
        %s3894 = smul.addr %s3890, 32
        %s3895 = sadd.s32 %s3893, %s3894
        %s3896 = smul.addr %s3895, 8
        %s3897 = scalar_lea.vmem %s7, %s3896
      $region64: #{convnext_block.2} parent=59 // pred_fallthru
        _
      // Predicated region
      $region65: #{convnext_block.2} parent=59 // pred_check
        %p3898 = pneg %p240
      $region66: #{convnext_block.2} parent=59 // pred_check_branch
        %3900 = sbr.rel (%p3898) target = $region68
      $region67: #{convnext_block.2} parent=59 // pred_region
        %p3901 = scmp.lt.s32.totalorder %s26, 1
        %s3902 = scalar_select %p3901, %s26, 1
        %p3903 = scmp.lt.s32.totalorder %s27, 1
        %s3904 = scalar_select %p3903, %s27, 1
        %s3905 = smul.addr %s3902, 2
        %s3906 = sadd.s32 %s3904, %s3905
        %s3907 = smul.addr %s3906, 8
        %s3908 = scalar_lea.vmem %s8, %s3907
      $region68: #{convnext_block.2} parent=59 // pred_fallthru
        _
    $region60: #{convnext_block.2} parent=5 // pred_fallthru
      _
  $region6: #{convnext_block.2} parent=0 // loop_footer
    %s19 = sadd.s32 1, %s15
  $region7: #{convnext_block.2} parent=0 // loop_footer_branch
    %14 = sbr.rel target = $region3
  $region8: #{convnext_block.2} parent=0 // loop_exit
    _

</llo_original>
